<compile_context>
chip_gen: v7x
topology: tpu7x:2x2x1
jax: 0.10.0
libtpu: 0.0.40
codegen_flags: <defaults>
</compile_context>

<pallas_src>
import jax
import jax.numpy as jnp
from jax.experimental import pallas as pl
from jax.experimental.pallas import tpu as pltpu

D_MODEL = 32
N_HEADS = 4
D_K = D_MODEL // N_HEADS
D_FF = 64
EPS = 1e-6


# ------------------------------ fused kernel ------------------------------- #

def _decoder_layer_kernel(
    # activations / masks
    x_ref, mem_ref, smask_ref, tmask_ref,
    # self-attention params (fused QKV)
    sa_wqkv_ref, sa_bqkv_ref, sa_wo_ref, sa_bo_ref,
    # src-attention params (fused QKV)
    ca_wqkv_ref, ca_bqkv_ref, ca_wo_ref, ca_bo_ref,
    # feed-forward params
    w1_ref, b1_ref, w2_ref, b2_ref,
    # layernorm params
    ln0_g_ref, ln0_b_ref, ln1_g_ref, ln1_b_ref, ln2_g_ref, ln2_b_ref,
    # output
    o_ref,
):
    B, T, D = x_ref.shape
    S = mem_ref.shape[1]
    H, Dk = N_HEADS, D_K

    # residual stream kept 2-D (B*T, D) for the linear layers
    x = x_ref[...].reshape(B * T, D)
    mem2d = mem_ref[...].reshape(B * S, D)

    def layernorm(v, g_ref, b_ref):
        mu = jnp.mean(v, axis=-1, keepdims=True)
        var = jnp.mean((v - mu) ** 2, axis=-1, keepdims=True)
        return g_ref[...] * (v - mu) * jax.lax.rsqrt(var + EPS) + b_ref[...]

    def masked_softmax(scores, mask):
        # mask: (B, Tq, Tk), 1.0 = keep, 0.0 = masked (same for every head)
        scores = jnp.where(mask > 0, scores, jnp.float32(-1e9))
        scores = scores - jnp.max(scores, axis=-1, keepdims=True)
        p = jnp.exp(scores)
        return p * pl.reciprocal(jnp.sum(p, axis=-1, keepdims=True), approx=True)

    def mha(q3, k3, v3, mask3, wo_ref, bo_ref, residual):
        # q3: (B, Tq, D); k3/v3: (B, Tk, D); mask3: (B, Tq, Tk)
        # 1/sqrt(d_k) is already folded into the Q projection weights.
        Tq = q3.shape[1]
        heads = []
        for h in range(H):  # static unroll, all heads stay in VMEM
            qh = q3[:, :, h * Dk:(h + 1) * Dk]
            kh = k3[:, :, h * Dk:(h + 1) * Dk]
            vh = v3[:, :, h * Dk:(h + 1) * Dk]
            s = jnp.einsum('bqd,bkd->bqk', qh, kh,
                           preferred_element_type=jnp.float32)
            p = masked_softmax(s, mask3)
            heads.append(jnp.einsum('bqk,bkd->bqd', p, vh,
                                    preferred_element_type=jnp.float32))
        a = jnp.concatenate(heads, axis=-1).reshape(B * Tq, D)
        # output projection + residual add
        # TODO(synk): dropout in ResidualConnection is identity (eval mode).
        return (residual
                + jnp.dot(a, wo_ref[...], preferred_element_type=jnp.float32)
                + bo_ref[...])

    # ---- sublayer[0]: x + self_attn(norm(x), norm(x), norm(x), tgt_mask) ----
    n = layernorm(x, ln0_g_ref, ln0_b_ref)
    qkv = (jnp.dot(n, sa_wqkv_ref[...], preferred_element_type=jnp.float32)
           + sa_bqkv_ref[...])
    q3 = qkv[:, 0 * D:1 * D].reshape(B, T, D)
    k3 = qkv[:, 1 * D:2 * D].reshape(B, T, D)
    v3 = qkv[:, 2 * D:3 * D].reshape(B, T, D)
    x = mha(q3, k3, v3, tmask_ref[...], sa_wo_ref, sa_bo_ref, x)

    # ---- sublayer[1]: x + src_attn(norm(x), memory, memory, src_mask) ----
    n = layernorm(x, ln1_g_ref, ln1_b_ref)
    q = (jnp.dot(n, ca_wqkv_ref[:, :D], preferred_element_type=jnp.float32)
         + ca_bqkv_ref[:, :D])
    kv = (jnp.dot(mem2d, ca_wqkv_ref[:, D:], preferred_element_type=jnp.float32)
          + ca_bqkv_ref[:, D:])
    q3 = q.reshape(B, T, D)
    k3 = kv[:, :D].reshape(B, S, D)
    v3 = kv[:, D:].reshape(B, S, D)
    x = mha(q3, k3, v3, smask_ref[...], ca_wo_ref, ca_bo_ref, x)

    # ---- sublayer[2]: x + ff(norm(x)) ----
    n = layernorm(x, ln2_g_ref, ln2_b_ref)
    h1 = jnp.maximum(
        jnp.dot(n, w1_ref[...], preferred_element_type=jnp.float32) + b1_ref[...],
        0.0)
    x = x + jnp.dot(h1, w2_ref[...], preferred_element_type=jnp.float32) + b2_ref[...]

    # Single 2 KB store; keeping the natural (B, T, D) layout (lane-dense slab
    # reshape not worth a relayout at this size).
    o_ref[...] = x.reshape(B, T, D)


# -------------------------------- wrapper ----------------------------------- #

def _full_spec(shape):
    return pl.BlockSpec(shape, lambda i, _n=len(shape): (0,) * _n)


def decoder_layer(x, memory, src_mask, tgt_mask, params):
    """x: (B,T,D); memory: (B,S,D); src_mask: (B,T,S); tgt_mask: (B,T,T)."""
    B, T, D = x.shape
    sa, ca, ff = params["self_attn"], params["src_attn"], params["ff"]
    flat = (
        x, memory, src_mask, tgt_mask,
        sa["wqkv"], sa["bqkv"], sa["wo"], sa["bo"],
        ca["wqkv"], ca["bqkv"], ca["wo"], ca["bo"],
        ff["w1"], ff["b1"], ff["w2"], ff["b2"],
        params["ln0_g"], params["ln0_b"],
        params["ln1_g"], params["ln1_b"],
        params["ln2_g"], params["ln2_b"],
    )
    return pl.pallas_call(
        _decoder_layer_kernel,
        out_shape=jax.ShapeDtypeStruct((B, T, D), jnp.float32),
        grid=(1,),  # whole layer fits VMEM; single program, single TC
        in_specs=[_full_spec(a.shape) for a in flat],
        out_specs=_full_spec((B, T, D)),
        compiler_params=pltpu.CompilerParams(
            dimension_semantics=("arbitrary",),
            vmem_limit_bytes=32 * 1024 * 1024,
        ),
    )(*flat)


# -------------------------------- params ------------------------------------ #

def init_params(key):
    ks = iter(jax.random.split(key, 12))

    def w(shape, scale=0.02):
        return scale * jax.random.normal(next(ks), shape, dtype=jnp.float32)

    # 1/sqrt(d_k) attention scale folded into the Q projection (one-time
    # parameter transform; bq is zero so only the weight needs scaling).
    q_scale = 1.0 / float(D_K) ** 0.5

    def attn_params():
        wq, wk, wv = (w((D_MODEL, D_MODEL)), w((D_MODEL, D_MODEL)),
                      w((D_MODEL, D_MODEL)))
        return {
            "wqkv": jnp.concatenate([wq * q_scale, wk, wv], axis=1),  # (D, 3D)
            "bqkv": jnp.zeros((1, 3 * D_MODEL), jnp.float32),
            "wo": w((D_MODEL, D_MODEL)),
            "bo": jnp.zeros((1, D_MODEL), jnp.float32),
        }

    return {
        "self_attn": attn_params(),
        "src_attn": attn_params(),
        "ff": {
            "w1": w((D_MODEL, D_FF)), "b1": jnp.zeros((1, D_FF), jnp.float32),
            "w2": w((D_FF, D_MODEL)), "b2": jnp.zeros((1, D_MODEL), jnp.float32),
        },
        "ln0_g": jnp.ones((1, D_MODEL), jnp.float32),
        "ln0_b": jnp.zeros((1, D_MODEL), jnp.float32),
        "ln1_g": jnp.ones((1, D_MODEL), jnp.float32),
        "ln1_b": jnp.zeros((1, D_MODEL), jnp.float32),
        "ln2_g": jnp.ones((1, D_MODEL), jnp.float32),
        "ln2_b": jnp.zeros((1, D_MODEL), jnp.float32),
    }


# ---------------------------------- main ------------------------------------ #

if __name__ == "__main__":
    B, T, S = 2, 8, 8
    key = jax.random.PRNGKey(0)
    k_x, k_m, k_p = jax.random.split(key, 3)

    x = jax.random.normal(k_x, (B, T, D_MODEL), dtype=jnp.float32)
    memory = jax.random.normal(k_m, (B, S, D_MODEL), dtype=jnp.float32)

    # causal tgt mask (B, T, T); all-ones src mask (B, T, S)
    tgt_mask = jnp.broadcast_to(
        jnp.tril(jnp.ones((T, T), jnp.float32)), (B, T, T))
    src_mask = jnp.ones((B, T, S), jnp.float32)

    params = init_params(k_p)

    fwd = jax.jit(decoder_layer)
    out = fwd(x, memory, src_mask, tgt_mask, params)
    jax.block_until_ready(out)

    assert out.shape == (B, T, D_MODEL) and out.dtype == jnp.float32
    assert bool(jnp.all(jnp.isfinite(out)))
    print("KERNEL_OK")
</pallas_src>

<mosaic_0001>
module attributes {stable_mosaic.version = 11 : i64} {
  func.func @_decoder_layer_kernel(%arg0: i32, %arg1: memref<2x8x32xf32, #tpu.memory_space<vmem>>, %arg2: memref<2x8x32xf32, #tpu.memory_space<vmem>>, %arg3: memref<2x8x8xf32, #tpu.memory_space<vmem>>, %arg4: memref<2x8x8xf32, #tpu.memory_space<vmem>>, %arg5: memref<32x96xf32, #tpu.memory_space<vmem>>, %arg6: memref<1x96xf32, #tpu.memory_space<vmem>>, %arg7: memref<32x32xf32, #tpu.memory_space<vmem>>, %arg8: memref<1x32xf32, #tpu.memory_space<vmem>>, %arg9: memref<32x96xf32, #tpu.memory_space<vmem>>, %arg10: memref<1x96xf32, #tpu.memory_space<vmem>>, %arg11: memref<32x32xf32, #tpu.memory_space<vmem>>, %arg12: memref<1x32xf32, #tpu.memory_space<vmem>>, %arg13: memref<32x64xf32, #tpu.memory_space<vmem>>, %arg14: memref<1x64xf32, #tpu.memory_space<vmem>>, %arg15: memref<64x32xf32, #tpu.memory_space<vmem>>, %arg16: memref<1x32xf32, #tpu.memory_space<vmem>>, %arg17: memref<1x32xf32, #tpu.memory_space<vmem>>, %arg18: memref<1x32xf32, #tpu.memory_space<vmem>>, %arg19: memref<1x32xf32, #tpu.memory_space<vmem>>, %arg20: memref<1x32xf32, #tpu.memory_space<vmem>>, %arg21: memref<1x32xf32, #tpu.memory_space<vmem>>, %arg22: memref<1x32xf32, #tpu.memory_space<vmem>>, %arg23: memref<2x8x32xf32, #tpu.memory_space<vmem>>) attributes {dimension_semantics = [#tpu.dimension_semantics<arbitrary>], iteration_bounds = array<i64: 1>, scalar_prefetch = 0 : i64, scratch_operands = 0 : i64, tpu.core_type = #tpu.core_type<tc>, window_params = [{pipeline_mode = #tpu.pipeline_mode<synchronous>, transform_indices = @transform_0, window_bounds = array<i64: 2, 8, 32>}, {pipeline_mode = #tpu.pipeline_mode<synchronous>, transform_indices = @transform_1, window_bounds = array<i64: 2, 8, 32>}, {pipeline_mode = #tpu.pipeline_mode<synchronous>, transform_indices = @transform_2, window_bounds = array<i64: 2, 8, 8>}, {pipeline_mode = #tpu.pipeline_mode<synchronous>, transform_indices = @transform_3, window_bounds = array<i64: 2, 8, 8>}, {pipeline_mode = #tpu.pipeline_mode<synchronous>, transform_indices = @transform_4, window_bounds = array<i64: 32, 96>}, {pipeline_mode = #tpu.pipeline_mode<synchronous>, transform_indices = @transform_5, window_bounds = array<i64: 1, 96>}, {pipeline_mode = #tpu.pipeline_mode<synchronous>, transform_indices = @transform_6, window_bounds = array<i64: 32, 32>}, {pipeline_mode = #tpu.pipeline_mode<synchronous>, transform_indices = @transform_7, window_bounds = array<i64: 1, 32>}, {pipeline_mode = #tpu.pipeline_mode<synchronous>, transform_indices = @transform_8, window_bounds = array<i64: 32, 96>}, {pipeline_mode = #tpu.pipeline_mode<synchronous>, transform_indices = @transform_9, window_bounds = array<i64: 1, 96>}, {pipeline_mode = #tpu.pipeline_mode<synchronous>, transform_indices = @transform_10, window_bounds = array<i64: 32, 32>}, {pipeline_mode = #tpu.pipeline_mode<synchronous>, transform_indices = @transform_11, window_bounds = array<i64: 1, 32>}, {pipeline_mode = #tpu.pipeline_mode<synchronous>, transform_indices = @transform_12, window_bounds = array<i64: 32, 64>}, {pipeline_mode = #tpu.pipeline_mode<synchronous>, transform_indices = @transform_13, window_bounds = array<i64: 1, 64>}, {pipeline_mode = #tpu.pipeline_mode<synchronous>, transform_indices = @transform_14, window_bounds = array<i64: 64, 32>}, {pipeline_mode = #tpu.pipeline_mode<synchronous>, transform_indices = @transform_15, window_bounds = array<i64: 1, 32>}, {pipeline_mode = #tpu.pipeline_mode<synchronous>, transform_indices = @transform_16, window_bounds = array<i64: 1, 32>}, {pipeline_mode = #tpu.pipeline_mode<synchronous>, transform_indices = @transform_17, window_bounds = array<i64: 1, 32>}, {pipeline_mode = #tpu.pipeline_mode<synchronous>, transform_indices = @transform_18, window_bounds = array<i64: 1, 32>}, {pipeline_mode = #tpu.pipeline_mode<synchronous>, transform_indices = @transform_19, window_bounds = array<i64: 1, 32>}, {pipeline_mode = #tpu.pipeline_mode<synchronous>, transform_indices = @transform_20, window_bounds = array<i64: 1, 32>}, {pipeline_mode = #tpu.pipeline_mode<synchronous>, transform_indices = @transform_21, window_bounds = array<i64: 1, 32>}, {pipeline_mode = #tpu.pipeline_mode<synchronous>, transform_indices = @transform_22, window_bounds = array<i64: 2, 8, 32>}]} {
    %c0 = arith.constant 0 : index
    %c0_0 = arith.constant 0 : index
    %c0_1 = arith.constant 0 : index
    %0 = vector.load %arg1[%c0, %c0_0, %c0_1] : memref<2x8x32xf32, #tpu.memory_space<vmem>>, vector<2x8x32xf32>
    %1 = vector.shape_cast %0 : vector<2x8x32xf32> to vector<16x32xf32>
    %c0_2 = arith.constant 0 : index
    %c0_3 = arith.constant 0 : index
    %c0_4 = arith.constant 0 : index
    %2 = vector.load %arg2[%c0_2, %c0_3, %c0_4] : memref<2x8x32xf32, #tpu.memory_space<vmem>>, vector<2x8x32xf32>
    %3 = vector.shape_cast %2 : vector<2x8x32xf32> to vector<16x32xf32>
    %cst = arith.constant dense<0.000000e+00> : vector<16xf32>
    %4 = vector.multi_reduction <add>, %1, %cst [1] : vector<16x32xf32> to vector<16xf32>
    %5 = vector.shape_cast %4 : vector<16xf32> to vector<16x1xf32>
    %cst_5 = arith.constant 3.200000e+01 : f32
    %6 = vector.broadcast %cst_5 : f32 to vector<16x1xf32>
    %7 = arith.divf %5, %6 : vector<16x1xf32>
    %8 = vector.broadcast %7 : vector<16x1xf32> to vector<16x32xf32>
    %9 = arith.subf %1, %8 : vector<16x32xf32>
    %10 = arith.mulf %9, %9 : vector<16x32xf32>
    %cst_6 = arith.constant dense<0.000000e+00> : vector<16xf32>
    %11 = vector.multi_reduction <add>, %10, %cst_6 [1] : vector<16x32xf32> to vector<16xf32>
    %12 = vector.shape_cast %11 : vector<16xf32> to vector<16x1xf32>
    %cst_7 = arith.constant 3.200000e+01 : f32
    %13 = vector.broadcast %cst_7 : f32 to vector<16x1xf32>
    %14 = arith.divf %12, %13 : vector<16x1xf32>
    %c0_8 = arith.constant 0 : index
    %c0_9 = arith.constant 0 : index
    %15 = vector.load %arg17[%c0_8, %c0_9] : memref<1x32xf32, #tpu.memory_space<vmem>>, vector<1x32xf32>
    %16 = vector.broadcast %7 : vector<16x1xf32> to vector<16x32xf32>
    %17 = arith.subf %1, %16 : vector<16x32xf32>
    %18 = vector.broadcast %15 : vector<1x32xf32> to vector<16x32xf32>
    %19 = arith.mulf %18, %17 : vector<16x32xf32>
    %cst_10 = arith.constant 9.99999997E-7 : f32
    %20 = vector.broadcast %cst_10 : f32 to vector<16x1xf32>
    %21 = arith.addf %14, %20 : vector<16x1xf32>
    %22 = math.rsqrt %21 : vector<16x1xf32>
    %23 = vector.broadcast %22 : vector<16x1xf32> to vector<16x32xf32>
    %24 = arith.mulf %19, %23 : vector<16x32xf32>
    %c0_11 = arith.constant 0 : index
    %c0_12 = arith.constant 0 : index
    %25 = vector.load %arg18[%c0_11, %c0_12] : memref<1x32xf32, #tpu.memory_space<vmem>>, vector<1x32xf32>
    %26 = vector.broadcast %25 : vector<1x32xf32> to vector<16x32xf32>
    %27 = arith.addf %24, %26 : vector<16x32xf32>
    %c0_13 = arith.constant 0 : index
    %c0_14 = arith.constant 0 : index
    %28 = vector.load %arg5[%c0_13, %c0_14] : memref<32x96xf32, #tpu.memory_space<vmem>>, vector<32x96xf32>
    %cst_15 = arith.constant dense<0.000000e+00> : vector<16x96xf32>
    %29 = tpu.matmul %27, %28, %cst_15 {dimension_numbers = #tpu.dot_dimension_numbers<[1], [0], [0], [1], [0, 0, 1, 1], [], []>} : vector<16x32xf32>, vector<32x96xf32>, vector<16x96xf32> -> vector<16x96xf32>
    %c0_16 = arith.constant 0 : index
    %c0_17 = arith.constant 0 : index
    %30 = vector.load %arg6[%c0_16, %c0_17] : memref<1x96xf32, #tpu.memory_space<vmem>>, vector<1x96xf32>
    %31 = vector.broadcast %30 : vector<1x96xf32> to vector<16x96xf32>
    %32 = arith.addf %29, %31 : vector<16x96xf32>
    %33 = vector.extract_strided_slice %32 {offsets = [0, 0], sizes = [16, 32], strides = [1, 1]} : vector<16x96xf32> to vector<16x32xf32>
    %34 = vector.shape_cast %33 : vector<16x32xf32> to vector<2x8x32xf32>
    %35 = vector.extract_strided_slice %32 {offsets = [0, 32], sizes = [16, 32], strides = [1, 1]} : vector<16x96xf32> to vector<16x32xf32>
    %36 = vector.shape_cast %35 : vector<16x32xf32> to vector<2x8x32xf32>
    %37 = vector.extract_strided_slice %32 {offsets = [0, 64], sizes = [16, 32], strides = [1, 1]} : vector<16x96xf32> to vector<16x32xf32>
    %38 = vector.shape_cast %37 : vector<16x32xf32> to vector<2x8x32xf32>
    %c0_18 = arith.constant 0 : index
    %c0_19 = arith.constant 0 : index
    %c0_20 = arith.constant 0 : index
    %39 = vector.load %arg4[%c0_18, %c0_19, %c0_20] : memref<2x8x8xf32, #tpu.memory_space<vmem>>, vector<2x8x8xf32>
    %40 = vector.extract_strided_slice %34 {offsets = [0, 0, 0], sizes = [2, 8, 8], strides = [1, 1, 1]} : vector<2x8x32xf32> to vector<2x8x8xf32>
    %41 = vector.extract_strided_slice %36 {offsets = [0, 0, 0], sizes = [2, 8, 8], strides = [1, 1, 1]} : vector<2x8x32xf32> to vector<2x8x8xf32>
    %42 = vector.extract_strided_slice %38 {offsets = [0, 0, 0], sizes = [2, 8, 8], strides = [1, 1, 1]} : vector<2x8x32xf32> to vector<2x8x8xf32>
    "tpu.trace_start"() <{level = 10 : i32, message = "bqd,bkd->bqk"}> : () -> ()
    %cst_21 = arith.constant dense<0.000000e+00> : vector<2x8x8xf32>
    %43 = tpu.matmul %40, %41, %cst_21 {dimension_numbers = #tpu.dot_dimension_numbers<[2], [2], [1], [1], [0, 0, 0, 1, 1, 1], [0], [0]>} : vector<2x8x8xf32>, vector<2x8x8xf32>, vector<2x8x8xf32> -> vector<2x8x8xf32>
    %cst_22 = arith.constant 0.000000e+00 : f32
    "tpu.trace_stop"() : () -> ()
    %44 = vector.broadcast %cst_22 : f32 to vector<2x8x8xf32>
    %45 = arith.cmpf ogt, %39, %44 : vector<2x8x8xf32>
    %cst_23 = arith.constant -1.000000e+09 : f32
    %46 = vector.broadcast %cst_23 : f32 to vector<2x8x8xf32>
    %47 = arith.select %45, %43, %46 : vector<2x8x8xi1>, vector<2x8x8xf32>
    %cst_24 = arith.constant dense<0xFF800000> : vector<2x8xf32>
    %48 = vector.multi_reduction <maximumf>, %47, %cst_24 [2] : vector<2x8x8xf32> to vector<2x8xf32>
    %49 = vector.shape_cast %48 : vector<2x8xf32> to vector<2x8x1xf32>
    %50 = vector.broadcast %49 : vector<2x8x1xf32> to vector<2x8x8xf32>
    %51 = arith.subf %47, %50 : vector<2x8x8xf32>
    %52 = math.exp %51 : vector<2x8x8xf32>
    %cst_25 = arith.constant dense<0.000000e+00> : vector<2x8xf32>
    %53 = vector.multi_reduction <add>, %52, %cst_25 [2] : vector<2x8x8xf32> to vector<2x8xf32>
    %54 = vector.shape_cast %53 : vector<2x8xf32> to vector<2x8x1xf32>
    %55 = tpu.reciprocal %54 {approx = true} : vector<2x8x1xf32> -> vector<2x8x1xf32>
    %56 = vector.broadcast %55 : vector<2x8x1xf32> to vector<2x8x8xf32>
    %57 = arith.mulf %52, %56 : vector<2x8x8xf32>
    "tpu.trace_start"() <{level = 10 : i32, message = "bqk,bkd->bqd"}> : () -> ()
    %cst_26 = arith.constant dense<0.000000e+00> : vector<2x8x8xf32>
    %58 = tpu.matmul %57, %42, %cst_26 {dimension_numbers = #tpu.dot_dimension_numbers<[2], [1], [1], [2], [0, 0, 0, 1, 1, 2], [0], [0]>} : vector<2x8x8xf32>, vector<2x8x8xf32>, vector<2x8x8xf32> -> vector<2x8x8xf32>
    "tpu.trace_stop"() : () -> ()
    %59 = vector.extract_strided_slice %34 {offsets = [0, 0, 8], sizes = [2, 8, 8], strides = [1, 1, 1]} : vector<2x8x32xf32> to vector<2x8x8xf32>
    %60 = vector.extract_strided_slice %36 {offsets = [0, 0, 8], sizes = [2, 8, 8], strides = [1, 1, 1]} : vector<2x8x32xf32> to vector<2x8x8xf32>
    %61 = vector.extract_strided_slice %38 {offsets = [0, 0, 8], sizes = [2, 8, 8], strides = [1, 1, 1]} : vector<2x8x32xf32> to vector<2x8x8xf32>
    "tpu.trace_start"() <{level = 10 : i32, message = "bqd,bkd->bqk"}> : () -> ()
    %cst_27 = arith.constant dense<0.000000e+00> : vector<2x8x8xf32>
    %62 = tpu.matmul %59, %60, %cst_27 {dimension_numbers = #tpu.dot_dimension_numbers<[2], [2], [1], [1], [0, 0, 0, 1, 1, 1], [0], [0]>} : vector<2x8x8xf32>, vector<2x8x8xf32>, vector<2x8x8xf32> -> vector<2x8x8xf32>
    %cst_28 = arith.constant 0.000000e+00 : f32
    "tpu.trace_stop"() : () -> ()
    %63 = vector.broadcast %cst_28 : f32 to vector<2x8x8xf32>
    %64 = arith.cmpf ogt, %39, %63 : vector<2x8x8xf32>
    %cst_29 = arith.constant -1.000000e+09 : f32
    %65 = vector.broadcast %cst_29 : f32 to vector<2x8x8xf32>
    %66 = arith.select %64, %62, %65 : vector<2x8x8xi1>, vector<2x8x8xf32>
    %cst_30 = arith.constant dense<0xFF800000> : vector<2x8xf32>
    %67 = vector.multi_reduction <maximumf>, %66, %cst_30 [2] : vector<2x8x8xf32> to vector<2x8xf32>
    %68 = vector.shape_cast %67 : vector<2x8xf32> to vector<2x8x1xf32>
    %69 = vector.broadcast %68 : vector<2x8x1xf32> to vector<2x8x8xf32>
    %70 = arith.subf %66, %69 : vector<2x8x8xf32>
    %71 = math.exp %70 : vector<2x8x8xf32>
    %cst_31 = arith.constant dense<0.000000e+00> : vector<2x8xf32>
    %72 = vector.multi_reduction <add>, %71, %cst_31 [2] : vector<2x8x8xf32> to vector<2x8xf32>
    %73 = vector.shape_cast %72 : vector<2x8xf32> to vector<2x8x1xf32>
    %74 = tpu.reciprocal %73 {approx = true} : vector<2x8x1xf32> -> vector<2x8x1xf32>
    %75 = vector.broadcast %74 : vector<2x8x1xf32> to vector<2x8x8xf32>
    %76 = arith.mulf %71, %75 : vector<2x8x8xf32>
    "tpu.trace_start"() <{level = 10 : i32, message = "bqk,bkd->bqd"}> : () -> ()
    %cst_32 = arith.constant dense<0.000000e+00> : vector<2x8x8xf32>
    %77 = tpu.matmul %76, %61, %cst_32 {dimension_numbers = #tpu.dot_dimension_numbers<[2], [1], [1], [2], [0, 0, 0, 1, 1, 2], [0], [0]>} : vector<2x8x8xf32>, vector<2x8x8xf32>, vector<2x8x8xf32> -> vector<2x8x8xf32>
    "tpu.trace_stop"() : () -> ()
    %78 = vector.extract_strided_slice %34 {offsets = [0, 0, 16], sizes = [2, 8, 8], strides = [1, 1, 1]} : vector<2x8x32xf32> to vector<2x8x8xf32>
    %79 = vector.extract_strided_slice %36 {offsets = [0, 0, 16], sizes = [2, 8, 8], strides = [1, 1, 1]} : vector<2x8x32xf32> to vector<2x8x8xf32>
    %80 = vector.extract_strided_slice %38 {offsets = [0, 0, 16], sizes = [2, 8, 8], strides = [1, 1, 1]} : vector<2x8x32xf32> to vector<2x8x8xf32>
    "tpu.trace_start"() <{level = 10 : i32, message = "bqd,bkd->bqk"}> : () -> ()
    %cst_33 = arith.constant dense<0.000000e+00> : vector<2x8x8xf32>
    %81 = tpu.matmul %78, %79, %cst_33 {dimension_numbers = #tpu.dot_dimension_numbers<[2], [2], [1], [1], [0, 0, 0, 1, 1, 1], [0], [0]>} : vector<2x8x8xf32>, vector<2x8x8xf32>, vector<2x8x8xf32> -> vector<2x8x8xf32>
    %cst_34 = arith.constant 0.000000e+00 : f32
    "tpu.trace_stop"() : () -> ()
    %82 = vector.broadcast %cst_34 : f32 to vector<2x8x8xf32>
    %83 = arith.cmpf ogt, %39, %82 : vector<2x8x8xf32>
    %cst_35 = arith.constant -1.000000e+09 : f32
    %84 = vector.broadcast %cst_35 : f32 to vector<2x8x8xf32>
    %85 = arith.select %83, %81, %84 : vector<2x8x8xi1>, vector<2x8x8xf32>
    %cst_36 = arith.constant dense<0xFF800000> : vector<2x8xf32>
    %86 = vector.multi_reduction <maximumf>, %85, %cst_36 [2] : vector<2x8x8xf32> to vector<2x8xf32>
    %87 = vector.shape_cast %86 : vector<2x8xf32> to vector<2x8x1xf32>
    %88 = vector.broadcast %87 : vector<2x8x1xf32> to vector<2x8x8xf32>
    %89 = arith.subf %85, %88 : vector<2x8x8xf32>
    %90 = math.exp %89 : vector<2x8x8xf32>
    %cst_37 = arith.constant dense<0.000000e+00> : vector<2x8xf32>
    %91 = vector.multi_reduction <add>, %90, %cst_37 [2] : vector<2x8x8xf32> to vector<2x8xf32>
    %92 = vector.shape_cast %91 : vector<2x8xf32> to vector<2x8x1xf32>
    %93 = tpu.reciprocal %92 {approx = true} : vector<2x8x1xf32> -> vector<2x8x1xf32>
    %94 = vector.broadcast %93 : vector<2x8x1xf32> to vector<2x8x8xf32>
    %95 = arith.mulf %90, %94 : vector<2x8x8xf32>
    "tpu.trace_start"() <{level = 10 : i32, message = "bqk,bkd->bqd"}> : () -> ()
    %cst_38 = arith.constant dense<0.000000e+00> : vector<2x8x8xf32>
    %96 = tpu.matmul %95, %80, %cst_38 {dimension_numbers = #tpu.dot_dimension_numbers<[2], [1], [1], [2], [0, 0, 0, 1, 1, 2], [0], [0]>} : vector<2x8x8xf32>, vector<2x8x8xf32>, vector<2x8x8xf32> -> vector<2x8x8xf32>
    "tpu.trace_stop"() : () -> ()
    %97 = vector.extract_strided_slice %34 {offsets = [0, 0, 24], sizes = [2, 8, 8], strides = [1, 1, 1]} : vector<2x8x32xf32> to vector<2x8x8xf32>
    %98 = vector.extract_strided_slice %36 {offsets = [0, 0, 24], sizes = [2, 8, 8], strides = [1, 1, 1]} : vector<2x8x32xf32> to vector<2x8x8xf32>
    %99 = vector.extract_strided_slice %38 {offsets = [0, 0, 24], sizes = [2, 8, 8], strides = [1, 1, 1]} : vector<2x8x32xf32> to vector<2x8x8xf32>
    "tpu.trace_start"() <{level = 10 : i32, message = "bqd,bkd->bqk"}> : () -> ()
    %cst_39 = arith.constant dense<0.000000e+00> : vector<2x8x8xf32>
    %100 = tpu.matmul %97, %98, %cst_39 {dimension_numbers = #tpu.dot_dimension_numbers<[2], [2], [1], [1], [0, 0, 0, 1, 1, 1], [0], [0]>} : vector<2x8x8xf32>, vector<2x8x8xf32>, vector<2x8x8xf32> -> vector<2x8x8xf32>
    %cst_40 = arith.constant 0.000000e+00 : f32
    "tpu.trace_stop"() : () -> ()
    %101 = vector.broadcast %cst_40 : f32 to vector<2x8x8xf32>
    %102 = arith.cmpf ogt, %39, %101 : vector<2x8x8xf32>
    %cst_41 = arith.constant -1.000000e+09 : f32
    %103 = vector.broadcast %cst_41 : f32 to vector<2x8x8xf32>
    %104 = arith.select %102, %100, %103 : vector<2x8x8xi1>, vector<2x8x8xf32>
    %cst_42 = arith.constant dense<0xFF800000> : vector<2x8xf32>
    %105 = vector.multi_reduction <maximumf>, %104, %cst_42 [2] : vector<2x8x8xf32> to vector<2x8xf32>
    %106 = vector.shape_cast %105 : vector<2x8xf32> to vector<2x8x1xf32>
    %107 = vector.broadcast %106 : vector<2x8x1xf32> to vector<2x8x8xf32>
    %108 = arith.subf %104, %107 : vector<2x8x8xf32>
    %109 = math.exp %108 : vector<2x8x8xf32>
    %cst_43 = arith.constant dense<0.000000e+00> : vector<2x8xf32>
    %110 = vector.multi_reduction <add>, %109, %cst_43 [2] : vector<2x8x8xf32> to vector<2x8xf32>
    %111 = vector.shape_cast %110 : vector<2x8xf32> to vector<2x8x1xf32>
    %112 = tpu.reciprocal %111 {approx = true} : vector<2x8x1xf32> -> vector<2x8x1xf32>
    %113 = vector.broadcast %112 : vector<2x8x1xf32> to vector<2x8x8xf32>
    %114 = arith.mulf %109, %113 : vector<2x8x8xf32>
    "tpu.trace_start"() <{level = 10 : i32, message = "bqk,bkd->bqd"}> : () -> ()
    %cst_44 = arith.constant dense<0.000000e+00> : vector<2x8x8xf32>
    %115 = tpu.matmul %114, %99, %cst_44 {dimension_numbers = #tpu.dot_dimension_numbers<[2], [1], [1], [2], [0, 0, 0, 1, 1, 2], [0], [0]>} : vector<2x8x8xf32>, vector<2x8x8xf32>, vector<2x8x8xf32> -> vector<2x8x8xf32>
    "tpu.trace_stop"() : () -> ()
    %116 = tpu.concatenate %58, %77, %96, %115 in 2 : vector<2x8x8xf32>, vector<2x8x8xf32>, vector<2x8x8xf32>, vector<2x8x8xf32> -> vector<2x8x32xf32>
    %117 = vector.shape_cast %116 : vector<2x8x32xf32> to vector<16x32xf32>
    %c0_45 = arith.constant 0 : index
    %c0_46 = arith.constant 0 : index
    %118 = vector.load %arg7[%c0_45, %c0_46] : memref<32x32xf32, #tpu.memory_space<vmem>>, vector<32x32xf32>
    %cst_47 = arith.constant dense<0.000000e+00> : vector<16x32xf32>
    %119 = tpu.matmul %117, %118, %cst_47 {dimension_numbers = #tpu.dot_dimension_numbers<[1], [0], [0], [1], [0, 0, 1, 1], [], []>} : vector<16x32xf32>, vector<32x32xf32>, vector<16x32xf32> -> vector<16x32xf32>
    %120 = arith.addf %1, %119 : vector<16x32xf32>
    %c0_48 = arith.constant 0 : index
    %c0_49 = arith.constant 0 : index
    %121 = vector.load %arg8[%c0_48, %c0_49] : memref<1x32xf32, #tpu.memory_space<vmem>>, vector<1x32xf32>
    %122 = vector.broadcast %121 : vector<1x32xf32> to vector<16x32xf32>
    %123 = arith.addf %120, %122 : vector<16x32xf32>
    %cst_50 = arith.constant dense<0.000000e+00> : vector<16xf32>
    %124 = vector.multi_reduction <add>, %123, %cst_50 [1] : vector<16x32xf32> to vector<16xf32>
    %125 = vector.shape_cast %124 : vector<16xf32> to vector<16x1xf32>
    %cst_51 = arith.constant 3.200000e+01 : f32
    %126 = vector.broadcast %cst_51 : f32 to vector<16x1xf32>
    %127 = arith.divf %125, %126 : vector<16x1xf32>
    %128 = vector.broadcast %127 : vector<16x1xf32> to vector<16x32xf32>
    %129 = arith.subf %123, %128 : vector<16x32xf32>
    %130 = arith.mulf %129, %129 : vector<16x32xf32>
    %cst_52 = arith.constant dense<0.000000e+00> : vector<16xf32>
    %131 = vector.multi_reduction <add>, %130, %cst_52 [1] : vector<16x32xf32> to vector<16xf32>
    %132 = vector.shape_cast %131 : vector<16xf32> to vector<16x1xf32>
    %cst_53 = arith.constant 3.200000e+01 : f32
    %133 = vector.broadcast %cst_53 : f32 to vector<16x1xf32>
    %134 = arith.divf %132, %133 : vector<16x1xf32>
    %c0_54 = arith.constant 0 : index
    %c0_55 = arith.constant 0 : index
    %135 = vector.load %arg19[%c0_54, %c0_55] : memref<1x32xf32, #tpu.memory_space<vmem>>, vector<1x32xf32>
    %136 = vector.broadcast %127 : vector<16x1xf32> to vector<16x32xf32>
    %137 = arith.subf %123, %136 : vector<16x32xf32>
    %138 = vector.broadcast %135 : vector<1x32xf32> to vector<16x32xf32>
    %139 = arith.mulf %138, %137 : vector<16x32xf32>
    %cst_56 = arith.constant 9.99999997E-7 : f32
    %140 = vector.broadcast %cst_56 : f32 to vector<16x1xf32>
    %141 = arith.addf %134, %140 : vector<16x1xf32>
    %142 = math.rsqrt %141 : vector<16x1xf32>
    %143 = vector.broadcast %142 : vector<16x1xf32> to vector<16x32xf32>
    %144 = arith.mulf %139, %143 : vector<16x32xf32>
    %c0_57 = arith.constant 0 : index
    %c0_58 = arith.constant 0 : index
    %145 = vector.load %arg20[%c0_57, %c0_58] : memref<1x32xf32, #tpu.memory_space<vmem>>, vector<1x32xf32>
    %146 = vector.broadcast %145 : vector<1x32xf32> to vector<16x32xf32>
    %147 = arith.addf %144, %146 : vector<16x32xf32>
    %c0_59 = arith.constant 0 : index
    %c0_60 = arith.constant 0 : index
    %148 = vector.load %arg9[%c0_59, %c0_60] : memref<32x96xf32, #tpu.memory_space<vmem>>, vector<32x32xf32>
    %cst_61 = arith.constant dense<0.000000e+00> : vector<16x32xf32>
    %149 = tpu.matmul %147, %148, %cst_61 {dimension_numbers = #tpu.dot_dimension_numbers<[1], [0], [0], [1], [0, 0, 1, 1], [], []>} : vector<16x32xf32>, vector<32x32xf32>, vector<16x32xf32> -> vector<16x32xf32>
    %c0_62 = arith.constant 0 : index
    %c0_63 = arith.constant 0 : index
    %150 = vector.load %arg10[%c0_62, %c0_63] : memref<1x96xf32, #tpu.memory_space<vmem>>, vector<1x32xf32>
    %151 = vector.broadcast %150 : vector<1x32xf32> to vector<16x32xf32>
    %152 = arith.addf %149, %151 : vector<16x32xf32>
    %c0_64 = arith.constant 0 : index
    %c32 = arith.constant 32 : index
    %153 = vector.load %arg9[%c0_64, %c32] : memref<32x96xf32, #tpu.memory_space<vmem>>, vector<32x64xf32>
    %cst_65 = arith.constant dense<0.000000e+00> : vector<16x64xf32>
    %154 = tpu.matmul %3, %153, %cst_65 {dimension_numbers = #tpu.dot_dimension_numbers<[1], [0], [0], [1], [0, 0, 1, 1], [], []>} : vector<16x32xf32>, vector<32x64xf32>, vector<16x64xf32> -> vector<16x64xf32>
    %c0_66 = arith.constant 0 : index
    %c32_67 = arith.constant 32 : index
    %155 = vector.load %arg10[%c0_66, %c32_67] : memref<1x96xf32, #tpu.memory_space<vmem>>, vector<1x64xf32>
    %156 = vector.broadcast %155 : vector<1x64xf32> to vector<16x64xf32>
    %157 = arith.addf %154, %156 : vector<16x64xf32>
    %158 = vector.shape_cast %152 : vector<16x32xf32> to vector<2x8x32xf32>
    %159 = vector.extract_strided_slice %157 {offsets = [0, 0], sizes = [16, 32], strides = [1, 1]} : vector<16x64xf32> to vector<16x32xf32>
    %160 = vector.shape_cast %159 : vector<16x32xf32> to vector<2x8x32xf32>
    %161 = vector.extract_strided_slice %157 {offsets = [0, 32], sizes = [16, 32], strides = [1, 1]} : vector<16x64xf32> to vector<16x32xf32>
    %162 = vector.shape_cast %161 : vector<16x32xf32> to vector<2x8x32xf32>
    %c0_68 = arith.constant 0 : index
    %c0_69 = arith.constant 0 : index
    %c0_70 = arith.constant 0 : index
    %163 = vector.load %arg3[%c0_68, %c0_69, %c0_70] : memref<2x8x8xf32, #tpu.memory_space<vmem>>, vector<2x8x8xf32>
    %164 = vector.extract_strided_slice %158 {offsets = [0, 0, 0], sizes = [2, 8, 8], strides = [1, 1, 1]} : vector<2x8x32xf32> to vector<2x8x8xf32>
    %165 = vector.extract_strided_slice %160 {offsets = [0, 0, 0], sizes = [2, 8, 8], strides = [1, 1, 1]} : vector<2x8x32xf32> to vector<2x8x8xf32>
    %166 = vector.extract_strided_slice %162 {offsets = [0, 0, 0], sizes = [2, 8, 8], strides = [1, 1, 1]} : vector<2x8x32xf32> to vector<2x8x8xf32>
    "tpu.trace_start"() <{level = 10 : i32, message = "bqd,bkd->bqk"}> : () -> ()
    %cst_71 = arith.constant dense<0.000000e+00> : vector<2x8x8xf32>
    %167 = tpu.matmul %164, %165, %cst_71 {dimension_numbers = #tpu.dot_dimension_numbers<[2], [2], [1], [1], [0, 0, 0, 1, 1, 1], [0], [0]>} : vector<2x8x8xf32>, vector<2x8x8xf32>, vector<2x8x8xf32> -> vector<2x8x8xf32>
    %cst_72 = arith.constant 0.000000e+00 : f32
    "tpu.trace_stop"() : () -> ()
    %168 = vector.broadcast %cst_72 : f32 to vector<2x8x8xf32>
    %169 = arith.cmpf ogt, %163, %168 : vector<2x8x8xf32>
    %cst_73 = arith.constant -1.000000e+09 : f32
    %170 = vector.broadcast %cst_73 : f32 to vector<2x8x8xf32>
    %171 = arith.select %169, %167, %170 : vector<2x8x8xi1>, vector<2x8x8xf32>
    %cst_74 = arith.constant dense<0xFF800000> : vector<2x8xf32>
    %172 = vector.multi_reduction <maximumf>, %171, %cst_74 [2] : vector<2x8x8xf32> to vector<2x8xf32>
    %173 = vector.shape_cast %172 : vector<2x8xf32> to vector<2x8x1xf32>
    %174 = vector.broadcast %173 : vector<2x8x1xf32> to vector<2x8x8xf32>
    %175 = arith.subf %171, %174 : vector<2x8x8xf32>
    %176 = math.exp %175 : vector<2x8x8xf32>
    %cst_75 = arith.constant dense<0.000000e+00> : vector<2x8xf32>
    %177 = vector.multi_reduction <add>, %176, %cst_75 [2] : vector<2x8x8xf32> to vector<2x8xf32>
    %178 = vector.shape_cast %177 : vector<2x8xf32> to vector<2x8x1xf32>
    %179 = tpu.reciprocal %178 {approx = true} : vector<2x8x1xf32> -> vector<2x8x1xf32>
    %180 = vector.broadcast %179 : vector<2x8x1xf32> to vector<2x8x8xf32>
    %181 = arith.mulf %176, %180 : vector<2x8x8xf32>
    "tpu.trace_start"() <{level = 10 : i32, message = "bqk,bkd->bqd"}> : () -> ()
    %cst_76 = arith.constant dense<0.000000e+00> : vector<2x8x8xf32>
    %182 = tpu.matmul %181, %166, %cst_76 {dimension_numbers = #tpu.dot_dimension_numbers<[2], [1], [1], [2], [0, 0, 0, 1, 1, 2], [0], [0]>} : vector<2x8x8xf32>, vector<2x8x8xf32>, vector<2x8x8xf32> -> vector<2x8x8xf32>
    "tpu.trace_stop"() : () -> ()
    %183 = vector.extract_strided_slice %158 {offsets = [0, 0, 8], sizes = [2, 8, 8], strides = [1, 1, 1]} : vector<2x8x32xf32> to vector<2x8x8xf32>
    %184 = vector.extract_strided_slice %160 {offsets = [0, 0, 8], sizes = [2, 8, 8], strides = [1, 1, 1]} : vector<2x8x32xf32> to vector<2x8x8xf32>
    %185 = vector.extract_strided_slice %162 {offsets = [0, 0, 8], sizes = [2, 8, 8], strides = [1, 1, 1]} : vector<2x8x32xf32> to vector<2x8x8xf32>
    "tpu.trace_start"() <{level = 10 : i32, message = "bqd,bkd->bqk"}> : () -> ()
    %cst_77 = arith.constant dense<0.000000e+00> : vector<2x8x8xf32>
    %186 = tpu.matmul %183, %184, %cst_77 {dimension_numbers = #tpu.dot_dimension_numbers<[2], [2], [1], [1], [0, 0, 0, 1, 1, 1], [0], [0]>} : vector<2x8x8xf32>, vector<2x8x8xf32>, vector<2x8x8xf32> -> vector<2x8x8xf32>
    %cst_78 = arith.constant 0.000000e+00 : f32
    "tpu.trace_stop"() : () -> ()
    %187 = vector.broadcast %cst_78 : f32 to vector<2x8x8xf32>
    %188 = arith.cmpf ogt, %163, %187 : vector<2x8x8xf32>
    %cst_79 = arith.constant -1.000000e+09 : f32
    %189 = vector.broadcast %cst_79 : f32 to vector<2x8x8xf32>
    %190 = arith.select %188, %186, %189 : vector<2x8x8xi1>, vector<2x8x8xf32>
    %cst_80 = arith.constant dense<0xFF800000> : vector<2x8xf32>
    %191 = vector.multi_reduction <maximumf>, %190, %cst_80 [2] : vector<2x8x8xf32> to vector<2x8xf32>
    %192 = vector.shape_cast %191 : vector<2x8xf32> to vector<2x8x1xf32>
    %193 = vector.broadcast %192 : vector<2x8x1xf32> to vector<2x8x8xf32>
    %194 = arith.subf %190, %193 : vector<2x8x8xf32>
    %195 = math.exp %194 : vector<2x8x8xf32>
    %cst_81 = arith.constant dense<0.000000e+00> : vector<2x8xf32>
    %196 = vector.multi_reduction <add>, %195, %cst_81 [2] : vector<2x8x8xf32> to vector<2x8xf32>
    %197 = vector.shape_cast %196 : vector<2x8xf32> to vector<2x8x1xf32>
    %198 = tpu.reciprocal %197 {approx = true} : vector<2x8x1xf32> -> vector<2x8x1xf32>
    %199 = vector.broadcast %198 : vector<2x8x1xf32> to vector<2x8x8xf32>
    %200 = arith.mulf %195, %199 : vector<2x8x8xf32>
    "tpu.trace_start"() <{level = 10 : i32, message = "bqk,bkd->bqd"}> : () -> ()
    %cst_82 = arith.constant dense<0.000000e+00> : vector<2x8x8xf32>
    %201 = tpu.matmul %200, %185, %cst_82 {dimension_numbers = #tpu.dot_dimension_numbers<[2], [1], [1], [2], [0, 0, 0, 1, 1, 2], [0], [0]>} : vector<2x8x8xf32>, vector<2x8x8xf32>, vector<2x8x8xf32> -> vector<2x8x8xf32>
    "tpu.trace_stop"() : () -> ()
    %202 = vector.extract_strided_slice %158 {offsets = [0, 0, 16], sizes = [2, 8, 8], strides = [1, 1, 1]} : vector<2x8x32xf32> to vector<2x8x8xf32>
    %203 = vector.extract_strided_slice %160 {offsets = [0, 0, 16], sizes = [2, 8, 8], strides = [1, 1, 1]} : vector<2x8x32xf32> to vector<2x8x8xf32>
    %204 = vector.extract_strided_slice %162 {offsets = [0, 0, 16], sizes = [2, 8, 8], strides = [1, 1, 1]} : vector<2x8x32xf32> to vector<2x8x8xf32>
    "tpu.trace_start"() <{level = 10 : i32, message = "bqd,bkd->bqk"}> : () -> ()
    %cst_83 = arith.constant dense<0.000000e+00> : vector<2x8x8xf32>
    %205 = tpu.matmul %202, %203, %cst_83 {dimension_numbers = #tpu.dot_dimension_numbers<[2], [2], [1], [1], [0, 0, 0, 1, 1, 1], [0], [0]>} : vector<2x8x8xf32>, vector<2x8x8xf32>, vector<2x8x8xf32> -> vector<2x8x8xf32>
    %cst_84 = arith.constant 0.000000e+00 : f32
    "tpu.trace_stop"() : () -> ()
    %206 = vector.broadcast %cst_84 : f32 to vector<2x8x8xf32>
    %207 = arith.cmpf ogt, %163, %206 : vector<2x8x8xf32>
    %cst_85 = arith.constant -1.000000e+09 : f32
    %208 = vector.broadcast %cst_85 : f32 to vector<2x8x8xf32>
    %209 = arith.select %207, %205, %208 : vector<2x8x8xi1>, vector<2x8x8xf32>
    %cst_86 = arith.constant dense<0xFF800000> : vector<2x8xf32>
    %210 = vector.multi_reduction <maximumf>, %209, %cst_86 [2] : vector<2x8x8xf32> to vector<2x8xf32>
    %211 = vector.shape_cast %210 : vector<2x8xf32> to vector<2x8x1xf32>
    %212 = vector.broadcast %211 : vector<2x8x1xf32> to vector<2x8x8xf32>
    %213 = arith.subf %209, %212 : vector<2x8x8xf32>
    %214 = math.exp %213 : vector<2x8x8xf32>
    %cst_87 = arith.constant dense<0.000000e+00> : vector<2x8xf32>
    %215 = vector.multi_reduction <add>, %214, %cst_87 [2] : vector<2x8x8xf32> to vector<2x8xf32>
    %216 = vector.shape_cast %215 : vector<2x8xf32> to vector<2x8x1xf32>
    %217 = tpu.reciprocal %216 {approx = true} : vector<2x8x1xf32> -> vector<2x8x1xf32>
    %218 = vector.broadcast %217 : vector<2x8x1xf32> to vector<2x8x8xf32>
    %219 = arith.mulf %214, %218 : vector<2x8x8xf32>
    "tpu.trace_start"() <{level = 10 : i32, message = "bqk,bkd->bqd"}> : () -> ()
    %cst_88 = arith.constant dense<0.000000e+00> : vector<2x8x8xf32>
    %220 = tpu.matmul %219, %204, %cst_88 {dimension_numbers = #tpu.dot_dimension_numbers<[2], [1], [1], [2], [0, 0, 0, 1, 1, 2], [0], [0]>} : vector<2x8x8xf32>, vector<2x8x8xf32>, vector<2x8x8xf32> -> vector<2x8x8xf32>
    "tpu.trace_stop"() : () -> ()
    %221 = vector.extract_strided_slice %158 {offsets = [0, 0, 24], sizes = [2, 8, 8], strides = [1, 1, 1]} : vector<2x8x32xf32> to vector<2x8x8xf32>
    %222 = vector.extract_strided_slice %160 {offsets = [0, 0, 24], sizes = [2, 8, 8], strides = [1, 1, 1]} : vector<2x8x32xf32> to vector<2x8x8xf32>
    %223 = vector.extract_strided_slice %162 {offsets = [0, 0, 24], sizes = [2, 8, 8], strides = [1, 1, 1]} : vector<2x8x32xf32> to vector<2x8x8xf32>
    "tpu.trace_start"() <{level = 10 : i32, message = "bqd,bkd->bqk"}> : () -> ()
    %cst_89 = arith.constant dense<0.000000e+00> : vector<2x8x8xf32>
    %224 = tpu.matmul %221, %222, %cst_89 {dimension_numbers = #tpu.dot_dimension_numbers<[2], [2], [1], [1], [0, 0, 0, 1, 1, 1], [0], [0]>} : vector<2x8x8xf32>, vector<2x8x8xf32>, vector<2x8x8xf32> -> vector<2x8x8xf32>
    %cst_90 = arith.constant 0.000000e+00 : f32
    "tpu.trace_stop"() : () -> ()
    %225 = vector.broadcast %cst_90 : f32 to vector<2x8x8xf32>
    %226 = arith.cmpf ogt, %163, %225 : vector<2x8x8xf32>
    %cst_91 = arith.constant -1.000000e+09 : f32
    %227 = vector.broadcast %cst_91 : f32 to vector<2x8x8xf32>
    %228 = arith.select %226, %224, %227 : vector<2x8x8xi1>, vector<2x8x8xf32>
    %cst_92 = arith.constant dense<0xFF800000> : vector<2x8xf32>
    %229 = vector.multi_reduction <maximumf>, %228, %cst_92 [2] : vector<2x8x8xf32> to vector<2x8xf32>
    %230 = vector.shape_cast %229 : vector<2x8xf32> to vector<2x8x1xf32>
    %231 = vector.broadcast %230 : vector<2x8x1xf32> to vector<2x8x8xf32>
    %232 = arith.subf %228, %231 : vector<2x8x8xf32>
    %233 = math.exp %232 : vector<2x8x8xf32>
    %cst_93 = arith.constant dense<0.000000e+00> : vector<2x8xf32>
    %234 = vector.multi_reduction <add>, %233, %cst_93 [2] : vector<2x8x8xf32> to vector<2x8xf32>
    %235 = vector.shape_cast %234 : vector<2x8xf32> to vector<2x8x1xf32>
    %236 = tpu.reciprocal %235 {approx = true} : vector<2x8x1xf32> -> vector<2x8x1xf32>
    %237 = vector.broadcast %236 : vector<2x8x1xf32> to vector<2x8x8xf32>
    %238 = arith.mulf %233, %237 : vector<2x8x8xf32>
    "tpu.trace_start"() <{level = 10 : i32, message = "bqk,bkd->bqd"}> : () -> ()
    %cst_94 = arith.constant dense<0.000000e+00> : vector<2x8x8xf32>
    %239 = tpu.matmul %238, %223, %cst_94 {dimension_numbers = #tpu.dot_dimension_numbers<[2], [1], [1], [2], [0, 0, 0, 1, 1, 2], [0], [0]>} : vector<2x8x8xf32>, vector<2x8x8xf32>, vector<2x8x8xf32> -> vector<2x8x8xf32>
    "tpu.trace_stop"() : () -> ()
    %240 = tpu.concatenate %182, %201, %220, %239 in 2 : vector<2x8x8xf32>, vector<2x8x8xf32>, vector<2x8x8xf32>, vector<2x8x8xf32> -> vector<2x8x32xf32>
    %241 = vector.shape_cast %240 : vector<2x8x32xf32> to vector<16x32xf32>
    %c0_95 = arith.constant 0 : index
    %c0_96 = arith.constant 0 : index
    %242 = vector.load %arg11[%c0_95, %c0_96] : memref<32x32xf32, #tpu.memory_space<vmem>>, vector<32x32xf32>
    %cst_97 = arith.constant dense<0.000000e+00> : vector<16x32xf32>
    %243 = tpu.matmul %241, %242, %cst_97 {dimension_numbers = #tpu.dot_dimension_numbers<[1], [0], [0], [1], [0, 0, 1, 1], [], []>} : vector<16x32xf32>, vector<32x32xf32>, vector<16x32xf32> -> vector<16x32xf32>
    %244 = arith.addf %123, %243 : vector<16x32xf32>
    %c0_98 = arith.constant 0 : index
    %c0_99 = arith.constant 0 : index
    %245 = vector.load %arg12[%c0_98, %c0_99] : memref<1x32xf32, #tpu.memory_space<vmem>>, vector<1x32xf32>
    %246 = vector.broadcast %245 : vector<1x32xf32> to vector<16x32xf32>
    %247 = arith.addf %244, %246 : vector<16x32xf32>
    %cst_100 = arith.constant dense<0.000000e+00> : vector<16xf32>
    %248 = vector.multi_reduction <add>, %247, %cst_100 [1] : vector<16x32xf32> to vector<16xf32>
    %249 = vector.shape_cast %248 : vector<16xf32> to vector<16x1xf32>
    %cst_101 = arith.constant 3.200000e+01 : f32
    %250 = vector.broadcast %cst_101 : f32 to vector<16x1xf32>
    %251 = arith.divf %249, %250 : vector<16x1xf32>
    %252 = vector.broadcast %251 : vector<16x1xf32> to vector<16x32xf32>
    %253 = arith.subf %247, %252 : vector<16x32xf32>
    %254 = arith.mulf %253, %253 : vector<16x32xf32>
    %cst_102 = arith.constant dense<0.000000e+00> : vector<16xf32>
    %255 = vector.multi_reduction <add>, %254, %cst_102 [1] : vector<16x32xf32> to vector<16xf32>
    %256 = vector.shape_cast %255 : vector<16xf32> to vector<16x1xf32>
    %cst_103 = arith.constant 3.200000e+01 : f32
    %257 = vector.broadcast %cst_103 : f32 to vector<16x1xf32>
    %258 = arith.divf %256, %257 : vector<16x1xf32>
    %c0_104 = arith.constant 0 : index
    %c0_105 = arith.constant 0 : index
    %259 = vector.load %arg21[%c0_104, %c0_105] : memref<1x32xf32, #tpu.memory_space<vmem>>, vector<1x32xf32>
    %260 = vector.broadcast %251 : vector<16x1xf32> to vector<16x32xf32>
    %261 = arith.subf %247, %260 : vector<16x32xf32>
    %262 = vector.broadcast %259 : vector<1x32xf32> to vector<16x32xf32>
    %263 = arith.mulf %262, %261 : vector<16x32xf32>
    %cst_106 = arith.constant 9.99999997E-7 : f32
    %264 = vector.broadcast %cst_106 : f32 to vector<16x1xf32>
    %265 = arith.addf %258, %264 : vector<16x1xf32>
    %266 = math.rsqrt %265 : vector<16x1xf32>
    %267 = vector.broadcast %266 : vector<16x1xf32> to vector<16x32xf32>
    %268 = arith.mulf %263, %267 : vector<16x32xf32>
    %c0_107 = arith.constant 0 : index
    %c0_108 = arith.constant 0 : index
    %269 = vector.load %arg22[%c0_107, %c0_108] : memref<1x32xf32, #tpu.memory_space<vmem>>, vector<1x32xf32>
    %270 = vector.broadcast %269 : vector<1x32xf32> to vector<16x32xf32>
    %271 = arith.addf %268, %270 : vector<16x32xf32>
    %c0_109 = arith.constant 0 : index
    %c0_110 = arith.constant 0 : index
    %272 = vector.load %arg13[%c0_109, %c0_110] : memref<32x64xf32, #tpu.memory_space<vmem>>, vector<32x64xf32>
    %cst_111 = arith.constant dense<0.000000e+00> : vector<16x64xf32>
    %273 = tpu.matmul %271, %272, %cst_111 {dimension_numbers = #tpu.dot_dimension_numbers<[1], [0], [0], [1], [0, 0, 1, 1], [], []>} : vector<16x32xf32>, vector<32x64xf32>, vector<16x64xf32> -> vector<16x64xf32>
    %c0_112 = arith.constant 0 : index
    %c0_113 = arith.constant 0 : index
    %274 = vector.load %arg14[%c0_112, %c0_113] : memref<1x64xf32, #tpu.memory_space<vmem>>, vector<1x64xf32>
    %275 = vector.broadcast %274 : vector<1x64xf32> to vector<16x64xf32>
    %276 = arith.addf %273, %275 : vector<16x64xf32>
    %cst_114 = arith.constant 0.000000e+00 : f32
    %277 = vector.broadcast %cst_114 : f32 to vector<16x64xf32>
    %278 = arith.maximumf %276, %277 : vector<16x64xf32>
    %c0_115 = arith.constant 0 : index
    %c0_116 = arith.constant 0 : index
    %279 = vector.load %arg15[%c0_115, %c0_116] : memref<64x32xf32, #tpu.memory_space<vmem>>, vector<64x32xf32>
    %cst_117 = arith.constant dense<0.000000e+00> : vector<16x32xf32>
    %280 = tpu.matmul %278, %279, %cst_117 {dimension_numbers = #tpu.dot_dimension_numbers<[1], [0], [0], [1], [0, 0, 1, 1], [], []>} : vector<16x64xf32>, vector<64x32xf32>, vector<16x32xf32> -> vector<16x32xf32>
    %281 = arith.addf %247, %280 : vector<16x32xf32>
    %c0_118 = arith.constant 0 : index
    %c0_119 = arith.constant 0 : index
    %282 = vector.load %arg16[%c0_118, %c0_119] : memref<1x32xf32, #tpu.memory_space<vmem>>, vector<1x32xf32>
    %283 = vector.broadcast %282 : vector<1x32xf32> to vector<16x32xf32>
    %284 = arith.addf %281, %283 : vector<16x32xf32>
    %285 = vector.shape_cast %284 : vector<16x32xf32> to vector<2x8x32xf32>
    %c0_120 = arith.constant 0 : index
    %c0_121 = arith.constant 0 : index
    %c0_122 = arith.constant 0 : index
    %286 = vector.load %arg23[%c0_120, %c0_121, %c0_122] : memref<2x8x32xf32, #tpu.memory_space<vmem>>, vector<2x8x32xf32>
    tpu.vector_store %arg23[%c0_120, %c0_121, %c0_122], %285 {strides = array<i32>} : memref<2x8x32xf32, #tpu.memory_space<vmem>>, vector<2x8x32xf32>,
    return
  }
  func.func @transform_0(%arg0: i32) -> (i32, i32, i32) {
    %c0_i32 = arith.constant 0 : i32
    %c0_i32_0 = arith.constant 0 : i32
    %c0_i32_1 = arith.constant 0 : i32
    %c0_i32_2 = arith.constant 0 : i32
    return %c0_i32, %c0_i32_0, %c0_i32_1 : i32, i32, i32
  }
  func.func @transform_1(%arg0: i32) -> (i32, i32, i32) {
    %c0_i32 = arith.constant 0 : i32
    %c0_i32_0 = arith.constant 0 : i32
    %c0_i32_1 = arith.constant 0 : i32
    %c0_i32_2 = arith.constant 0 : i32
    return %c0_i32, %c0_i32_0, %c0_i32_1 : i32, i32, i32
  }
  func.func @transform_2(%arg0: i32) -> (i32, i32, i32) {
    %c0_i32 = arith.constant 0 : i32
    %c0_i32_0 = arith.constant 0 : i32
    %c0_i32_1 = arith.constant 0 : i32
    %c0_i32_2 = arith.constant 0 : i32
    return %c0_i32, %c0_i32_0, %c0_i32_1 : i32, i32, i32
  }
  func.func @transform_3(%arg0: i32) -> (i32, i32, i32) {
    %c0_i32 = arith.constant 0 : i32
    %c0_i32_0 = arith.constant 0 : i32
    %c0_i32_1 = arith.constant 0 : i32
    %c0_i32_2 = arith.constant 0 : i32
    return %c0_i32, %c0_i32_0, %c0_i32_1 : i32, i32, i32
  }
  func.func @transform_4(%arg0: i32) -> (i32, i32) {
    %c0_i32 = arith.constant 0 : i32
    %c0_i32_0 = arith.constant 0 : i32
    %c0_i32_1 = arith.constant 0 : i32
    return %c0_i32, %c0_i32_0 : i32, i32
  }
  func.func @transform_5(%arg0: i32) -> (i32, i32) {
    %c0_i32 = arith.constant 0 : i32
    %c0_i32_0 = arith.constant 0 : i32
    %c0_i32_1 = arith.constant 0 : i32
    return %c0_i32, %c0_i32_0 : i32, i32
  }
  func.func @transform_6(%arg0: i32) -> (i32, i32) {
    %c0_i32 = arith.constant 0 : i32
    %c0_i32_0 = arith.constant 0 : i32
    %c0_i32_1 = arith.constant 0 : i32
    return %c0_i32, %c0_i32_0 : i32, i32
  }
  func.func @transform_7(%arg0: i32) -> (i32, i32) {
    %c0_i32 = arith.constant 0 : i32
    %c0_i32_0 = arith.constant 0 : i32
    %c0_i32_1 = arith.constant 0 : i32
    return %c0_i32, %c0_i32_0 : i32, i32
  }
  func.func @transform_8(%arg0: i32) -> (i32, i32) {
    %c0_i32 = arith.constant 0 : i32
    %c0_i32_0 = arith.constant 0 : i32
    %c0_i32_1 = arith.constant 0 : i32
    return %c0_i32, %c0_i32_0 : i32, i32
  }
  func.func @transform_9(%arg0: i32) -> (i32, i32) {
    %c0_i32 = arith.constant 0 : i32
    %c0_i32_0 = arith.constant 0 : i32
    %c0_i32_1 = arith.constant 0 : i32
    return %c0_i32, %c0_i32_0 : i32, i32
  }
  func.func @transform_10(%arg0: i32) -> (i32, i32) {
    %c0_i32 = arith.constant 0 : i32
    %c0_i32_0 = arith.constant 0 : i32
    %c0_i32_1 = arith.constant 0 : i32
    return %c0_i32, %c0_i32_0 : i32, i32
  }
  func.func @transform_11(%arg0: i32) -> (i32, i32) {
    %c0_i32 = arith.constant 0 : i32
    %c0_i32_0 = arith.constant 0 : i32
    %c0_i32_1 = arith.constant 0 : i32
    return %c0_i32, %c0_i32_0 : i32, i32
  }
  func.func @transform_12(%arg0: i32) -> (i32, i32) {
    %c0_i32 = arith.constant 0 : i32
    %c0_i32_0 = arith.constant 0 : i32
    %c0_i32_1 = arith.constant 0 : i32
    return %c0_i32, %c0_i32_0 : i32, i32
  }
  func.func @transform_13(%arg0: i32) -> (i32, i32) {
    %c0_i32 = arith.constant 0 : i32
    %c0_i32_0 = arith.constant 0 : i32
    %c0_i32_1 = arith.constant 0 : i32
    return %c0_i32, %c0_i32_0 : i32, i32
  }
  func.func @transform_14(%arg0: i32) -> (i32, i32) {
    %c0_i32 = arith.constant 0 : i32
    %c0_i32_0 = arith.constant 0 : i32
    %c0_i32_1 = arith.constant 0 : i32
    return %c0_i32, %c0_i32_0 : i32, i32
  }
  func.func @transform_15(%arg0: i32) -> (i32, i32) {
    %c0_i32 = arith.constant 0 : i32
    %c0_i32_0 = arith.constant 0 : i32
    %c0_i32_1 = arith.constant 0 : i32
    return %c0_i32, %c0_i32_0 : i32, i32
  }
  func.func @transform_16(%arg0: i32) -> (i32, i32) {
    %c0_i32 = arith.constant 0 : i32
    %c0_i32_0 = arith.constant 0 : i32
    %c0_i32_1 = arith.constant 0 : i32
    return %c0_i32, %c0_i32_0 : i32, i32
  }
  func.func @transform_17(%arg0: i32) -> (i32, i32) {
    %c0_i32 = arith.constant 0 : i32
    %c0_i32_0 = arith.constant 0 : i32
    %c0_i32_1 = arith.constant 0 : i32
    return %c0_i32, %c0_i32_0 : i32, i32
  }
  func.func @transform_18(%arg0: i32) -> (i32, i32) {
    %c0_i32 = arith.constant 0 : i32
    %c0_i32_0 = arith.constant 0 : i32
    %c0_i32_1 = arith.constant 0 : i32
    return %c0_i32, %c0_i32_0 : i32, i32
  }
  func.func @transform_19(%arg0: i32) -> (i32, i32) {
    %c0_i32 = arith.constant 0 : i32
    %c0_i32_0 = arith.constant 0 : i32
    %c0_i32_1 = arith.constant 0 : i32
    return %c0_i32, %c0_i32_0 : i32, i32
  }
  func.func @transform_20(%arg0: i32) -> (i32, i32) {
    %c0_i32 = arith.constant 0 : i32
    %c0_i32_0 = arith.constant 0 : i32
    %c0_i32_1 = arith.constant 0 : i32
    return %c0_i32, %c0_i32_0 : i32, i32
  }
  func.func @transform_21(%arg0: i32) -> (i32, i32) {
    %c0_i32 = arith.constant 0 : i32
    %c0_i32_0 = arith.constant 0 : i32
    %c0_i32_1 = arith.constant 0 : i32
    return %c0_i32, %c0_i32_0 : i32, i32
  }
  func.func @transform_22(%arg0: i32) -> (i32, i32, i32) {
    %c0_i32 = arith.constant 0 : i32
    %c0_i32_0 = arith.constant 0 : i32
    %c0_i32_1 = arith.constant 0 : i32
    %c0_i32_2 = arith.constant 0 : i32
    return %c0_i32, %c0_i32_0, %c0_i32_1 : i32, i32, i32
  }
}

</mosaic_0001>

<llo_original>
// kernel: decoder_layer.1
$region0: #{decoder_layer.1}
  #allocation0 [shape = 'u32[]', space=smem, size = 0x4, offset = 0x4, fixed_abs, tag = 'smem constant byte address 0x4 - core index']
  #allocation1 [shape = 'u32[144,128]{1,0:T(1,128)}', space=vmem, size = 0x12000, scoped, tag = 'internal scratch']
  %s0 = inlined_call_operand.hbm [shape: f32[2,8,32], index: 0, kind: input, shape index: {}]
  %s1 = inlined_call_operand.hbm [shape: f32[2,8,32], index: 1, kind: input, shape index: {}]
  %s2 = inlined_call_operand.hbm [shape: f32[2,8,8], index: 2, kind: input, shape index: {}]
  %s3 = inlined_call_operand.hbm [shape: f32[2,8,8], index: 3, kind: input, shape index: {}]
  %s4 = inlined_call_operand.vmem [shape: f32[32,96], index: 4, kind: input, shape index: {}]
  %s5 = inlined_call_operand.vmem [shape: f32[1,96], index: 5, kind: input, shape index: {}]
  %s6 = inlined_call_operand.vmem [shape: f32[32,32], index: 6, kind: input, shape index: {}]
  %s7 = inlined_call_operand.vmem [shape: f32[1,32], index: 7, kind: input, shape index: {}]
  %s8 = inlined_call_operand.vmem [shape: f32[32,96], index: 8, kind: input, shape index: {}]
  %s9 = inlined_call_operand.vmem [shape: f32[1,96], index: 9, kind: input, shape index: {}]
  %s10 = inlined_call_operand.vmem [shape: f32[32,32], index: 10, kind: input, shape index: {}]
  %s11 = inlined_call_operand.vmem [shape: f32[1,32], index: 11, kind: input, shape index: {}]
  %s12 = inlined_call_operand.hbm [shape: f32[32,64], index: 12, kind: input, shape index: {}]
  %s13 = inlined_call_operand.hbm [shape: f32[1,64], index: 13, kind: input, shape index: {}]
  %s14 = inlined_call_operand.vmem [shape: f32[64,32], index: 14, kind: input, shape index: {}]
  %s15 = inlined_call_operand.hbm [shape: f32[1,32], index: 15, kind: input, shape index: {}]
  %s16 = inlined_call_operand.hbm [shape: f32[1,32], index: 16, kind: input, shape index: {}]
  %s17 = inlined_call_operand.hbm [shape: f32[1,32], index: 17, kind: input, shape index: {}]
  %s18 = inlined_call_operand.vmem [shape: f32[1,32], index: 18, kind: input, shape index: {}]
  %s19 = inlined_call_operand.hbm [shape: f32[1,32], index: 19, kind: input, shape index: {}]
  %s20 = inlined_call_operand.vmem [shape: f32[1,32], index: 20, kind: input, shape index: {}]
  %s21 = inlined_call_operand.vmem [shape: f32[1,32], index: 21, kind: input, shape index: {}]
  %s22 = inlined_call_operand.hbm [shape: f32[2,8,32], index: 22, kind: output, shape index: {}]
  %s23 = sld [smem:[#allocation0]]
  $region138: #{decoder_layer.1} parent=0
    _
  %s25 = ssub.s32 1, %s23
  %s26 = scalar_select 0, %s25, %s23
  $region1: #{decoder_layer.1} parent=0
    #allocation2 [shape = 'u8[8192]{0}', space=vmem, size = 0x2000, scoped, tag = 'input window, operand 0, single buffered']
    #allocation3 [shape = 's32[1]{0}', space=sflag, size = 0x4, scoped, tag = 'scoped memory for decoder_layer.1']
    #allocation4 [shape = 's32[1]{0}', space=sflag, size = 0x4, scoped, tag = 'scoped memory for decoder_layer.1']
    #allocation5 [shape = 'u8[8192]{0}', space=vmem, size = 0x2000, scoped, tag = 'input window, operand 1, single buffered']
    #allocation6 [shape = 's32[1]{0}', space=sflag, size = 0x4, scoped, tag = 'scoped memory for decoder_layer.1']
    #allocation7 [shape = 'u8[8192]{0}', space=vmem, size = 0x2000, scoped, tag = 'input window, operand 2, single buffered']
    #allocation8 [shape = 'u8[8192]{0}', space=vmem, size = 0x2000, scoped, tag = 'input window, operand 3, single buffered']
    #allocation9 [shape = 's32[1]{0}', space=sflag, size = 0x4, scoped, tag = 'scoped memory for decoder_layer.1']
    #allocation10 [shape = 'u8[16384]{0}', space=vmem, size = 0x4000, scoped, tag = 'input window, operand 12, single buffered']
    #allocation11 [shape = 'u8[512]{0}', space=vmem, size = 0x400, scoped, tag = 'input window, operand 13, single buffered']
    #allocation12 [shape = 's32[1]{0}', space=sflag, size = 0x4, scoped, tag = 'scoped memory for decoder_layer.1']
    #allocation13 [shape = 'u8[512]{0}', space=vmem, size = 0x400, scoped, tag = 'input window, operand 15, single buffered']
    #allocation14 [shape = 'u8[512]{0}', space=vmem, size = 0x400, scoped, tag = 'input window, operand 16, single buffered']
    #allocation15 [shape = 's32[1]{0}', space=sflag, size = 0x4, scoped, tag = 'scoped memory for decoder_layer.1']
    #allocation16 [shape = 'u8[512]{0}', space=vmem, size = 0x400, scoped, tag = 'input window, operand 17, single buffered']
    #allocation17 [shape = 'u8[512]{0}', space=vmem, size = 0x400, scoped, tag = 'input window, operand 19, single buffered']
    #allocation18 [shape = 's32[1]{0}', space=sflag, size = 0x4, scoped, tag = 'scoped memory for decoder_layer.1']
    #allocation19 [shape = 'u8[8192]{0}', space=vmem, size = 0x2000, scoped, tag = 'output window, operand 0, single buffered']
    %27 = vsyncpa [#allocation3], 0
    %28 = vsyncpa [#allocation6], 0
    %29 = vsyncpa [#allocation9], 0
    %30 = vsyncpa [#allocation12], 0
    %31 = vsyncpa [#allocation15], 0
    %32 = vsyncpa [#allocation18], 0
    %33 = vsyncpa [#allocation4], 0
    // Predicated region
    $region2: #{decoder_layer.1} parent=1 // pred_check
      _
    $region3: #{decoder_layer.1} parent=1 // pred_check_branch
      %35 = sbr.rel (0) target = $region5
    $region4: #{decoder_layer.1} parent=1 // pred_region
      %s37 = ssub.s32 256, 256
      %38 = vsyncadd [#allocation3], %s37
      %s39 = sshll.u32 [#allocation2], 4
      %s40 = int_to_ptr.vmem [resolvable:$true] %s39
      %45 = dma.hbm_to_vmem [thread:$0]  %s0, 256, %s40, [#allocation3], 128, 128, 8
    $region5: #{decoder_layer.1} parent=1 // pred_fallthru
      _
    // Predicated region
    $region6: #{decoder_layer.1} parent=1 // pred_check
      _
    $region7: #{decoder_layer.1} parent=1 // pred_check_branch
      %47 = sbr.rel (0) target = $region9
    $region8: #{decoder_layer.1} parent=1 // pred_region
      %s49 = ssub.s32 256, 256
      %50 = vsyncadd [#allocation6], %s49
      %s51 = sshll.u32 [#allocation5], 4
      %s52 = int_to_ptr.vmem [resolvable:$true] %s51
      %57 = dma.hbm_to_vmem [thread:$0]  %s1, 256, %s52, [#allocation6], 128, 128, 8
    $region9: #{decoder_layer.1} parent=1 // pred_fallthru
      _
    // Predicated region
    $region10: #{decoder_layer.1} parent=1 // pred_check
      _
    $region11: #{decoder_layer.1} parent=1 // pred_check_branch
      %59 = sbr.rel (0) target = $region13
    $region12: #{decoder_layer.1} parent=1 // pred_region
      %s61 = ssub.s32 256, 256
      %62 = vsyncadd [#allocation6], %s61
      %s63 = sshll.u32 [#allocation7], 4
      %s64 = int_to_ptr.vmem [resolvable:$true] %s63
      %69 = dma.hbm_to_vmem [thread:$0]  %s2, 256, %s64, [#allocation6], 128, 128, 8
    $region13: #{decoder_layer.1} parent=1 // pred_fallthru
      _
    // Predicated region
    $region14: #{decoder_layer.1} parent=1 // pred_check
      _
    $region15: #{decoder_layer.1} parent=1 // pred_check_branch
      %71 = sbr.rel (0) target = $region17
    $region16: #{decoder_layer.1} parent=1 // pred_region
      %s73 = ssub.s32 256, 256
      %74 = vsyncadd [#allocation9], %s73
      %s75 = sshll.u32 [#allocation8], 4
      %s76 = int_to_ptr.vmem [resolvable:$true] %s75
      %81 = dma.hbm_to_vmem [thread:$0]  %s3, 256, %s76, [#allocation9], 128, 128, 8
    $region17: #{decoder_layer.1} parent=1 // pred_fallthru
      _
    // Predicated region
    $region18: #{decoder_layer.1} parent=1 // pred_check
      _
    $region19: #{decoder_layer.1} parent=1 // pred_check_branch
      %83 = sbr.rel (0) target = $region21
    $region20: #{decoder_layer.1} parent=1 // pred_region
      _
    $region21: #{decoder_layer.1} parent=1 // pred_fallthru
      _
    // Predicated region
    $region22: #{decoder_layer.1} parent=1 // pred_check
      _
    $region23: #{decoder_layer.1} parent=1 // pred_check_branch
      %85 = sbr.rel (0) target = $region25
    $region24: #{decoder_layer.1} parent=1 // pred_region
      _
    $region25: #{decoder_layer.1} parent=1 // pred_fallthru
      _
    // Predicated region
    $region26: #{decoder_layer.1} parent=1 // pred_check
      _
    $region27: #{decoder_layer.1} parent=1 // pred_check_branch
      %87 = sbr.rel (0) target = $region29
    $region28: #{decoder_layer.1} parent=1 // pred_region
      _
    $region29: #{decoder_layer.1} parent=1 // pred_fallthru
      _
    // Predicated region
    $region30: #{decoder_layer.1} parent=1 // pred_check
      _
    $region31: #{decoder_layer.1} parent=1 // pred_check_branch
      %89 = sbr.rel (0) target = $region33
    $region32: #{decoder_layer.1} parent=1 // pred_region
      _
    $region33: #{decoder_layer.1} parent=1 // pred_fallthru
      _
    // Predicated region
    $region34: #{decoder_layer.1} parent=1 // pred_check
      _
    $region35: #{decoder_layer.1} parent=1 // pred_check_branch
      %91 = sbr.rel (0) target = $region37
    $region36: #{decoder_layer.1} parent=1 // pred_region
      _
    $region37: #{decoder_layer.1} parent=1 // pred_fallthru
      _
    // Predicated region
    $region38: #{decoder_layer.1} parent=1 // pred_check
      _
    $region39: #{decoder_layer.1} parent=1 // pred_check_branch
      %93 = sbr.rel (0) target = $region41
    $region40: #{decoder_layer.1} parent=1 // pred_region
      _
    $region41: #{decoder_layer.1} parent=1 // pred_fallthru
      _
    // Predicated region
    $region42: #{decoder_layer.1} parent=1 // pred_check
      _
    $region43: #{decoder_layer.1} parent=1 // pred_check_branch
      %95 = sbr.rel (0) target = $region45
    $region44: #{decoder_layer.1} parent=1 // pred_region
      _
    $region45: #{decoder_layer.1} parent=1 // pred_fallthru
      _
    // Predicated region
    $region46: #{decoder_layer.1} parent=1 // pred_check
      _
    $region47: #{decoder_layer.1} parent=1 // pred_check_branch
      %97 = sbr.rel (0) target = $region49
    $region48: #{decoder_layer.1} parent=1 // pred_region
      _
    $region49: #{decoder_layer.1} parent=1 // pred_fallthru
      _
    // Predicated region
    $region50: #{decoder_layer.1} parent=1 // pred_check
      _
    $region51: #{decoder_layer.1} parent=1 // pred_check_branch
      %99 = sbr.rel (0) target = $region53
    $region52: #{decoder_layer.1} parent=1 // pred_region
      %s101 = ssub.s32 512, 512
      %102 = vsyncadd [#allocation9], %s101
      %s103 = sshll.u32 [#allocation10], 4
      %s104 = int_to_ptr.vmem [resolvable:$true] %s103
      %109 = dma.hbm_to_vmem [thread:$0]  %s12, 512, %s104, [#allocation9], 128, 128, 8
    $region53: #{decoder_layer.1} parent=1 // pred_fallthru
      _
    // Predicated region
    $region54: #{decoder_layer.1} parent=1 // pred_check
      _
    $region55: #{decoder_layer.1} parent=1 // pred_check_branch
      %111 = sbr.rel (0) target = $region57
    $region56: #{decoder_layer.1} parent=1 // pred_region
      %s113 = ssub.s32 16, 16
      %114 = vsyncadd [#allocation12], %s113
      %s116 = sshll.u32 [#allocation11], 4
      %s117 = int_to_ptr.vmem [resolvable:$true] %s116
      %119 = dma.hbm_to_vmem [thread:$0]  %s13, 16, %s117, [#allocation12]
    $region57: #{decoder_layer.1} parent=1 // pred_fallthru
      _
    // Predicated region
    $region58: #{decoder_layer.1} parent=1 // pred_check
      _
    $region59: #{decoder_layer.1} parent=1 // pred_check_branch
      %121 = sbr.rel (0) target = $region61
    $region60: #{decoder_layer.1} parent=1 // pred_region
      _
    $region61: #{decoder_layer.1} parent=1 // pred_fallthru
      _
    // Predicated region
    $region62: #{decoder_layer.1} parent=1 // pred_check
      _
    $region63: #{decoder_layer.1} parent=1 // pred_check_branch
      %123 = sbr.rel (0) target = $region65
    $region64: #{decoder_layer.1} parent=1 // pred_region
      %s125 = ssub.s32 16, 16
      %126 = vsyncadd [#allocation12], %s125
      %s128 = sshll.u32 [#allocation13], 4
      %s129 = int_to_ptr.vmem [resolvable:$true] %s128
      %131 = dma.hbm_to_vmem [thread:$0]  %s15, 16, %s129, [#allocation12]
    $region65: #{decoder_layer.1} parent=1 // pred_fallthru
      _
    // Predicated region
    $region66: #{decoder_layer.1} parent=1 // pred_check
      _
    $region67: #{decoder_layer.1} parent=1 // pred_check_branch
      %133 = sbr.rel (0) target = $region69
    $region68: #{decoder_layer.1} parent=1 // pred_region
      %s135 = ssub.s32 16, 16
      %136 = vsyncadd [#allocation15], %s135
      %s138 = sshll.u32 [#allocation14], 4
      %s139 = int_to_ptr.vmem [resolvable:$true] %s138
      %141 = dma.hbm_to_vmem [thread:$0]  %s16, 16, %s139, [#allocation15]
    $region69: #{decoder_layer.1} parent=1 // pred_fallthru
      _
    // Predicated region
    $region70: #{decoder_layer.1} parent=1 // pred_check
      _
    $region71: #{decoder_layer.1} parent=1 // pred_check_branch
      %143 = sbr.rel (0) target = $region73
    $region72: #{decoder_layer.1} parent=1 // pred_region
      %s145 = ssub.s32 16, 16
      %146 = vsyncadd [#allocation15], %s145
      %s148 = sshll.u32 [#allocation16], 4
      %s149 = int_to_ptr.vmem [resolvable:$true] %s148
      %151 = dma.hbm_to_vmem [thread:$0]  %s17, 16, %s149, [#allocation15]
    $region73: #{decoder_layer.1} parent=1 // pred_fallthru
      _
    // Predicated region
    $region74: #{decoder_layer.1} parent=1 // pred_check
      _
    $region75: #{decoder_layer.1} parent=1 // pred_check_branch
      %153 = sbr.rel (0) target = $region77
    $region76: #{decoder_layer.1} parent=1 // pred_region
      _
    $region77: #{decoder_layer.1} parent=1 // pred_fallthru
      _
    // Predicated region
    $region78: #{decoder_layer.1} parent=1 // pred_check
      _
    $region79: #{decoder_layer.1} parent=1 // pred_check_branch
      %155 = sbr.rel (0) target = $region81
    $region80: #{decoder_layer.1} parent=1 // pred_region
      %s157 = ssub.s32 16, 16
      %158 = vsyncadd [#allocation18], %s157
      %s160 = sshll.u32 [#allocation17], 4
      %s161 = int_to_ptr.vmem [resolvable:$true] %s160
      %163 = dma.hbm_to_vmem [thread:$0]  %s19, 16, %s161, [#allocation18]
    $region81: #{decoder_layer.1} parent=1 // pred_fallthru
      _
    // Predicated region
    $region82: #{decoder_layer.1} parent=1 // pred_check
      _
    $region83: #{decoder_layer.1} parent=1 // pred_check_branch
      %165 = sbr.rel (0) target = $region85
    $region84: #{decoder_layer.1} parent=1 // pred_region
      _
    $region85: #{decoder_layer.1} parent=1 // pred_fallthru
      _
    // Predicated region
    $region86: #{decoder_layer.1} parent=1 // pred_check
      _
    $region87: #{decoder_layer.1} parent=1 // pred_check_branch
      %167 = sbr.rel (0) target = $region89
    $region88: #{decoder_layer.1} parent=1 // pred_region
      _
    $region89: #{decoder_layer.1} parent=1 // pred_fallthru
      _
    // Predicated region
    $region90: #{decoder_layer.1} parent=1 // pred_check
      _
    $region91: #{decoder_layer.1} parent=1 // pred_check_branch
      %169 = sbr.rel (0) target = $region93
    $region92: #{decoder_layer.1} parent=1 // pred_region
      %170 = dma.done [#allocation3], 256
    $region93: #{decoder_layer.1} parent=1 // pred_fallthru
      _
    // Predicated region
    $region94: #{decoder_layer.1} parent=1 // pred_check
      _
    $region95: #{decoder_layer.1} parent=1 // pred_check_branch
      %172 = sbr.rel (0) target = $region97
    $region96: #{decoder_layer.1} parent=1 // pred_region
      %173 = dma.done [#allocation6], 256
    $region97: #{decoder_layer.1} parent=1 // pred_fallthru
      _
    // Predicated region
    $region98: #{decoder_layer.1} parent=1 // pred_check
      _
    $region99: #{decoder_layer.1} parent=1 // pred_check_branch
      %175 = sbr.rel (0) target = $region101
    $region100: #{decoder_layer.1} parent=1 // pred_region
      %176 = dma.done [#allocation6], 256
    $region101: #{decoder_layer.1} parent=1 // pred_fallthru
      _
    // Predicated region
    $region102: #{decoder_layer.1} parent=1 // pred_check
      _
    $region103: #{decoder_layer.1} parent=1 // pred_check_branch
      %178 = sbr.rel (0) target = $region105
    $region104: #{decoder_layer.1} parent=1 // pred_region
      %179 = dma.done [#allocation9], 256
    $region105: #{decoder_layer.1} parent=1 // pred_fallthru
      _
    // Predicated region
    $region106: #{decoder_layer.1} parent=1 // pred_check
      _
    $region107: #{decoder_layer.1} parent=1 // pred_check_branch
      %181 = sbr.rel (0) target = $region109
    $region108: #{decoder_layer.1} parent=1 // pred_region
      %182 = dma.done [#allocation9], 512
    $region109: #{decoder_layer.1} parent=1 // pred_fallthru
      _
    // Predicated region
    $region110: #{decoder_layer.1} parent=1 // pred_check
      _
    $region111: #{decoder_layer.1} parent=1 // pred_check_branch
      %184 = sbr.rel (0) target = $region113
    $region112: #{decoder_layer.1} parent=1 // pred_region
      %185 = dma.done [#allocation12], 16
    $region113: #{decoder_layer.1} parent=1 // pred_fallthru
      _
    // Predicated region
    $region114: #{decoder_layer.1} parent=1 // pred_check
      _
    $region115: #{decoder_layer.1} parent=1 // pred_check_branch
      %187 = sbr.rel (0) target = $region117
    $region116: #{decoder_layer.1} parent=1 // pred_region
      %188 = dma.done [#allocation12], 16
    $region117: #{decoder_layer.1} parent=1 // pred_fallthru
      _
    // Predicated region
    $region118: #{decoder_layer.1} parent=1 // pred_check
      _
    $region119: #{decoder_layer.1} parent=1 // pred_check_branch
      %190 = sbr.rel (0) target = $region121
    $region120: #{decoder_layer.1} parent=1 // pred_region
      %191 = dma.done [#allocation15], 16
    $region121: #{decoder_layer.1} parent=1 // pred_fallthru
      _
    // Predicated region
    $region122: #{decoder_layer.1} parent=1 // pred_check
      _
    $region123: #{decoder_layer.1} parent=1 // pred_check_branch
      %193 = sbr.rel (0) target = $region125
    $region124: #{decoder_layer.1} parent=1 // pred_region
      %194 = dma.done [#allocation15], 16
    $region125: #{decoder_layer.1} parent=1 // pred_fallthru
      _
    // Predicated region
    $region126: #{decoder_layer.1} parent=1 // pred_check
      _
    $region127: #{decoder_layer.1} parent=1 // pred_check_branch
      %196 = sbr.rel (0) target = $region129
    $region128: #{decoder_layer.1} parent=1 // pred_region
      %197 = dma.done [#allocation18], 16
    $region129: #{decoder_layer.1} parent=1 // pred_fallthru
      _
    %v198 = vld [vmem:[#allocation2] sm:$0xff]
    %v199 = vld [vmem:[#allocation2 + $0x8] sm:$0xff]
    %v200 = vld [vmem:[#allocation5] sm:$0xff]
    %v201 = vld [vmem:[#allocation5 + $0x8] sm:$0xff]
    %vm202 = vcmask 261120
    %v203 = vsel %vm202, %v198, 0.0
    %204 = vadd.xlane.f32.xlu0 %v203
    %v205 = vpop.xlane.xlu0 %204
    %v206 = vsel %vm202, %v199, 0.0
    %207 = vadd.xlane.f32.xlu0 %v206
    %v208 = vpop.xlane.xlu0 %207
    %v209 = vrcp.pop 32.0
    %v210 = vmul.f32 %v205, %v209
    %v211 = vmul.f32 %v208, %v209
    %v212 = vsub.f32 %v198, %v210
    %v213 = vsub.f32 %v199, %v211
    %v214 = vmul.f32 %v212, %v212
    %v215 = vmul.f32 %v213, %v213
    %v216 = vsel %vm202, %v214, 0.0
    %217 = vadd.xlane.f32.xlu0 %v216
    %v218 = vpop.xlane.xlu0 %217
    %v219 = vsel %vm202, %v215, 0.0
    %220 = vadd.xlane.f32.xlu0 %v219
    %v221 = vpop.xlane.xlu0 %220
    %v222 = vmul.f32 %v218, %v209
    %v223 = vmul.f32 %v221, %v209
    %v224 = vld [vmem:[#allocation14] sm:$0x1]
    %v226 = vlaneseq
    %v227 = vshrl.u32 %v226, 7
    %v228 = vsub.s32 0, %v227
    %v229 = vrot.slane %v224, %v228
    %v231 = vmul.f32 %v229, %v212
    %v232 = vmul.f32 %v229, %v213
    %v233 = vadd.f32 %v222, 1e-06
    %v234 = vadd.f32 %v223, 1e-06
    %v235 = vrsqrt.pop %v233
    %v236 = vrsqrt.pop %v234
    %v237 = vmul.f32 %v231, %v235
    %v238 = vmul.f32 %v232, %v236
    %v239 = vld [vmem:[#allocation16] sm:$0x1]
    %v241 = vlaneseq
    %v242 = vshrl.u32 %v241, 7
    %v243 = vsub.s32 0, %v242
    %v244 = vrot.slane %v239, %v243
    %v246 = vadd.f32 %v237, %v244
    %v247 = vadd.f32 %v238, %v244
    %v248 = vld [vmem:[%s4] sm:$0xff]
    %v249 = vld [vmem:[%s4 + $0x8] sm:$0xff]
    %v250 = vld [vmem:[%s4 + $0x10] sm:$0xff]
    %v251 = vld [vmem:[%s4 + $0x18] sm:$0xff]
    %v252 = vld [vmem:[%s5] sm:$0x1]
    %v254 = vlaneseq
    %v255 = vshrl.u32 %v254, 7
    %v256 = vsub.s32 0, %v255
    %v257 = vrot.slane %v252, %v256
    %v260 = vsel %vm202, %v246, 0
    %v263 = vsel %vm202, %v247, 0
    %265 = vmatprep.subr.mxu0 0.0
    %266 = vmatpush1.msra.mxu0 %v248
    %267 = vmatprep.subr.mxu0 0.0
    %268 = vmatpush1.msra.mxu0 %v249
    %269 = vmatprep.subr.mxu0 0.0
    %270 = vmatpush1.msra.mxu0 %v250
    %271 = vmatprep.subr.mxu0 0.0
    %272 = vmatpush1.msra.mxu0 %v251
    %273 = vmatprep.subr.mxu0 0.0
    %274 = vmatpush1.msra.mxu0 0.0
    %275 = vmatprep.subr.mxu0 0.0
    %276 = vmatpush1.msra.mxu0 0.0
    %277 = vmatprep.subr.mxu0 0.0
    %278 = vmatpush1.msra.mxu0 0.0
    %279 = vmatprep.subr.mxu0 0.0
    %280 = vmatpush1.msra.mxu0 0.0
    %281 = vmatprep.subr.mxu0 0.0
    %282 = vmatpush1.msra.mxu0 0.0
    %283 = vmatprep.subr.mxu0 0.0
    %284 = vmatpush1.msra.mxu0 0.0
    %285 = vmatprep.subr.mxu0 0.0
    %286 = vmatpush1.msra.mxu0 0.0
    %287 = vmatprep.subr.mxu0 0.0
    %288 = vmatpush1.msra.mxu0 0.0
    %289 = vmatprep.subr.mxu0 0.0
    %290 = vmatpush1.msra.mxu0 0.0
    %291 = vmatprep.subr.mxu0 0.0
    %292 = vmatpush1.msra.mxu0 0.0
    %293 = vmatprep.subr.mxu0 0.0
    %294 = vmatpush1.msra.mxu0 0.0
    %295 = vmatprep.subr.mxu0 0.0
    %296 = vmatpush1.msra.mxu0 0.0
    %297 = vmatprep.subr.mxu0 0.0
    %298 = vmatpush1.msra.mxu0 0.0
    %299 = vmatprep.subr.mxu0 0.0
    %300 = vmatpush1.msra.mxu0 0.0
    %301 = vmatprep.subr.mxu0 0.0
    %302 = vmatpush1.msra.mxu0 0.0
    %303 = vmatprep.subr.mxu0 0.0
    %304 = vmatpush1.msra.mxu0 0.0
    %305 = vmatprep.subr.mxu0 0.0
    %306 = vmatpush1.msra.mxu0 0.0
    %307 = vmatprep.subr.mxu0 0.0
    %308 = vmatpush1.msra.mxu0 0.0
    %309 = vmatprep.subr.mxu0 0.0
    %310 = vmatpush1.msra.mxu0 0.0
    %311 = vmatprep.subr.mxu0 0.0
    %312 = vmatpush1.msra.mxu0 0.0
    %313 = vmatprep.subr.mxu0 0.0
    %314 = vmatpush1.msra.mxu0 0.0
    %315 = vmatprep.subr.mxu0 0.0
    %316 = vmatpush1.msra.mxu0 0.0
    %317 = vmatprep.subr.mxu0 0.0
    %318 = vmatpush1.msra.mxu0 0.0
    %319 = vmatprep.subr.mxu0 0.0
    %320 = vmatpush1.msra.mxu0 0.0
    %321 = vmatprep.subr.mxu0 0.0
    %322 = vmatpush1.msra.mxu0 0.0
    %323 = vmatprep.subr.mxu0 0.0
    %324 = vmatpush1.msra.mxu0 0.0
    %325 = vmatprep.subr.mxu0 0.0
    %326 = vmatpush1.msra.mxu0 0.0
    %327 = vmatprep.subr.mxu0 0.0
    %328 = vmatpush1.msra.mxu0 0.0
    %329 = vmatprep.mubr.f32.mxu0 0.0
    %330 = vmatmul.mubr.f32.gmra.mrb[0].mxu0 %v260
    %v331 = vpop.f32.mrb[0].mxu0
    %v332 = vadd.f32 %v257, %v331
    %v333 = vpop.f32.mrb[0].mxu0
    %334 = vmatprep.mubr.f32.mxu0 0.0
    %335 = vmatmul.mubr.f32.gmra.mrb[0].mxu0 %v263
    %v336 = vpop.f32.mrb[0].mxu0
    %v337 = vadd.f32 %v257, %v336
    %v338 = vpop.f32.mrb[0].mxu0
    %339 = vdwg.mxu0
    %v340 = vld [vmem:[#allocation8] sm:$0xff]
    %v341 = vld [vmem:[#allocation8 + $0x8] sm:$0xff]
    %343 = vrot.lane.b32.xlu0 %v332, 96
    %v344 = vpop.permute.xlu0 %343
    %vm345 = vcmask 64512
    %v346 = vsel %vm345, %v332, 0
    %v348 = vsel %vm345, %v344, 0
    %350 = vmatprep.subr.mxu0 0.0
    %351 = vmatpush1.xpose.msra.mxu0 %v348
    %352 = vmatprep.subr.mxu0 0.0
    %353 = vmatpush1.xpose.msra.mxu0 0.0
    %354 = vmatprep.subr.mxu0 0.0
    %355 = vmatpush1.xpose.msra.mxu0 0.0
    %356 = vmatprep.subr.mxu0 0.0
    %357 = vmatpush1.xpose.msra.mxu0 0.0
    %358 = vmatprep.subr.mxu0 0.0
    %359 = vmatpush1.xpose.msra.mxu0 0.0
    %360 = vmatprep.subr.mxu0 0.0
    %361 = vmatpush1.xpose.msra.mxu0 0.0
    %362 = vmatprep.subr.mxu0 0.0
    %363 = vmatpush1.xpose.msra.mxu0 0.0
    %364 = vmatprep.subr.mxu0 0.0
    %365 = vmatpush1.xpose.msra.mxu0 0.0
    %366 = vmatprep.subr.mxu0 0.0
    %367 = vmatpush1.xpose.msra.mxu0 0.0
    %368 = vmatprep.subr.mxu0 0.0
    %369 = vmatpush1.xpose.msra.mxu0 0.0
    %370 = vmatprep.subr.mxu0 0.0
    %371 = vmatpush1.xpose.msra.mxu0 0.0
    %372 = vmatprep.subr.mxu0 0.0
    %373 = vmatpush1.xpose.msra.mxu0 0.0
    %374 = vmatprep.subr.mxu0 0.0
    %375 = vmatpush1.xpose.msra.mxu0 0.0
    %376 = vmatprep.subr.mxu0 0.0
    %377 = vmatpush1.xpose.msra.mxu0 0.0
    %378 = vmatprep.subr.mxu0 0.0
    %379 = vmatpush1.xpose.msra.mxu0 0.0
    %380 = vmatprep.subr.mxu0 0.0
    %381 = vmatpush1.xpose.msra.mxu0 0.0
    %382 = vmatprep.subr.mxu0 0.0
    %383 = vmatpush1.xpose.msra.mxu0 0.0
    %384 = vmatprep.subr.mxu0 0.0
    %385 = vmatpush1.xpose.msra.mxu0 0.0
    %386 = vmatprep.subr.mxu0 0.0
    %387 = vmatpush1.xpose.msra.mxu0 0.0
    %388 = vmatprep.subr.mxu0 0.0
    %389 = vmatpush1.xpose.msra.mxu0 0.0
    %390 = vmatprep.subr.mxu0 0.0
    %391 = vmatpush1.xpose.msra.mxu0 0.0
    %392 = vmatprep.subr.mxu0 0.0
    %393 = vmatpush1.xpose.msra.mxu0 0.0
    %394 = vmatprep.subr.mxu0 0.0
    %395 = vmatpush1.xpose.msra.mxu0 0.0
    %396 = vmatprep.subr.mxu0 0.0
    %397 = vmatpush1.xpose.msra.mxu0 0.0
    %398 = vmatprep.subr.mxu0 0.0
    %399 = vmatpush1.xpose.msra.mxu0 0.0
    %400 = vmatprep.subr.mxu0 0.0
    %401 = vmatpush1.xpose.msra.mxu0 0.0
    %402 = vmatprep.subr.mxu0 0.0
    %403 = vmatpush1.xpose.msra.mxu0 0.0
    %404 = vmatprep.subr.mxu0 0.0
    %405 = vmatpush1.xpose.msra.mxu0 0.0
    %406 = vmatprep.subr.mxu0 0.0
    %407 = vmatpush1.xpose.msra.mxu0 0.0
    %408 = vmatprep.subr.mxu0 0.0
    %409 = vmatpush1.xpose.msra.mxu0 0.0
    %410 = vmatprep.subr.mxu0 0.0
    %411 = vmatpush1.xpose.msra.mxu0 0.0
    %412 = vmatprep.subr.mxu0 0.0
    %413 = vmatpush1.xpose.msra.mxu0 0.0
    %414 = vmatprep.mubr.f32.mxu0 0.0
    %415 = vmatmul.mubr.f32.gmra.mrb[0].mxu0 %v346
    %v416 = vpop.f32.mrb[0].mxu0
    %v417 = vadd.f32 0.0, %v416
    %v418 = vpop.f32.mrb[0].mxu0
    %419 = vdwg.mxu0
    %421 = vrot.lane.b32.xlu0 %v337, 96
    %v422 = vpop.permute.xlu0 %421
    %v423 = vsel %vm345, %v337, 0
    %v425 = vsel %vm345, %v422, 0
    %427 = vmatprep.subr.mxu0 0.0
    %428 = vmatpush1.xpose.msra.mxu0 %v425
    %429 = vmatprep.subr.mxu0 0.0
    %430 = vmatpush1.xpose.msra.mxu0 0.0
    %431 = vmatprep.subr.mxu0 0.0
    %432 = vmatpush1.xpose.msra.mxu0 0.0
    %433 = vmatprep.subr.mxu0 0.0
    %434 = vmatpush1.xpose.msra.mxu0 0.0
    %435 = vmatprep.subr.mxu0 0.0
    %436 = vmatpush1.xpose.msra.mxu0 0.0
    %437 = vmatprep.subr.mxu0 0.0
    %438 = vmatpush1.xpose.msra.mxu0 0.0
    %439 = vmatprep.subr.mxu0 0.0
    %440 = vmatpush1.xpose.msra.mxu0 0.0
    %441 = vmatprep.subr.mxu0 0.0
    %442 = vmatpush1.xpose.msra.mxu0 0.0
    %443 = vmatprep.subr.mxu0 0.0
    %444 = vmatpush1.xpose.msra.mxu0 0.0
    %445 = vmatprep.subr.mxu0 0.0
    %446 = vmatpush1.xpose.msra.mxu0 0.0
    %447 = vmatprep.subr.mxu0 0.0
    %448 = vmatpush1.xpose.msra.mxu0 0.0
    %449 = vmatprep.subr.mxu0 0.0
    %450 = vmatpush1.xpose.msra.mxu0 0.0
    %451 = vmatprep.subr.mxu0 0.0
    %452 = vmatpush1.xpose.msra.mxu0 0.0
    %453 = vmatprep.subr.mxu0 0.0
    %454 = vmatpush1.xpose.msra.mxu0 0.0
    %455 = vmatprep.subr.mxu0 0.0
    %456 = vmatpush1.xpose.msra.mxu0 0.0
    %457 = vmatprep.subr.mxu0 0.0
    %458 = vmatpush1.xpose.msra.mxu0 0.0
    %459 = vmatprep.subr.mxu0 0.0
    %460 = vmatpush1.xpose.msra.mxu0 0.0
    %461 = vmatprep.subr.mxu0 0.0
    %462 = vmatpush1.xpose.msra.mxu0 0.0
    %463 = vmatprep.subr.mxu0 0.0
    %464 = vmatpush1.xpose.msra.mxu0 0.0
    %465 = vmatprep.subr.mxu0 0.0
    %466 = vmatpush1.xpose.msra.mxu0 0.0
    %467 = vmatprep.subr.mxu0 0.0
    %468 = vmatpush1.xpose.msra.mxu0 0.0
    %469 = vmatprep.subr.mxu0 0.0
    %470 = vmatpush1.xpose.msra.mxu0 0.0
    %471 = vmatprep.subr.mxu0 0.0
    %472 = vmatpush1.xpose.msra.mxu0 0.0
    %473 = vmatprep.subr.mxu0 0.0
    %474 = vmatpush1.xpose.msra.mxu0 0.0
    %475 = vmatprep.subr.mxu0 0.0
    %476 = vmatpush1.xpose.msra.mxu0 0.0
    %477 = vmatprep.subr.mxu0 0.0
    %478 = vmatpush1.xpose.msra.mxu0 0.0
    %479 = vmatprep.subr.mxu0 0.0
    %480 = vmatpush1.xpose.msra.mxu0 0.0
    %481 = vmatprep.subr.mxu0 0.0
    %482 = vmatpush1.xpose.msra.mxu0 0.0
    %483 = vmatprep.subr.mxu0 0.0
    %484 = vmatpush1.xpose.msra.mxu0 0.0
    %485 = vmatprep.subr.mxu0 0.0
    %486 = vmatpush1.xpose.msra.mxu0 0.0
    %487 = vmatprep.subr.mxu0 0.0
    %488 = vmatpush1.xpose.msra.mxu0 0.0
    %489 = vmatprep.subr.mxu0 0.0
    %490 = vmatpush1.xpose.msra.mxu0 0.0
    %491 = vmatprep.mubr.f32.mxu0 0.0
    %492 = vmatmul.mubr.f32.gmra.mrb[0].mxu0 %v423
    %v493 = vpop.f32.mrb[0].mxu0
    %v494 = vadd.f32 0.0, %v493
    %v495 = vpop.f32.mrb[0].mxu0
    %496 = vdwg.mxu0
    %vm497 = vcmp.gt.f32.partialorder %v340, 0.0
    %vm498 = vcmp.gt.f32.partialorder %v341, 0.0
    %v499 = vsel %vm497, %v417, -1e+09
    %v500 = vsel %vm498, %v494, -1e+09
    %v501 = vsel %vm345, %v499, -inf
    %502 = vmax.xlane.f32.xlu0 %v501
    %v503 = vpop.xlane.xlu0 %502
    %v504 = vsel %vm345, %v500, -inf
    %505 = vmax.xlane.f32.xlu0 %v504
    %v506 = vpop.xlane.xlu0 %505
    %v507 = vsub.f32 %v499, %v503
    %v508 = vsub.f32 %v500, %v506
    %v509 = vmul.f32 %v507, 1.442695
    %v510 = vpow.pop %v509
    %v511 = vmul.f32 %v508, 1.442695
    %v512 = vpow.pop %v511
    %v513 = vsel %vm345, %v510, 0.0
    %514 = vadd.xlane.f32.xlu0 %v513
    %v515 = vpop.xlane.xlu0 %514
    %v516 = vsel %vm345, %v512, 0.0
    %517 = vadd.xlane.f32.xlu0 %v516
    %v518 = vpop.xlane.xlu0 %517
    %v519 = vrcp.pop %v515
    %v520 = vrcp.pop %v518
    %v521 = vmul.f32 %v510, %v519
    %v522 = vmul.f32 %v512, %v520
    %523 = vrot.lane.b32.xlu0 %v332, 64
    %v524 = vpop.permute.xlu0 %523
    %v527 = vsel %vm345, %v521, 0
    %529 = vmatprep.subr.mxu0 0.0
    %530 = vmatpush1.msra.mxu0 %v524
    %531 = vmatprep.subr.mxu0 0.0
    %532 = vmatpush1.msra.mxu0 0.0
    %533 = vmatprep.subr.mxu0 0.0
    %534 = vmatpush1.msra.mxu0 0.0
    %535 = vmatprep.subr.mxu0 0.0
    %536 = vmatpush1.msra.mxu0 0.0
    %537 = vmatprep.subr.mxu0 0.0
    %538 = vmatpush1.msra.mxu0 0.0
    %539 = vmatprep.subr.mxu0 0.0
    %540 = vmatpush1.msra.mxu0 0.0
    %541 = vmatprep.subr.mxu0 0.0
    %542 = vmatpush1.msra.mxu0 0.0
    %543 = vmatprep.subr.mxu0 0.0
    %544 = vmatpush1.msra.mxu0 0.0
    %545 = vmatprep.subr.mxu0 0.0
    %546 = vmatpush1.msra.mxu0 0.0
    %547 = vmatprep.subr.mxu0 0.0
    %548 = vmatpush1.msra.mxu0 0.0
    %549 = vmatprep.subr.mxu0 0.0
    %550 = vmatpush1.msra.mxu0 0.0
    %551 = vmatprep.subr.mxu0 0.0
    %552 = vmatpush1.msra.mxu0 0.0
    %553 = vmatprep.subr.mxu0 0.0
    %554 = vmatpush1.msra.mxu0 0.0
    %555 = vmatprep.subr.mxu0 0.0
    %556 = vmatpush1.msra.mxu0 0.0
    %557 = vmatprep.subr.mxu0 0.0
    %558 = vmatpush1.msra.mxu0 0.0
    %559 = vmatprep.subr.mxu0 0.0
    %560 = vmatpush1.msra.mxu0 0.0
    %561 = vmatprep.subr.mxu0 0.0
    %562 = vmatpush1.msra.mxu0 0.0
    %563 = vmatprep.subr.mxu0 0.0
    %564 = vmatpush1.msra.mxu0 0.0
    %565 = vmatprep.subr.mxu0 0.0
    %566 = vmatpush1.msra.mxu0 0.0
    %567 = vmatprep.subr.mxu0 0.0
    %568 = vmatpush1.msra.mxu0 0.0
    %569 = vmatprep.subr.mxu0 0.0
    %570 = vmatpush1.msra.mxu0 0.0
    %571 = vmatprep.subr.mxu0 0.0
    %572 = vmatpush1.msra.mxu0 0.0
    %573 = vmatprep.subr.mxu0 0.0
    %574 = vmatpush1.msra.mxu0 0.0
    %575 = vmatprep.subr.mxu0 0.0
    %576 = vmatpush1.msra.mxu0 0.0
    %577 = vmatprep.subr.mxu0 0.0
    %578 = vmatpush1.msra.mxu0 0.0
    %579 = vmatprep.subr.mxu0 0.0
    %580 = vmatpush1.msra.mxu0 0.0
    %581 = vmatprep.subr.mxu0 0.0
    %582 = vmatpush1.msra.mxu0 0.0
    %583 = vmatprep.subr.mxu0 0.0
    %584 = vmatpush1.msra.mxu0 0.0
    %585 = vmatprep.subr.mxu0 0.0
    %586 = vmatpush1.msra.mxu0 0.0
    %587 = vmatprep.subr.mxu0 0.0
    %588 = vmatpush1.msra.mxu0 0.0
    %589 = vmatprep.subr.mxu0 0.0
    %590 = vmatpush1.msra.mxu0 0.0
    %591 = vmatprep.subr.mxu0 0.0
    %592 = vmatpush1.msra.mxu0 0.0
    %593 = vmatprep.mubr.f32.mxu0 0.0
    %594 = vmatmul.mubr.f32.gmra.mrb[0].mxu0 %v527
    %v595 = vpop.f32.mrb[0].mxu0
    %v596 = vadd.f32 0.0, %v595
    %v597 = vpop.f32.mrb[0].mxu0
    %598 = vdwg.mxu0
    %599 = vrot.lane.b32.xlu0 %v337, 64
    %v600 = vpop.permute.xlu0 %599
    %v603 = vsel %vm345, %v522, 0
    %605 = vmatprep.subr.mxu0 0.0
    %606 = vmatpush1.msra.mxu0 %v600
    %607 = vmatprep.subr.mxu0 0.0
    %608 = vmatpush1.msra.mxu0 0.0
    %609 = vmatprep.subr.mxu0 0.0
    %610 = vmatpush1.msra.mxu0 0.0
    %611 = vmatprep.subr.mxu0 0.0
    %612 = vmatpush1.msra.mxu0 0.0
    %613 = vmatprep.subr.mxu0 0.0
    %614 = vmatpush1.msra.mxu0 0.0
    %615 = vmatprep.subr.mxu0 0.0
    %616 = vmatpush1.msra.mxu0 0.0
    %617 = vmatprep.subr.mxu0 0.0
    %618 = vmatpush1.msra.mxu0 0.0
    %619 = vmatprep.subr.mxu0 0.0
    %620 = vmatpush1.msra.mxu0 0.0
    %621 = vmatprep.subr.mxu0 0.0
    %622 = vmatpush1.msra.mxu0 0.0
    %623 = vmatprep.subr.mxu0 0.0
    %624 = vmatpush1.msra.mxu0 0.0
    %625 = vmatprep.subr.mxu0 0.0
    %626 = vmatpush1.msra.mxu0 0.0
    %627 = vmatprep.subr.mxu0 0.0
    %628 = vmatpush1.msra.mxu0 0.0
    %629 = vmatprep.subr.mxu0 0.0
    %630 = vmatpush1.msra.mxu0 0.0
    %631 = vmatprep.subr.mxu0 0.0
    %632 = vmatpush1.msra.mxu0 0.0
    %633 = vmatprep.subr.mxu0 0.0
    %634 = vmatpush1.msra.mxu0 0.0
    %635 = vmatprep.subr.mxu0 0.0
    %636 = vmatpush1.msra.mxu0 0.0
    %637 = vmatprep.subr.mxu0 0.0
    %638 = vmatpush1.msra.mxu0 0.0
    %639 = vmatprep.subr.mxu0 0.0
    %640 = vmatpush1.msra.mxu0 0.0
    %641 = vmatprep.subr.mxu0 0.0
    %642 = vmatpush1.msra.mxu0 0.0
    %643 = vmatprep.subr.mxu0 0.0
    %644 = vmatpush1.msra.mxu0 0.0
    %645 = vmatprep.subr.mxu0 0.0
    %646 = vmatpush1.msra.mxu0 0.0
    %647 = vmatprep.subr.mxu0 0.0
    %648 = vmatpush1.msra.mxu0 0.0
    %649 = vmatprep.subr.mxu0 0.0
    %650 = vmatpush1.msra.mxu0 0.0
    %651 = vmatprep.subr.mxu0 0.0
    %652 = vmatpush1.msra.mxu0 0.0
    %653 = vmatprep.subr.mxu0 0.0
    %654 = vmatpush1.msra.mxu0 0.0
    %655 = vmatprep.subr.mxu0 0.0
    %656 = vmatpush1.msra.mxu0 0.0
    %657 = vmatprep.subr.mxu0 0.0
    %658 = vmatpush1.msra.mxu0 0.0
    %659 = vmatprep.subr.mxu0 0.0
    %660 = vmatpush1.msra.mxu0 0.0
    %661 = vmatprep.subr.mxu0 0.0
    %662 = vmatpush1.msra.mxu0 0.0
    %663 = vmatprep.subr.mxu0 0.0
    %664 = vmatpush1.msra.mxu0 0.0
    %665 = vmatprep.subr.mxu0 0.0
    %666 = vmatpush1.msra.mxu0 0.0
    %667 = vmatprep.subr.mxu0 0.0
    %668 = vmatpush1.msra.mxu0 0.0
    %669 = vmatprep.mubr.f32.mxu0 0.0
    %670 = vmatmul.mubr.f32.gmra.mrb[0].mxu0 %v603
    %v671 = vpop.f32.mrb[0].mxu0
    %v672 = vadd.f32 0.0, %v671
    %v673 = vpop.f32.mrb[0].mxu0
    %674 = vdwg.mxu0
    %675 = vrot.lane.b32.xlu0 %v332, 120
    %v676 = vpop.permute.xlu0 %675
    %677 = vrot.lane.b32.xlu0 %v332, 88
    %v678 = vpop.permute.xlu0 %677
    %v679 = vsel %vm345, %v676, 0
    %v681 = vsel %vm345, %v678, 0
    %683 = vmatprep.subr.mxu0 0.0
    %684 = vmatpush1.xpose.msra.mxu0 %v681
    %685 = vmatprep.subr.mxu0 0.0
    %686 = vmatpush1.xpose.msra.mxu0 0.0
    %687 = vmatprep.subr.mxu0 0.0
    %688 = vmatpush1.xpose.msra.mxu0 0.0
    %689 = vmatprep.subr.mxu0 0.0
    %690 = vmatpush1.xpose.msra.mxu0 0.0
    %691 = vmatprep.subr.mxu0 0.0
    %692 = vmatpush1.xpose.msra.mxu0 0.0
    %693 = vmatprep.subr.mxu0 0.0
    %694 = vmatpush1.xpose.msra.mxu0 0.0
    %695 = vmatprep.subr.mxu0 0.0
    %696 = vmatpush1.xpose.msra.mxu0 0.0
    %697 = vmatprep.subr.mxu0 0.0
    %698 = vmatpush1.xpose.msra.mxu0 0.0
    %699 = vmatprep.subr.mxu0 0.0
    %700 = vmatpush1.xpose.msra.mxu0 0.0
    %701 = vmatprep.subr.mxu0 0.0
    %702 = vmatpush1.xpose.msra.mxu0 0.0
    %703 = vmatprep.subr.mxu0 0.0
    %704 = vmatpush1.xpose.msra.mxu0 0.0
    %705 = vmatprep.subr.mxu0 0.0
    %706 = vmatpush1.xpose.msra.mxu0 0.0
    %707 = vmatprep.subr.mxu0 0.0
    %708 = vmatpush1.xpose.msra.mxu0 0.0
    %709 = vmatprep.subr.mxu0 0.0
    %710 = vmatpush1.xpose.msra.mxu0 0.0
    %711 = vmatprep.subr.mxu0 0.0
    %712 = vmatpush1.xpose.msra.mxu0 0.0
    %713 = vmatprep.subr.mxu0 0.0
    %714 = vmatpush1.xpose.msra.mxu0 0.0
    %715 = vmatprep.subr.mxu0 0.0
    %716 = vmatpush1.xpose.msra.mxu0 0.0
    %717 = vmatprep.subr.mxu0 0.0
    %718 = vmatpush1.xpose.msra.mxu0 0.0
    %719 = vmatprep.subr.mxu0 0.0
    %720 = vmatpush1.xpose.msra.mxu0 0.0
    %721 = vmatprep.subr.mxu0 0.0
    %722 = vmatpush1.xpose.msra.mxu0 0.0
    %723 = vmatprep.subr.mxu0 0.0
    %724 = vmatpush1.xpose.msra.mxu0 0.0
    %725 = vmatprep.subr.mxu0 0.0
    %726 = vmatpush1.xpose.msra.mxu0 0.0
    %727 = vmatprep.subr.mxu0 0.0
    %728 = vmatpush1.xpose.msra.mxu0 0.0
    %729 = vmatprep.subr.mxu0 0.0
    %730 = vmatpush1.xpose.msra.mxu0 0.0
    %731 = vmatprep.subr.mxu0 0.0
    %732 = vmatpush1.xpose.msra.mxu0 0.0
    %733 = vmatprep.subr.mxu0 0.0
    %734 = vmatpush1.xpose.msra.mxu0 0.0
    %735 = vmatprep.subr.mxu0 0.0
    %736 = vmatpush1.xpose.msra.mxu0 0.0
    %737 = vmatprep.subr.mxu0 0.0
    %738 = vmatpush1.xpose.msra.mxu0 0.0
    %739 = vmatprep.subr.mxu0 0.0
    %740 = vmatpush1.xpose.msra.mxu0 0.0
    %741 = vmatprep.subr.mxu0 0.0
    %742 = vmatpush1.xpose.msra.mxu0 0.0
    %743 = vmatprep.subr.mxu0 0.0
    %744 = vmatpush1.xpose.msra.mxu0 0.0
    %745 = vmatprep.subr.mxu0 0.0
    %746 = vmatpush1.xpose.msra.mxu0 0.0
    %747 = vmatprep.mubr.f32.mxu0 0.0
    %748 = vmatmul.mubr.f32.gmra.mrb[0].mxu0 %v679
    %v749 = vpop.f32.mrb[0].mxu0
    %v750 = vadd.f32 0.0, %v749
    %v751 = vpop.f32.mrb[0].mxu0
    %752 = vdwg.mxu0
    %753 = vrot.lane.b32.xlu0 %v337, 120
    %v754 = vpop.permute.xlu0 %753
    %755 = vrot.lane.b32.xlu0 %v337, 88
    %v756 = vpop.permute.xlu0 %755
    %v757 = vsel %vm345, %v754, 0
    %v759 = vsel %vm345, %v756, 0
    %761 = vmatprep.subr.mxu0 0.0
    %762 = vmatpush1.xpose.msra.mxu0 %v759
    %763 = vmatprep.subr.mxu0 0.0
    %764 = vmatpush1.xpose.msra.mxu0 0.0
    %765 = vmatprep.subr.mxu0 0.0
    %766 = vmatpush1.xpose.msra.mxu0 0.0
    %767 = vmatprep.subr.mxu0 0.0
    %768 = vmatpush1.xpose.msra.mxu0 0.0
    %769 = vmatprep.subr.mxu0 0.0
    %770 = vmatpush1.xpose.msra.mxu0 0.0
    %771 = vmatprep.subr.mxu0 0.0
    %772 = vmatpush1.xpose.msra.mxu0 0.0
    %773 = vmatprep.subr.mxu0 0.0
    %774 = vmatpush1.xpose.msra.mxu0 0.0
    %775 = vmatprep.subr.mxu0 0.0
    %776 = vmatpush1.xpose.msra.mxu0 0.0
    %777 = vmatprep.subr.mxu0 0.0
    %778 = vmatpush1.xpose.msra.mxu0 0.0
    %779 = vmatprep.subr.mxu0 0.0
    %780 = vmatpush1.xpose.msra.mxu0 0.0
    %781 = vmatprep.subr.mxu0 0.0
    %782 = vmatpush1.xpose.msra.mxu0 0.0
    %783 = vmatprep.subr.mxu0 0.0
    %784 = vmatpush1.xpose.msra.mxu0 0.0
    %785 = vmatprep.subr.mxu0 0.0
    %786 = vmatpush1.xpose.msra.mxu0 0.0
    %787 = vmatprep.subr.mxu0 0.0
    %788 = vmatpush1.xpose.msra.mxu0 0.0
    %789 = vmatprep.subr.mxu0 0.0
    %790 = vmatpush1.xpose.msra.mxu0 0.0
    %791 = vmatprep.subr.mxu0 0.0
    %792 = vmatpush1.xpose.msra.mxu0 0.0
    %793 = vmatprep.subr.mxu0 0.0
    %794 = vmatpush1.xpose.msra.mxu0 0.0
    %795 = vmatprep.subr.mxu0 0.0
    %796 = vmatpush1.xpose.msra.mxu0 0.0
    %797 = vmatprep.subr.mxu0 0.0
    %798 = vmatpush1.xpose.msra.mxu0 0.0
    %799 = vmatprep.subr.mxu0 0.0
    %800 = vmatpush1.xpose.msra.mxu0 0.0
    %801 = vmatprep.subr.mxu0 0.0
    %802 = vmatpush1.xpose.msra.mxu0 0.0
    %803 = vmatprep.subr.mxu0 0.0
    %804 = vmatpush1.xpose.msra.mxu0 0.0
    %805 = vmatprep.subr.mxu0 0.0
    %806 = vmatpush1.xpose.msra.mxu0 0.0
    %807 = vmatprep.subr.mxu0 0.0
    %808 = vmatpush1.xpose.msra.mxu0 0.0
    %809 = vmatprep.subr.mxu0 0.0
    %810 = vmatpush1.xpose.msra.mxu0 0.0
    %811 = vmatprep.subr.mxu0 0.0
    %812 = vmatpush1.xpose.msra.mxu0 0.0
    %813 = vmatprep.subr.mxu0 0.0
    %814 = vmatpush1.xpose.msra.mxu0 0.0
    %815 = vmatprep.subr.mxu0 0.0
    %816 = vmatpush1.xpose.msra.mxu0 0.0
    %817 = vmatprep.subr.mxu0 0.0
    %818 = vmatpush1.xpose.msra.mxu0 0.0
    %819 = vmatprep.subr.mxu0 0.0
    %820 = vmatpush1.xpose.msra.mxu0 0.0
    %821 = vmatprep.subr.mxu0 0.0
    %822 = vmatpush1.xpose.msra.mxu0 0.0
    %823 = vmatprep.subr.mxu0 0.0
    %824 = vmatpush1.xpose.msra.mxu0 0.0
    %825 = vmatprep.mubr.f32.mxu0 0.0
    %826 = vmatmul.mubr.f32.gmra.mrb[0].mxu0 %v757
    %v827 = vpop.f32.mrb[0].mxu0
    %v828 = vadd.f32 0.0, %v827
    %v829 = vpop.f32.mrb[0].mxu0
    %830 = vdwg.mxu0
    %v831 = vsel %vm497, %v750, -1e+09
    %v832 = vsel %vm498, %v828, -1e+09
    %v833 = vsel %vm345, %v831, -inf
    %834 = vmax.xlane.f32.xlu0 %v833
    %v835 = vpop.xlane.xlu0 %834
    %v836 = vsel %vm345, %v832, -inf
    %837 = vmax.xlane.f32.xlu0 %v836
    %v838 = vpop.xlane.xlu0 %837
    %v839 = vsub.f32 %v831, %v835
    %v840 = vsub.f32 %v832, %v838
    %v841 = vmul.f32 %v839, 1.442695
    %v842 = vpow.pop %v841
    %v843 = vmul.f32 %v840, 1.442695
    %v844 = vpow.pop %v843
    %v845 = vsel %vm345, %v842, 0.0
    %846 = vadd.xlane.f32.xlu0 %v845
    %v847 = vpop.xlane.xlu0 %846
    %v848 = vsel %vm345, %v844, 0.0
    %849 = vadd.xlane.f32.xlu0 %v848
    %v850 = vpop.xlane.xlu0 %849
    %v851 = vrcp.pop %v847
    %v852 = vrcp.pop %v850
    %v853 = vmul.f32 %v842, %v851
    %v854 = vmul.f32 %v844, %v852
    %855 = vrot.lane.b32.xlu0 %v332, 56
    %v856 = vpop.permute.xlu0 %855
    %v859 = vsel %vm345, %v853, 0
    %861 = vmatprep.subr.mxu0 0.0
    %862 = vmatpush1.msra.mxu0 %v856
    %863 = vmatprep.subr.mxu0 0.0
    %864 = vmatpush1.msra.mxu0 0.0
    %865 = vmatprep.subr.mxu0 0.0
    %866 = vmatpush1.msra.mxu0 0.0
    %867 = vmatprep.subr.mxu0 0.0
    %868 = vmatpush1.msra.mxu0 0.0
    %869 = vmatprep.subr.mxu0 0.0
    %870 = vmatpush1.msra.mxu0 0.0
    %871 = vmatprep.subr.mxu0 0.0
    %872 = vmatpush1.msra.mxu0 0.0
    %873 = vmatprep.subr.mxu0 0.0
    %874 = vmatpush1.msra.mxu0 0.0
    %875 = vmatprep.subr.mxu0 0.0
    %876 = vmatpush1.msra.mxu0 0.0
    %877 = vmatprep.subr.mxu0 0.0
    %878 = vmatpush1.msra.mxu0 0.0
    %879 = vmatprep.subr.mxu0 0.0
    %880 = vmatpush1.msra.mxu0 0.0
    %881 = vmatprep.subr.mxu0 0.0
    %882 = vmatpush1.msra.mxu0 0.0
    %883 = vmatprep.subr.mxu0 0.0
    %884 = vmatpush1.msra.mxu0 0.0
    %885 = vmatprep.subr.mxu0 0.0
    %886 = vmatpush1.msra.mxu0 0.0
    %887 = vmatprep.subr.mxu0 0.0
    %888 = vmatpush1.msra.mxu0 0.0
    %889 = vmatprep.subr.mxu0 0.0
    %890 = vmatpush1.msra.mxu0 0.0
    %891 = vmatprep.subr.mxu0 0.0
    %892 = vmatpush1.msra.mxu0 0.0
    %893 = vmatprep.subr.mxu0 0.0
    %894 = vmatpush1.msra.mxu0 0.0
    %895 = vmatprep.subr.mxu0 0.0
    %896 = vmatpush1.msra.mxu0 0.0
    %897 = vmatprep.subr.mxu0 0.0
    %898 = vmatpush1.msra.mxu0 0.0
    %899 = vmatprep.subr.mxu0 0.0
    %900 = vmatpush1.msra.mxu0 0.0
    %901 = vmatprep.subr.mxu0 0.0
    %902 = vmatpush1.msra.mxu0 0.0
    %903 = vmatprep.subr.mxu0 0.0
    %904 = vmatpush1.msra.mxu0 0.0
    %905 = vmatprep.subr.mxu0 0.0
    %906 = vmatpush1.msra.mxu0 0.0
    %907 = vmatprep.subr.mxu0 0.0
    %908 = vmatpush1.msra.mxu0 0.0
    %909 = vmatprep.subr.mxu0 0.0
    %910 = vmatpush1.msra.mxu0 0.0
    %911 = vmatprep.subr.mxu0 0.0
    %912 = vmatpush1.msra.mxu0 0.0
    %913 = vmatprep.subr.mxu0 0.0
    %914 = vmatpush1.msra.mxu0 0.0
    %915 = vmatprep.subr.mxu0 0.0
    %916 = vmatpush1.msra.mxu0 0.0
    %917 = vmatprep.subr.mxu0 0.0
    %918 = vmatpush1.msra.mxu0 0.0
    %919 = vmatprep.subr.mxu0 0.0
    %920 = vmatpush1.msra.mxu0 0.0
    %921 = vmatprep.subr.mxu0 0.0
    %922 = vmatpush1.msra.mxu0 0.0
    %923 = vmatprep.subr.mxu0 0.0
    %924 = vmatpush1.msra.mxu0 0.0
    %925 = vmatprep.mubr.f32.mxu0 0.0
    %926 = vmatmul.mubr.f32.gmra.mrb[0].mxu0 %v859
    %v927 = vpop.f32.mrb[0].mxu0
    %v928 = vadd.f32 0.0, %v927
    %v929 = vpop.f32.mrb[0].mxu0
    %930 = vdwg.mxu0
    %931 = vrot.lane.b32.xlu0 %v337, 56
    %v932 = vpop.permute.xlu0 %931
    %v935 = vsel %vm345, %v854, 0
    %937 = vmatprep.subr.mxu0 0.0
    %938 = vmatpush1.msra.mxu0 %v932
    %939 = vmatprep.subr.mxu0 0.0
    %940 = vmatpush1.msra.mxu0 0.0
    %941 = vmatprep.subr.mxu0 0.0
    %942 = vmatpush1.msra.mxu0 0.0
    %943 = vmatprep.subr.mxu0 0.0
    %944 = vmatpush1.msra.mxu0 0.0
    %945 = vmatprep.subr.mxu0 0.0
    %946 = vmatpush1.msra.mxu0 0.0
    %947 = vmatprep.subr.mxu0 0.0
    %948 = vmatpush1.msra.mxu0 0.0
    %949 = vmatprep.subr.mxu0 0.0
    %950 = vmatpush1.msra.mxu0 0.0
    %951 = vmatprep.subr.mxu0 0.0
    %952 = vmatpush1.msra.mxu0 0.0
    %953 = vmatprep.subr.mxu0 0.0
    %954 = vmatpush1.msra.mxu0 0.0
    %955 = vmatprep.subr.mxu0 0.0
    %956 = vmatpush1.msra.mxu0 0.0
    %957 = vmatprep.subr.mxu0 0.0
    %958 = vmatpush1.msra.mxu0 0.0
    %959 = vmatprep.subr.mxu0 0.0
    %960 = vmatpush1.msra.mxu0 0.0
    %961 = vmatprep.subr.mxu0 0.0
    %962 = vmatpush1.msra.mxu0 0.0
    %963 = vmatprep.subr.mxu0 0.0
    %964 = vmatpush1.msra.mxu0 0.0
    %965 = vmatprep.subr.mxu0 0.0
    %966 = vmatpush1.msra.mxu0 0.0
    %967 = vmatprep.subr.mxu0 0.0
    %968 = vmatpush1.msra.mxu0 0.0
    %969 = vmatprep.subr.mxu0 0.0
    %970 = vmatpush1.msra.mxu0 0.0
    %971 = vmatprep.subr.mxu0 0.0
    %972 = vmatpush1.msra.mxu0 0.0
    %973 = vmatprep.subr.mxu0 0.0
    %974 = vmatpush1.msra.mxu0 0.0
    %975 = vmatprep.subr.mxu0 0.0
    %976 = vmatpush1.msra.mxu0 0.0
    %977 = vmatprep.subr.mxu0 0.0
    %978 = vmatpush1.msra.mxu0 0.0
    %979 = vmatprep.subr.mxu0 0.0
    %980 = vmatpush1.msra.mxu0 0.0
    %981 = vmatprep.subr.mxu0 0.0
    %982 = vmatpush1.msra.mxu0 0.0
    %983 = vmatprep.subr.mxu0 0.0
    %984 = vmatpush1.msra.mxu0 0.0
    %985 = vmatprep.subr.mxu0 0.0
    %986 = vmatpush1.msra.mxu0 0.0
    %987 = vmatprep.subr.mxu0 0.0
    %988 = vmatpush1.msra.mxu0 0.0
    %989 = vmatprep.subr.mxu0 0.0
    %990 = vmatpush1.msra.mxu0 0.0
    %991 = vmatprep.subr.mxu0 0.0
    %992 = vmatpush1.msra.mxu0 0.0
    %993 = vmatprep.subr.mxu0 0.0
    %994 = vmatpush1.msra.mxu0 0.0
    %995 = vmatprep.subr.mxu0 0.0
    %996 = vmatpush1.msra.mxu0 0.0
    %997 = vmatprep.subr.mxu0 0.0
    %998 = vmatpush1.msra.mxu0 0.0
    %999 = vmatprep.subr.mxu0 0.0
    %1000 = vmatpush1.msra.mxu0 0.0
    %1001 = vmatprep.mubr.f32.mxu0 0.0
    %1002 = vmatmul.mubr.f32.gmra.mrb[0].mxu0 %v935
    %v1003 = vpop.f32.mrb[0].mxu0
    %v1004 = vadd.f32 0.0, %v1003
    %v1005 = vpop.f32.mrb[0].mxu0
    %1006 = vdwg.mxu0
    %1007 = vrot.lane.b32.xlu0 %v332, 112
    %v1008 = vpop.permute.xlu0 %1007
    %1009 = vrot.lane.b32.xlu0 %v332, 80
    %v1010 = vpop.permute.xlu0 %1009
    %v1011 = vsel %vm345, %v1008, 0
    %v1013 = vsel %vm345, %v1010, 0
    %1015 = vmatprep.subr.mxu0 0.0
    %1016 = vmatpush1.xpose.msra.mxu0 %v1013
    %1017 = vmatprep.subr.mxu0 0.0
    %1018 = vmatpush1.xpose.msra.mxu0 0.0
    %1019 = vmatprep.subr.mxu0 0.0
    %1020 = vmatpush1.xpose.msra.mxu0 0.0
    %1021 = vmatprep.subr.mxu0 0.0
    %1022 = vmatpush1.xpose.msra.mxu0 0.0
    %1023 = vmatprep.subr.mxu0 0.0
    %1024 = vmatpush1.xpose.msra.mxu0 0.0
    %1025 = vmatprep.subr.mxu0 0.0
    %1026 = vmatpush1.xpose.msra.mxu0 0.0
    %1027 = vmatprep.subr.mxu0 0.0
    %1028 = vmatpush1.xpose.msra.mxu0 0.0
    %1029 = vmatprep.subr.mxu0 0.0
    %1030 = vmatpush1.xpose.msra.mxu0 0.0
    %1031 = vmatprep.subr.mxu0 0.0
    %1032 = vmatpush1.xpose.msra.mxu0 0.0
    %1033 = vmatprep.subr.mxu0 0.0
    %1034 = vmatpush1.xpose.msra.mxu0 0.0
    %1035 = vmatprep.subr.mxu0 0.0
    %1036 = vmatpush1.xpose.msra.mxu0 0.0
    %1037 = vmatprep.subr.mxu0 0.0
    %1038 = vmatpush1.xpose.msra.mxu0 0.0
    %1039 = vmatprep.subr.mxu0 0.0
    %1040 = vmatpush1.xpose.msra.mxu0 0.0
    %1041 = vmatprep.subr.mxu0 0.0
    %1042 = vmatpush1.xpose.msra.mxu0 0.0
    %1043 = vmatprep.subr.mxu0 0.0
    %1044 = vmatpush1.xpose.msra.mxu0 0.0
    %1045 = vmatprep.subr.mxu0 0.0
    %1046 = vmatpush1.xpose.msra.mxu0 0.0
    %1047 = vmatprep.subr.mxu0 0.0
    %1048 = vmatpush1.xpose.msra.mxu0 0.0
    %1049 = vmatprep.subr.mxu0 0.0
    %1050 = vmatpush1.xpose.msra.mxu0 0.0
    %1051 = vmatprep.subr.mxu0 0.0
    %1052 = vmatpush1.xpose.msra.mxu0 0.0
    %1053 = vmatprep.subr.mxu0 0.0
    %1054 = vmatpush1.xpose.msra.mxu0 0.0
    %1055 = vmatprep.subr.mxu0 0.0
    %1056 = vmatpush1.xpose.msra.mxu0 0.0
    %1057 = vmatprep.subr.mxu0 0.0
    %1058 = vmatpush1.xpose.msra.mxu0 0.0
    %1059 = vmatprep.subr.mxu0 0.0
    %1060 = vmatpush1.xpose.msra.mxu0 0.0
    %1061 = vmatprep.subr.mxu0 0.0
    %1062 = vmatpush1.xpose.msra.mxu0 0.0
    %1063 = vmatprep.subr.mxu0 0.0
    %1064 = vmatpush1.xpose.msra.mxu0 0.0
    %1065 = vmatprep.subr.mxu0 0.0
    %1066 = vmatpush1.xpose.msra.mxu0 0.0
    %1067 = vmatprep.subr.mxu0 0.0
    %1068 = vmatpush1.xpose.msra.mxu0 0.0
    %1069 = vmatprep.subr.mxu0 0.0
    %1070 = vmatpush1.xpose.msra.mxu0 0.0
    %1071 = vmatprep.subr.mxu0 0.0
    %1072 = vmatpush1.xpose.msra.mxu0 0.0
    %1073 = vmatprep.subr.mxu0 0.0
    %1074 = vmatpush1.xpose.msra.mxu0 0.0
    %1075 = vmatprep.subr.mxu0 0.0
    %1076 = vmatpush1.xpose.msra.mxu0 0.0
    %1077 = vmatprep.subr.mxu0 0.0
    %1078 = vmatpush1.xpose.msra.mxu0 0.0
    %1079 = vmatprep.mubr.f32.mxu0 0.0
    %1080 = vmatmul.mubr.f32.gmra.mrb[0].mxu0 %v1011
    %v1081 = vpop.f32.mrb[0].mxu0
    %v1082 = vadd.f32 0.0, %v1081
    %v1083 = vpop.f32.mrb[0].mxu0
    %1084 = vdwg.mxu0
    %1085 = vrot.lane.b32.xlu0 %v337, 112
    %v1086 = vpop.permute.xlu0 %1085
    %1087 = vrot.lane.b32.xlu0 %v337, 80
    %v1088 = vpop.permute.xlu0 %1087
    %v1089 = vsel %vm345, %v1086, 0
    %v1091 = vsel %vm345, %v1088, 0
    %1093 = vmatprep.subr.mxu0 0.0
    %1094 = vmatpush1.xpose.msra.mxu0 %v1091
    %1095 = vmatprep.subr.mxu0 0.0
    %1096 = vmatpush1.xpose.msra.mxu0 0.0
    %1097 = vmatprep.subr.mxu0 0.0
    %1098 = vmatpush1.xpose.msra.mxu0 0.0
    %1099 = vmatprep.subr.mxu0 0.0
    %1100 = vmatpush1.xpose.msra.mxu0 0.0
    %1101 = vmatprep.subr.mxu0 0.0
    %1102 = vmatpush1.xpose.msra.mxu0 0.0
    %1103 = vmatprep.subr.mxu0 0.0
    %1104 = vmatpush1.xpose.msra.mxu0 0.0
    %1105 = vmatprep.subr.mxu0 0.0
    %1106 = vmatpush1.xpose.msra.mxu0 0.0
    %1107 = vmatprep.subr.mxu0 0.0
    %1108 = vmatpush1.xpose.msra.mxu0 0.0
    %1109 = vmatprep.subr.mxu0 0.0
    %1110 = vmatpush1.xpose.msra.mxu0 0.0
    %1111 = vmatprep.subr.mxu0 0.0
    %1112 = vmatpush1.xpose.msra.mxu0 0.0
    %1113 = vmatprep.subr.mxu0 0.0
    %1114 = vmatpush1.xpose.msra.mxu0 0.0
    %1115 = vmatprep.subr.mxu0 0.0
    %1116 = vmatpush1.xpose.msra.mxu0 0.0
    %1117 = vmatprep.subr.mxu0 0.0
    %1118 = vmatpush1.xpose.msra.mxu0 0.0
    %1119 = vmatprep.subr.mxu0 0.0
    %1120 = vmatpush1.xpose.msra.mxu0 0.0
    %1121 = vmatprep.subr.mxu0 0.0
    %1122 = vmatpush1.xpose.msra.mxu0 0.0
    %1123 = vmatprep.subr.mxu0 0.0
    %1124 = vmatpush1.xpose.msra.mxu0 0.0
    %1125 = vmatprep.subr.mxu0 0.0
    %1126 = vmatpush1.xpose.msra.mxu0 0.0
    %1127 = vmatprep.subr.mxu0 0.0
    %1128 = vmatpush1.xpose.msra.mxu0 0.0
    %1129 = vmatprep.subr.mxu0 0.0
    %1130 = vmatpush1.xpose.msra.mxu0 0.0
    %1131 = vmatprep.subr.mxu0 0.0
    %1132 = vmatpush1.xpose.msra.mxu0 0.0
    %1133 = vmatprep.subr.mxu0 0.0
    %1134 = vmatpush1.xpose.msra.mxu0 0.0
    %1135 = vmatprep.subr.mxu0 0.0
    %1136 = vmatpush1.xpose.msra.mxu0 0.0
    %1137 = vmatprep.subr.mxu0 0.0
    %1138 = vmatpush1.xpose.msra.mxu0 0.0
    %1139 = vmatprep.subr.mxu0 0.0
    %1140 = vmatpush1.xpose.msra.mxu0 0.0
    %1141 = vmatprep.subr.mxu0 0.0
    %1142 = vmatpush1.xpose.msra.mxu0 0.0
    %1143 = vmatprep.subr.mxu0 0.0
    %1144 = vmatpush1.xpose.msra.mxu0 0.0
    %1145 = vmatprep.subr.mxu0 0.0
    %1146 = vmatpush1.xpose.msra.mxu0 0.0
    %1147 = vmatprep.subr.mxu0 0.0
    %1148 = vmatpush1.xpose.msra.mxu0 0.0
    %1149 = vmatprep.subr.mxu0 0.0
    %1150 = vmatpush1.xpose.msra.mxu0 0.0
    %1151 = vmatprep.subr.mxu0 0.0
    %1152 = vmatpush1.xpose.msra.mxu0 0.0
    %1153 = vmatprep.subr.mxu0 0.0
    %1154 = vmatpush1.xpose.msra.mxu0 0.0
    %1155 = vmatprep.subr.mxu0 0.0
    %1156 = vmatpush1.xpose.msra.mxu0 0.0
    %1157 = vmatprep.mubr.f32.mxu0 0.0
    %1158 = vmatmul.mubr.f32.gmra.mrb[0].mxu0 %v1089
    %v1159 = vpop.f32.mrb[0].mxu0
    %v1160 = vadd.f32 0.0, %v1159
    %v1161 = vpop.f32.mrb[0].mxu0
    %1162 = vdwg.mxu0
    %v1163 = vsel %vm497, %v1082, -1e+09
    %v1164 = vsel %vm498, %v1160, -1e+09
    %v1165 = vsel %vm345, %v1163, -inf
    %1166 = vmax.xlane.f32.xlu0 %v1165
    %v1167 = vpop.xlane.xlu0 %1166
    %v1168 = vsel %vm345, %v1164, -inf
    %1169 = vmax.xlane.f32.xlu0 %v1168
    %v1170 = vpop.xlane.xlu0 %1169
    %v1171 = vsub.f32 %v1163, %v1167
    %v1172 = vsub.f32 %v1164, %v1170
    %v1173 = vmul.f32 %v1171, 1.442695
    %v1174 = vpow.pop %v1173
    %v1175 = vmul.f32 %v1172, 1.442695
    %v1176 = vpow.pop %v1175
    %v1177 = vsel %vm345, %v1174, 0.0
    %1178 = vadd.xlane.f32.xlu0 %v1177
    %v1179 = vpop.xlane.xlu0 %1178
    %v1180 = vsel %vm345, %v1176, 0.0
    %1181 = vadd.xlane.f32.xlu0 %v1180
    %v1182 = vpop.xlane.xlu0 %1181
    %v1183 = vrcp.pop %v1179
    %v1184 = vrcp.pop %v1182
    %v1185 = vmul.f32 %v1174, %v1183
    %v1186 = vmul.f32 %v1176, %v1184
    %1187 = vrot.lane.b32.xlu0 %v332, 48
    %v1188 = vpop.permute.xlu0 %1187
    %v1191 = vsel %vm345, %v1185, 0
    %1193 = vmatprep.subr.mxu0 0.0
    %1194 = vmatpush1.msra.mxu0 %v1188
    %1195 = vmatprep.subr.mxu0 0.0
    %1196 = vmatpush1.msra.mxu0 0.0
    %1197 = vmatprep.subr.mxu0 0.0
    %1198 = vmatpush1.msra.mxu0 0.0
    %1199 = vmatprep.subr.mxu0 0.0
    %1200 = vmatpush1.msra.mxu0 0.0
    %1201 = vmatprep.subr.mxu0 0.0
    %1202 = vmatpush1.msra.mxu0 0.0
    %1203 = vmatprep.subr.mxu0 0.0
    %1204 = vmatpush1.msra.mxu0 0.0
    %1205 = vmatprep.subr.mxu0 0.0
    %1206 = vmatpush1.msra.mxu0 0.0
    %1207 = vmatprep.subr.mxu0 0.0
    %1208 = vmatpush1.msra.mxu0 0.0
    %1209 = vmatprep.subr.mxu0 0.0
    %1210 = vmatpush1.msra.mxu0 0.0
    %1211 = vmatprep.subr.mxu0 0.0
    %1212 = vmatpush1.msra.mxu0 0.0
    %1213 = vmatprep.subr.mxu0 0.0
    %1214 = vmatpush1.msra.mxu0 0.0
    %1215 = vmatprep.subr.mxu0 0.0
    %1216 = vmatpush1.msra.mxu0 0.0
    %1217 = vmatprep.subr.mxu0 0.0
    %1218 = vmatpush1.msra.mxu0 0.0
    %1219 = vmatprep.subr.mxu0 0.0
    %1220 = vmatpush1.msra.mxu0 0.0
    %1221 = vmatprep.subr.mxu0 0.0
    %1222 = vmatpush1.msra.mxu0 0.0
    %1223 = vmatprep.subr.mxu0 0.0
    %1224 = vmatpush1.msra.mxu0 0.0
    %1225 = vmatprep.subr.mxu0 0.0
    %1226 = vmatpush1.msra.mxu0 0.0
    %1227 = vmatprep.subr.mxu0 0.0
    %1228 = vmatpush1.msra.mxu0 0.0
    %1229 = vmatprep.subr.mxu0 0.0
    %1230 = vmatpush1.msra.mxu0 0.0
    %1231 = vmatprep.subr.mxu0 0.0
    %1232 = vmatpush1.msra.mxu0 0.0
    %1233 = vmatprep.subr.mxu0 0.0
    %1234 = vmatpush1.msra.mxu0 0.0
    %1235 = vmatprep.subr.mxu0 0.0
    %1236 = vmatpush1.msra.mxu0 0.0
    %1237 = vmatprep.subr.mxu0 0.0
    %1238 = vmatpush1.msra.mxu0 0.0
    %1239 = vmatprep.subr.mxu0 0.0
    %1240 = vmatpush1.msra.mxu0 0.0
    %1241 = vmatprep.subr.mxu0 0.0
    %1242 = vmatpush1.msra.mxu0 0.0
    %1243 = vmatprep.subr.mxu0 0.0
    %1244 = vmatpush1.msra.mxu0 0.0
    %1245 = vmatprep.subr.mxu0 0.0
    %1246 = vmatpush1.msra.mxu0 0.0
    %1247 = vmatprep.subr.mxu0 0.0
    %1248 = vmatpush1.msra.mxu0 0.0
    %1249 = vmatprep.subr.mxu0 0.0
    %1250 = vmatpush1.msra.mxu0 0.0
    %1251 = vmatprep.subr.mxu0 0.0
    %1252 = vmatpush1.msra.mxu0 0.0
    %1253 = vmatprep.subr.mxu0 0.0
    %1254 = vmatpush1.msra.mxu0 0.0
    %1255 = vmatprep.subr.mxu0 0.0
    %1256 = vmatpush1.msra.mxu0 0.0
    %1257 = vmatprep.mubr.f32.mxu0 0.0
    %1258 = vmatmul.mubr.f32.gmra.mrb[0].mxu0 %v1191
    %v1259 = vpop.f32.mrb[0].mxu0
    %v1260 = vadd.f32 0.0, %v1259
    %v1261 = vpop.f32.mrb[0].mxu0
    %1262 = vdwg.mxu0
    %1263 = vrot.lane.b32.xlu0 %v337, 48
    %v1264 = vpop.permute.xlu0 %1263
    %v1267 = vsel %vm345, %v1186, 0
    %1269 = vmatprep.subr.mxu0 0.0
    %1270 = vmatpush1.msra.mxu0 %v1264
    %1271 = vmatprep.subr.mxu0 0.0
    %1272 = vmatpush1.msra.mxu0 0.0
    %1273 = vmatprep.subr.mxu0 0.0
    %1274 = vmatpush1.msra.mxu0 0.0
    %1275 = vmatprep.subr.mxu0 0.0
    %1276 = vmatpush1.msra.mxu0 0.0
    %1277 = vmatprep.subr.mxu0 0.0
    %1278 = vmatpush1.msra.mxu0 0.0
    %1279 = vmatprep.subr.mxu0 0.0
    %1280 = vmatpush1.msra.mxu0 0.0
    %1281 = vmatprep.subr.mxu0 0.0
    %1282 = vmatpush1.msra.mxu0 0.0
    %1283 = vmatprep.subr.mxu0 0.0
    %1284 = vmatpush1.msra.mxu0 0.0
    %1285 = vmatprep.subr.mxu0 0.0
    %1286 = vmatpush1.msra.mxu0 0.0
    %1287 = vmatprep.subr.mxu0 0.0
    %1288 = vmatpush1.msra.mxu0 0.0
    %1289 = vmatprep.subr.mxu0 0.0
    %1290 = vmatpush1.msra.mxu0 0.0
    %1291 = vmatprep.subr.mxu0 0.0
    %1292 = vmatpush1.msra.mxu0 0.0
    %1293 = vmatprep.subr.mxu0 0.0
    %1294 = vmatpush1.msra.mxu0 0.0
    %1295 = vmatprep.subr.mxu0 0.0
    %1296 = vmatpush1.msra.mxu0 0.0
    %1297 = vmatprep.subr.mxu0 0.0
    %1298 = vmatpush1.msra.mxu0 0.0
    %1299 = vmatprep.subr.mxu0 0.0
    %1300 = vmatpush1.msra.mxu0 0.0
    %1301 = vmatprep.subr.mxu0 0.0
    %1302 = vmatpush1.msra.mxu0 0.0
    %1303 = vmatprep.subr.mxu0 0.0
    %1304 = vmatpush1.msra.mxu0 0.0
    %1305 = vmatprep.subr.mxu0 0.0
    %1306 = vmatpush1.msra.mxu0 0.0
    %1307 = vmatprep.subr.mxu0 0.0
    %1308 = vmatpush1.msra.mxu0 0.0
    %1309 = vmatprep.subr.mxu0 0.0
    %1310 = vmatpush1.msra.mxu0 0.0
    %1311 = vmatprep.subr.mxu0 0.0
    %1312 = vmatpush1.msra.mxu0 0.0
    %1313 = vmatprep.subr.mxu0 0.0
    %1314 = vmatpush1.msra.mxu0 0.0
    %1315 = vmatprep.subr.mxu0 0.0
    %1316 = vmatpush1.msra.mxu0 0.0
    %1317 = vmatprep.subr.mxu0 0.0
    %1318 = vmatpush1.msra.mxu0 0.0
    %1319 = vmatprep.subr.mxu0 0.0
    %1320 = vmatpush1.msra.mxu0 0.0
    %1321 = vmatprep.subr.mxu0 0.0
    %1322 = vmatpush1.msra.mxu0 0.0
    %1323 = vmatprep.subr.mxu0 0.0
    %1324 = vmatpush1.msra.mxu0 0.0
    %1325 = vmatprep.subr.mxu0 0.0
    %1326 = vmatpush1.msra.mxu0 0.0
    %1327 = vmatprep.subr.mxu0 0.0
    %1328 = vmatpush1.msra.mxu0 0.0
    %1329 = vmatprep.subr.mxu0 0.0
    %1330 = vmatpush1.msra.mxu0 0.0
    %1331 = vmatprep.subr.mxu0 0.0
    %1332 = vmatpush1.msra.mxu0 0.0
    %1333 = vmatprep.mubr.f32.mxu0 0.0
    %1334 = vmatmul.mubr.f32.gmra.mrb[0].mxu0 %v1267
    %v1335 = vpop.f32.mrb[0].mxu0
    %v1336 = vadd.f32 0.0, %v1335
    %v1337 = vpop.f32.mrb[0].mxu0
    %1338 = vdwg.mxu0
    %1339 = vrot.lane.b32.xlu0 %v332, 104
    %v1340 = vpop.permute.xlu0 %1339
    %1341 = vrot.lane.b32.xlu0 %v332, 72
    %v1342 = vpop.permute.xlu0 %1341
    %v1343 = vsel %vm345, %v1340, 0
    %v1345 = vsel %vm345, %v1342, 0
    %1347 = vmatprep.subr.mxu0 0.0
    %1348 = vmatpush1.xpose.msra.mxu0 %v1345
    %1349 = vmatprep.subr.mxu0 0.0
    %1350 = vmatpush1.xpose.msra.mxu0 0.0
    %1351 = vmatprep.subr.mxu0 0.0
    %1352 = vmatpush1.xpose.msra.mxu0 0.0
    %1353 = vmatprep.subr.mxu0 0.0
    %1354 = vmatpush1.xpose.msra.mxu0 0.0
    %1355 = vmatprep.subr.mxu0 0.0
    %1356 = vmatpush1.xpose.msra.mxu0 0.0
    %1357 = vmatprep.subr.mxu0 0.0
    %1358 = vmatpush1.xpose.msra.mxu0 0.0
    %1359 = vmatprep.subr.mxu0 0.0
    %1360 = vmatpush1.xpose.msra.mxu0 0.0
    %1361 = vmatprep.subr.mxu0 0.0
    %1362 = vmatpush1.xpose.msra.mxu0 0.0
    %1363 = vmatprep.subr.mxu0 0.0
    %1364 = vmatpush1.xpose.msra.mxu0 0.0
    %1365 = vmatprep.subr.mxu0 0.0
    %1366 = vmatpush1.xpose.msra.mxu0 0.0
    %1367 = vmatprep.subr.mxu0 0.0
    %1368 = vmatpush1.xpose.msra.mxu0 0.0
    %1369 = vmatprep.subr.mxu0 0.0
    %1370 = vmatpush1.xpose.msra.mxu0 0.0
    %1371 = vmatprep.subr.mxu0 0.0
    %1372 = vmatpush1.xpose.msra.mxu0 0.0
    %1373 = vmatprep.subr.mxu0 0.0
    %1374 = vmatpush1.xpose.msra.mxu0 0.0
    %1375 = vmatprep.subr.mxu0 0.0
    %1376 = vmatpush1.xpose.msra.mxu0 0.0
    %1377 = vmatprep.subr.mxu0 0.0
    %1378 = vmatpush1.xpose.msra.mxu0 0.0
    %1379 = vmatprep.subr.mxu0 0.0
    %1380 = vmatpush1.xpose.msra.mxu0 0.0
    %1381 = vmatprep.subr.mxu0 0.0
    %1382 = vmatpush1.xpose.msra.mxu0 0.0
    %1383 = vmatprep.subr.mxu0 0.0
    %1384 = vmatpush1.xpose.msra.mxu0 0.0
    %1385 = vmatprep.subr.mxu0 0.0
    %1386 = vmatpush1.xpose.msra.mxu0 0.0
    %1387 = vmatprep.subr.mxu0 0.0
    %1388 = vmatpush1.xpose.msra.mxu0 0.0
    %1389 = vmatprep.subr.mxu0 0.0
    %1390 = vmatpush1.xpose.msra.mxu0 0.0
    %1391 = vmatprep.subr.mxu0 0.0
    %1392 = vmatpush1.xpose.msra.mxu0 0.0
    %1393 = vmatprep.subr.mxu0 0.0
    %1394 = vmatpush1.xpose.msra.mxu0 0.0
    %1395 = vmatprep.subr.mxu0 0.0
    %1396 = vmatpush1.xpose.msra.mxu0 0.0
    %1397 = vmatprep.subr.mxu0 0.0
    %1398 = vmatpush1.xpose.msra.mxu0 0.0
    %1399 = vmatprep.subr.mxu0 0.0
    %1400 = vmatpush1.xpose.msra.mxu0 0.0
    %1401 = vmatprep.subr.mxu0 0.0
    %1402 = vmatpush1.xpose.msra.mxu0 0.0
    %1403 = vmatprep.subr.mxu0 0.0
    %1404 = vmatpush1.xpose.msra.mxu0 0.0
    %1405 = vmatprep.subr.mxu0 0.0
    %1406 = vmatpush1.xpose.msra.mxu0 0.0
    %1407 = vmatprep.subr.mxu0 0.0
    %1408 = vmatpush1.xpose.msra.mxu0 0.0
    %1409 = vmatprep.subr.mxu0 0.0
    %1410 = vmatpush1.xpose.msra.mxu0 0.0
    %1411 = vmatprep.mubr.f32.mxu0 0.0
    %1412 = vmatmul.mubr.f32.gmra.mrb[0].mxu0 %v1343
    %v1413 = vpop.f32.mrb[0].mxu0
    %v1414 = vadd.f32 0.0, %v1413
    %v1415 = vpop.f32.mrb[0].mxu0
    %1416 = vdwg.mxu0
    %1417 = vrot.lane.b32.xlu0 %v337, 104
    %v1418 = vpop.permute.xlu0 %1417
    %1419 = vrot.lane.b32.xlu0 %v337, 72
    %v1420 = vpop.permute.xlu0 %1419
    %v1421 = vsel %vm345, %v1418, 0
    %v1423 = vsel %vm345, %v1420, 0
    %1425 = vmatprep.subr.mxu0 0.0
    %1426 = vmatpush1.xpose.msra.mxu0 %v1423
    %1427 = vmatprep.subr.mxu0 0.0
    %1428 = vmatpush1.xpose.msra.mxu0 0.0
    %1429 = vmatprep.subr.mxu0 0.0
    %1430 = vmatpush1.xpose.msra.mxu0 0.0
    %1431 = vmatprep.subr.mxu0 0.0
    %1432 = vmatpush1.xpose.msra.mxu0 0.0
    %1433 = vmatprep.subr.mxu0 0.0
    %1434 = vmatpush1.xpose.msra.mxu0 0.0
    %1435 = vmatprep.subr.mxu0 0.0
    %1436 = vmatpush1.xpose.msra.mxu0 0.0
    %1437 = vmatprep.subr.mxu0 0.0
    %1438 = vmatpush1.xpose.msra.mxu0 0.0
    %1439 = vmatprep.subr.mxu0 0.0
    %1440 = vmatpush1.xpose.msra.mxu0 0.0
    %1441 = vmatprep.subr.mxu0 0.0
    %1442 = vmatpush1.xpose.msra.mxu0 0.0
    %1443 = vmatprep.subr.mxu0 0.0
    %1444 = vmatpush1.xpose.msra.mxu0 0.0
    %1445 = vmatprep.subr.mxu0 0.0
    %1446 = vmatpush1.xpose.msra.mxu0 0.0
    %1447 = vmatprep.subr.mxu0 0.0
    %1448 = vmatpush1.xpose.msra.mxu0 0.0
    %1449 = vmatprep.subr.mxu0 0.0
    %1450 = vmatpush1.xpose.msra.mxu0 0.0
    %1451 = vmatprep.subr.mxu0 0.0
    %1452 = vmatpush1.xpose.msra.mxu0 0.0
    %1453 = vmatprep.subr.mxu0 0.0
    %1454 = vmatpush1.xpose.msra.mxu0 0.0
    %1455 = vmatprep.subr.mxu0 0.0
    %1456 = vmatpush1.xpose.msra.mxu0 0.0
    %1457 = vmatprep.subr.mxu0 0.0
    %1458 = vmatpush1.xpose.msra.mxu0 0.0
    %1459 = vmatprep.subr.mxu0 0.0
    %1460 = vmatpush1.xpose.msra.mxu0 0.0
    %1461 = vmatprep.subr.mxu0 0.0
    %1462 = vmatpush1.xpose.msra.mxu0 0.0
    %1463 = vmatprep.subr.mxu0 0.0
    %1464 = vmatpush1.xpose.msra.mxu0 0.0
    %1465 = vmatprep.subr.mxu0 0.0
    %1466 = vmatpush1.xpose.msra.mxu0 0.0
    %1467 = vmatprep.subr.mxu0 0.0
    %1468 = vmatpush1.xpose.msra.mxu0 0.0
    %1469 = vmatprep.subr.mxu0 0.0
    %1470 = vmatpush1.xpose.msra.mxu0 0.0
    %1471 = vmatprep.subr.mxu0 0.0
    %1472 = vmatpush1.xpose.msra.mxu0 0.0
    %1473 = vmatprep.subr.mxu0 0.0
    %1474 = vmatpush1.xpose.msra.mxu0 0.0
    %1475 = vmatprep.subr.mxu0 0.0
    %1476 = vmatpush1.xpose.msra.mxu0 0.0
    %1477 = vmatprep.subr.mxu0 0.0
    %1478 = vmatpush1.xpose.msra.mxu0 0.0
    %1479 = vmatprep.subr.mxu0 0.0
    %1480 = vmatpush1.xpose.msra.mxu0 0.0
    %1481 = vmatprep.subr.mxu0 0.0
    %1482 = vmatpush1.xpose.msra.mxu0 0.0
    %1483 = vmatprep.subr.mxu0 0.0
    %1484 = vmatpush1.xpose.msra.mxu0 0.0
    %1485 = vmatprep.subr.mxu0 0.0
    %1486 = vmatpush1.xpose.msra.mxu0 0.0
    %1487 = vmatprep.subr.mxu0 0.0
    %1488 = vmatpush1.xpose.msra.mxu0 0.0
    %1489 = vmatprep.mubr.f32.mxu0 0.0
    %1490 = vmatmul.mubr.f32.gmra.mrb[0].mxu0 %v1421
    %v1491 = vpop.f32.mrb[0].mxu0
    %v1492 = vadd.f32 0.0, %v1491
    %v1493 = vpop.f32.mrb[0].mxu0
    %1494 = vdwg.mxu0
    %v1495 = vsel %vm497, %v1414, -1e+09
    %v1496 = vsel %vm498, %v1492, -1e+09
    %v1497 = vsel %vm345, %v1495, -inf
    %1498 = vmax.xlane.f32.xlu0 %v1497
    %v1499 = vpop.xlane.xlu0 %1498
    %v1500 = vsel %vm345, %v1496, -inf
    %1501 = vmax.xlane.f32.xlu0 %v1500
    %v1502 = vpop.xlane.xlu0 %1501
    %v1503 = vsub.f32 %v1495, %v1499
    %v1504 = vsub.f32 %v1496, %v1502
    %v1505 = vmul.f32 %v1503, 1.442695
    %v1506 = vpow.pop %v1505
    %v1507 = vmul.f32 %v1504, 1.442695
    %v1508 = vpow.pop %v1507
    %v1509 = vsel %vm345, %v1506, 0.0
    %1510 = vadd.xlane.f32.xlu0 %v1509
    %v1511 = vpop.xlane.xlu0 %1510
    %v1512 = vsel %vm345, %v1508, 0.0
    %1513 = vadd.xlane.f32.xlu0 %v1512
    %v1514 = vpop.xlane.xlu0 %1513
    %v1515 = vrcp.pop %v1511
    %v1516 = vrcp.pop %v1514
    %v1517 = vmul.f32 %v1506, %v1515
    %v1518 = vmul.f32 %v1508, %v1516
    %1519 = vrot.lane.b32.xlu0 %v332, 40
    %v1520 = vpop.permute.xlu0 %1519
    %v1523 = vsel %vm345, %v1517, 0
    %1525 = vmatprep.subr.mxu0 0.0
    %1526 = vmatpush1.msra.mxu0 %v1520
    %1527 = vmatprep.subr.mxu0 0.0
    %1528 = vmatpush1.msra.mxu0 0.0
    %1529 = vmatprep.subr.mxu0 0.0
    %1530 = vmatpush1.msra.mxu0 0.0
    %1531 = vmatprep.subr.mxu0 0.0
    %1532 = vmatpush1.msra.mxu0 0.0
    %1533 = vmatprep.subr.mxu0 0.0
    %1534 = vmatpush1.msra.mxu0 0.0
    %1535 = vmatprep.subr.mxu0 0.0
    %1536 = vmatpush1.msra.mxu0 0.0
    %1537 = vmatprep.subr.mxu0 0.0
    %1538 = vmatpush1.msra.mxu0 0.0
    %1539 = vmatprep.subr.mxu0 0.0
    %1540 = vmatpush1.msra.mxu0 0.0
    %1541 = vmatprep.subr.mxu0 0.0
    %1542 = vmatpush1.msra.mxu0 0.0
    %1543 = vmatprep.subr.mxu0 0.0
    %1544 = vmatpush1.msra.mxu0 0.0
    %1545 = vmatprep.subr.mxu0 0.0
    %1546 = vmatpush1.msra.mxu0 0.0
    %1547 = vmatprep.subr.mxu0 0.0
    %1548 = vmatpush1.msra.mxu0 0.0
    %1549 = vmatprep.subr.mxu0 0.0
    %1550 = vmatpush1.msra.mxu0 0.0
    %1551 = vmatprep.subr.mxu0 0.0
    %1552 = vmatpush1.msra.mxu0 0.0
    %1553 = vmatprep.subr.mxu0 0.0
    %1554 = vmatpush1.msra.mxu0 0.0
    %1555 = vmatprep.subr.mxu0 0.0
    %1556 = vmatpush1.msra.mxu0 0.0
    %1557 = vmatprep.subr.mxu0 0.0
    %1558 = vmatpush1.msra.mxu0 0.0
    %1559 = vmatprep.subr.mxu0 0.0
    %1560 = vmatpush1.msra.mxu0 0.0
    %1561 = vmatprep.subr.mxu0 0.0
    %1562 = vmatpush1.msra.mxu0 0.0
    %1563 = vmatprep.subr.mxu0 0.0
    %1564 = vmatpush1.msra.mxu0 0.0
    %1565 = vmatprep.subr.mxu0 0.0
    %1566 = vmatpush1.msra.mxu0 0.0
    %1567 = vmatprep.subr.mxu0 0.0
    %1568 = vmatpush1.msra.mxu0 0.0
    %1569 = vmatprep.subr.mxu0 0.0
    %1570 = vmatpush1.msra.mxu0 0.0
    %1571 = vmatprep.subr.mxu0 0.0
    %1572 = vmatpush1.msra.mxu0 0.0
    %1573 = vmatprep.subr.mxu0 0.0
    %1574 = vmatpush1.msra.mxu0 0.0
    %1575 = vmatprep.subr.mxu0 0.0
    %1576 = vmatpush1.msra.mxu0 0.0
    %1577 = vmatprep.subr.mxu0 0.0
    %1578 = vmatpush1.msra.mxu0 0.0
    %1579 = vmatprep.subr.mxu0 0.0
    %1580 = vmatpush1.msra.mxu0 0.0
    %1581 = vmatprep.subr.mxu0 0.0
    %1582 = vmatpush1.msra.mxu0 0.0
    %1583 = vmatprep.subr.mxu0 0.0
    %1584 = vmatpush1.msra.mxu0 0.0
    %1585 = vmatprep.subr.mxu0 0.0
    %1586 = vmatpush1.msra.mxu0 0.0
    %1587 = vmatprep.subr.mxu0 0.0
    %1588 = vmatpush1.msra.mxu0 0.0
    %1589 = vmatprep.mubr.f32.mxu0 0.0
    %1590 = vmatmul.mubr.f32.gmra.mrb[0].mxu0 %v1523
    %v1591 = vpop.f32.mrb[0].mxu0
    %v1592 = vadd.f32 0.0, %v1591
    %v1593 = vpop.f32.mrb[0].mxu0
    %1594 = vdwg.mxu0
    %1595 = vrot.lane.b32.xlu0 %v337, 40
    %v1596 = vpop.permute.xlu0 %1595
    %v1599 = vsel %vm345, %v1518, 0
    %1601 = vmatprep.subr.mxu0 0.0
    %1602 = vmatpush1.msra.mxu0 %v1596
    %1603 = vmatprep.subr.mxu0 0.0
    %1604 = vmatpush1.msra.mxu0 0.0
    %1605 = vmatprep.subr.mxu0 0.0
    %1606 = vmatpush1.msra.mxu0 0.0
    %1607 = vmatprep.subr.mxu0 0.0
    %1608 = vmatpush1.msra.mxu0 0.0
    %1609 = vmatprep.subr.mxu0 0.0
    %1610 = vmatpush1.msra.mxu0 0.0
    %1611 = vmatprep.subr.mxu0 0.0
    %1612 = vmatpush1.msra.mxu0 0.0
    %1613 = vmatprep.subr.mxu0 0.0
    %1614 = vmatpush1.msra.mxu0 0.0
    %1615 = vmatprep.subr.mxu0 0.0
    %1616 = vmatpush1.msra.mxu0 0.0
    %1617 = vmatprep.subr.mxu0 0.0
    %1618 = vmatpush1.msra.mxu0 0.0
    %1619 = vmatprep.subr.mxu0 0.0
    %1620 = vmatpush1.msra.mxu0 0.0
    %1621 = vmatprep.subr.mxu0 0.0
    %1622 = vmatpush1.msra.mxu0 0.0
    %1623 = vmatprep.subr.mxu0 0.0
    %1624 = vmatpush1.msra.mxu0 0.0
    %1625 = vmatprep.subr.mxu0 0.0
    %1626 = vmatpush1.msra.mxu0 0.0
    %1627 = vmatprep.subr.mxu0 0.0
    %1628 = vmatpush1.msra.mxu0 0.0
    %1629 = vmatprep.subr.mxu0 0.0
    %1630 = vmatpush1.msra.mxu0 0.0
    %1631 = vmatprep.subr.mxu0 0.0
    %1632 = vmatpush1.msra.mxu0 0.0
    %1633 = vmatprep.subr.mxu0 0.0
    %1634 = vmatpush1.msra.mxu0 0.0
    %1635 = vmatprep.subr.mxu0 0.0
    %1636 = vmatpush1.msra.mxu0 0.0
    %1637 = vmatprep.subr.mxu0 0.0
    %1638 = vmatpush1.msra.mxu0 0.0
    %1639 = vmatprep.subr.mxu0 0.0
    %1640 = vmatpush1.msra.mxu0 0.0
    %1641 = vmatprep.subr.mxu0 0.0
    %1642 = vmatpush1.msra.mxu0 0.0
    %1643 = vmatprep.subr.mxu0 0.0
    %1644 = vmatpush1.msra.mxu0 0.0
    %1645 = vmatprep.subr.mxu0 0.0
    %1646 = vmatpush1.msra.mxu0 0.0
    %1647 = vmatprep.subr.mxu0 0.0
    %1648 = vmatpush1.msra.mxu0 0.0
    %1649 = vmatprep.subr.mxu0 0.0
    %1650 = vmatpush1.msra.mxu0 0.0
    %1651 = vmatprep.subr.mxu0 0.0
    %1652 = vmatpush1.msra.mxu0 0.0
    %1653 = vmatprep.subr.mxu0 0.0
    %1654 = vmatpush1.msra.mxu0 0.0
    %1655 = vmatprep.subr.mxu0 0.0
    %1656 = vmatpush1.msra.mxu0 0.0
    %1657 = vmatprep.subr.mxu0 0.0
    %1658 = vmatpush1.msra.mxu0 0.0
    %1659 = vmatprep.subr.mxu0 0.0
    %1660 = vmatpush1.msra.mxu0 0.0
    %1661 = vmatprep.subr.mxu0 0.0
    %1662 = vmatpush1.msra.mxu0 0.0
    %1663 = vmatprep.subr.mxu0 0.0
    %1664 = vmatpush1.msra.mxu0 0.0
    %1665 = vmatprep.mubr.f32.mxu0 0.0
    %1666 = vmatmul.mubr.f32.gmra.mrb[0].mxu0 %v1599
    %v1667 = vpop.f32.mrb[0].mxu0
    %v1668 = vadd.f32 0.0, %v1667
    %v1669 = vpop.f32.mrb[0].mxu0
    %1670 = vdwg.mxu0
    %1673 = vrot.lane.b32.xlu0 %v928, 8
    %v1674 = vpop.permute.xlu0 %1673
    %1675 = vrot.lane.b32.xlu0 %v1004, 8
    %v1676 = vpop.permute.xlu0 %1675
    %1681 = vrot.lane.b32.xlu0 %v1260, 16
    %v1682 = vpop.permute.xlu0 %1681
    %1683 = vrot.lane.b32.xlu0 %v1336, 16
    %v1684 = vpop.permute.xlu0 %1683
    %1689 = vrot.lane.b32.xlu0 %v1592, 24
    %v1690 = vpop.permute.xlu0 %1689
    %1691 = vrot.lane.b32.xlu0 %v1668, 24
    %v1692 = vpop.permute.xlu0 %1691
    %v1695 = vsel %vm345, %v596, %v1674
    %v1696 = vsel %vm345, %v672, %v1676
    %vm1697 = vcmask 130048
    %v1698 = vsel %vm1697, %v1695, %v1682
    %v1699 = vsel %vm1697, %v1696, %v1684
    %vm1700 = vcmask 195584
    %v1701 = vsel %vm1700, %v1698, %v1690
    %v1702 = vsel %vm1700, %v1699, %v1692
    %v1703 = vld [vmem:[%s6] sm:$0xff]
    %v1704 = vld [vmem:[%s6 + $0x8] sm:$0xff]
    %v1705 = vld [vmem:[%s6 + $0x10] sm:$0xff]
    %v1706 = vld [vmem:[%s6 + $0x18] sm:$0xff]
    %v1708 = vsel %vm202, %v1701, 0
    %v1711 = vsel %vm202, %v1702, 0
    %1713 = vmatprep.subr.mxu0 0.0
    %1714 = vmatpush1.msra.mxu0 %v1703
    %1715 = vmatprep.subr.mxu0 0.0
    %1716 = vmatpush1.msra.mxu0 %v1704
    %1717 = vmatprep.subr.mxu0 0.0
    %1718 = vmatpush1.msra.mxu0 %v1705
    %1719 = vmatprep.subr.mxu0 0.0
    %1720 = vmatpush1.msra.mxu0 %v1706
    %1721 = vmatprep.subr.mxu0 0.0
    %1722 = vmatpush1.msra.mxu0 0.0
    %1723 = vmatprep.subr.mxu0 0.0
    %1724 = vmatpush1.msra.mxu0 0.0
    %1725 = vmatprep.subr.mxu0 0.0
    %1726 = vmatpush1.msra.mxu0 0.0
    %1727 = vmatprep.subr.mxu0 0.0
    %1728 = vmatpush1.msra.mxu0 0.0
    %1729 = vmatprep.subr.mxu0 0.0
    %1730 = vmatpush1.msra.mxu0 0.0
    %1731 = vmatprep.subr.mxu0 0.0
    %1732 = vmatpush1.msra.mxu0 0.0
    %1733 = vmatprep.subr.mxu0 0.0
    %1734 = vmatpush1.msra.mxu0 0.0
    %1735 = vmatprep.subr.mxu0 0.0
    %1736 = vmatpush1.msra.mxu0 0.0
    %1737 = vmatprep.subr.mxu0 0.0
    %1738 = vmatpush1.msra.mxu0 0.0
    %1739 = vmatprep.subr.mxu0 0.0
    %1740 = vmatpush1.msra.mxu0 0.0
    %1741 = vmatprep.subr.mxu0 0.0
    %1742 = vmatpush1.msra.mxu0 0.0
    %1743 = vmatprep.subr.mxu0 0.0
    %1744 = vmatpush1.msra.mxu0 0.0
    %1745 = vmatprep.subr.mxu0 0.0
    %1746 = vmatpush1.msra.mxu0 0.0
    %1747 = vmatprep.subr.mxu0 0.0
    %1748 = vmatpush1.msra.mxu0 0.0
    %1749 = vmatprep.subr.mxu0 0.0
    %1750 = vmatpush1.msra.mxu0 0.0
    %1751 = vmatprep.subr.mxu0 0.0
    %1752 = vmatpush1.msra.mxu0 0.0
    %1753 = vmatprep.subr.mxu0 0.0
    %1754 = vmatpush1.msra.mxu0 0.0
    %1755 = vmatprep.subr.mxu0 0.0
    %1756 = vmatpush1.msra.mxu0 0.0
    %1757 = vmatprep.subr.mxu0 0.0
    %1758 = vmatpush1.msra.mxu0 0.0
    %1759 = vmatprep.subr.mxu0 0.0
    %1760 = vmatpush1.msra.mxu0 0.0
    %1761 = vmatprep.subr.mxu0 0.0
    %1762 = vmatpush1.msra.mxu0 0.0
    %1763 = vmatprep.subr.mxu0 0.0
    %1764 = vmatpush1.msra.mxu0 0.0
    %1765 = vmatprep.subr.mxu0 0.0
    %1766 = vmatpush1.msra.mxu0 0.0
    %1767 = vmatprep.subr.mxu0 0.0
    %1768 = vmatpush1.msra.mxu0 0.0
    %1769 = vmatprep.subr.mxu0 0.0
    %1770 = vmatpush1.msra.mxu0 0.0
    %1771 = vmatprep.subr.mxu0 0.0
    %1772 = vmatpush1.msra.mxu0 0.0
    %1773 = vmatprep.subr.mxu0 0.0
    %1774 = vmatpush1.msra.mxu0 0.0
    %1775 = vmatprep.subr.mxu0 0.0
    %1776 = vmatpush1.msra.mxu0 0.0
    %1777 = vmatprep.mubr.f32.mxu0 0.0
    %1778 = vmatmul.mubr.f32.gmra.mrb[0].mxu0 %v1708
    %v1779 = vpop.f32.mrb[0].mxu0
    %v1780 = vadd.f32 0.0, %v1779
    %v1781 = vpop.f32.mrb[0].mxu0
    %1782 = vmatprep.mubr.f32.mxu0 0.0
    %1783 = vmatmul.mubr.f32.gmra.mrb[0].mxu0 %v1711
    %v1784 = vpop.f32.mrb[0].mxu0
    %v1785 = vadd.f32 0.0, %v1784
    %v1786 = vpop.f32.mrb[0].mxu0
    %1787 = vdwg.mxu0
    %v1788 = vadd.f32 %v198, %v1780
    %v1789 = vadd.f32 %v199, %v1785
    %v1790 = vld [vmem:[%s7] sm:$0x1]
    %v1792 = vlaneseq
    %v1793 = vshrl.u32 %v1792, 7
    %v1794 = vsub.s32 0, %v1793
    %v1795 = vrot.slane %v1790, %v1794
    %v1797 = vadd.f32 %v1788, %v1795
    %v1798 = vadd.f32 %v1789, %v1795
    %v1799 = vsel %vm202, %v1797, 0.0
    %1800 = vadd.xlane.f32.xlu0 %v1799
    %v1801 = vpop.xlane.xlu0 %1800
    %v1802 = vsel %vm202, %v1798, 0.0
    %1803 = vadd.xlane.f32.xlu0 %v1802
    %v1804 = vpop.xlane.xlu0 %1803
    %v1805 = vmul.f32 %v1801, %v209
    %v1806 = vmul.f32 %v1804, %v209
    %v1807 = vsub.f32 %v1797, %v1805
    %v1808 = vsub.f32 %v1798, %v1806
    %v1809 = vmul.f32 %v1807, %v1807
    %v1810 = vmul.f32 %v1808, %v1808
    %v1811 = vsel %vm202, %v1809, 0.0
    %1812 = vadd.xlane.f32.xlu0 %v1811
    %v1813 = vpop.xlane.xlu0 %1812
    %v1814 = vsel %vm202, %v1810, 0.0
    %1815 = vadd.xlane.f32.xlu0 %v1814
    %v1816 = vpop.xlane.xlu0 %1815
    %v1817 = vmul.f32 %v1813, %v209
    %v1818 = vmul.f32 %v1816, %v209
    %v1819 = vld [vmem:[%s18] sm:$0x1]
    %v1821 = vlaneseq
    %v1822 = vshrl.u32 %v1821, 7
    %v1823 = vsub.s32 0, %v1822
    %v1824 = vrot.slane %v1819, %v1823
    %v1826 = vmul.f32 %v1824, %v1807
    %v1827 = vmul.f32 %v1824, %v1808
    %v1828 = vadd.f32 %v1817, 1e-06
    %v1829 = vadd.f32 %v1818, 1e-06
    %v1830 = vrsqrt.pop %v1828
    %v1831 = vrsqrt.pop %v1829
    %v1832 = vmul.f32 %v1826, %v1830
    %v1833 = vmul.f32 %v1827, %v1831
    %v1834 = vld [vmem:[#allocation17] sm:$0x1]
    %v1836 = vlaneseq
    %v1837 = vshrl.u32 %v1836, 7
    %v1838 = vsub.s32 0, %v1837
    %v1839 = vrot.slane %v1834, %v1838
    %v1841 = vadd.f32 %v1832, %v1839
    %v1842 = vadd.f32 %v1833, %v1839
    %v1843 = vld [vmem:[%s8] sm:$0xff]
    %v1844 = vld [vmem:[%s8 + $0x8] sm:$0xff]
    %v1845 = vld [vmem:[%s8 + $0x10] sm:$0xff]
    %v1846 = vld [vmem:[%s8 + $0x18] sm:$0xff]
    %v1847 = vld [vmem:[%s9] sm:$0x1]
    %v1849 = vlaneseq
    %v1850 = vshrl.u32 %v1849, 7
    %v1851 = vsub.s32 0, %v1850
    %v1852 = vrot.slane %v1847, %v1851
    %v1855 = vsel %vm202, %v1841, 0
    %v1858 = vsel %vm202, %v1842, 0
    %1860 = vmatprep.subr.mxu0 0.0
    %1861 = vmatpush1.msra.mxu0 %v1843
    %1862 = vmatprep.subr.mxu0 0.0
    %1863 = vmatpush1.msra.mxu0 %v1844
    %1864 = vmatprep.subr.mxu0 0.0
    %1865 = vmatpush1.msra.mxu0 %v1845
    %1866 = vmatprep.subr.mxu0 0.0
    %1867 = vmatpush1.msra.mxu0 %v1846
    %1868 = vmatprep.subr.mxu0 0.0
    %1869 = vmatpush1.msra.mxu0 0.0
    %1870 = vmatprep.subr.mxu0 0.0
    %1871 = vmatpush1.msra.mxu0 0.0
    %1872 = vmatprep.subr.mxu0 0.0
    %1873 = vmatpush1.msra.mxu0 0.0
    %1874 = vmatprep.subr.mxu0 0.0
    %1875 = vmatpush1.msra.mxu0 0.0
    %1876 = vmatprep.subr.mxu0 0.0
    %1877 = vmatpush1.msra.mxu0 0.0
    %1878 = vmatprep.subr.mxu0 0.0
    %1879 = vmatpush1.msra.mxu0 0.0
    %1880 = vmatprep.subr.mxu0 0.0
    %1881 = vmatpush1.msra.mxu0 0.0
    %1882 = vmatprep.subr.mxu0 0.0
    %1883 = vmatpush1.msra.mxu0 0.0
    %1884 = vmatprep.subr.mxu0 0.0
    %1885 = vmatpush1.msra.mxu0 0.0
    %1886 = vmatprep.subr.mxu0 0.0
    %1887 = vmatpush1.msra.mxu0 0.0
    %1888 = vmatprep.subr.mxu0 0.0
    %1889 = vmatpush1.msra.mxu0 0.0
    %1890 = vmatprep.subr.mxu0 0.0
    %1891 = vmatpush1.msra.mxu0 0.0
    %1892 = vmatprep.subr.mxu0 0.0
    %1893 = vmatpush1.msra.mxu0 0.0
    %1894 = vmatprep.subr.mxu0 0.0
    %1895 = vmatpush1.msra.mxu0 0.0
    %1896 = vmatprep.subr.mxu0 0.0
    %1897 = vmatpush1.msra.mxu0 0.0
    %1898 = vmatprep.subr.mxu0 0.0
    %1899 = vmatpush1.msra.mxu0 0.0
    %1900 = vmatprep.subr.mxu0 0.0
    %1901 = vmatpush1.msra.mxu0 0.0
    %1902 = vmatprep.subr.mxu0 0.0
    %1903 = vmatpush1.msra.mxu0 0.0
    %1904 = vmatprep.subr.mxu0 0.0
    %1905 = vmatpush1.msra.mxu0 0.0
    %1906 = vmatprep.subr.mxu0 0.0
    %1907 = vmatpush1.msra.mxu0 0.0
    %1908 = vmatprep.subr.mxu0 0.0
    %1909 = vmatpush1.msra.mxu0 0.0
    %1910 = vmatprep.subr.mxu0 0.0
    %1911 = vmatpush1.msra.mxu0 0.0
    %1912 = vmatprep.subr.mxu0 0.0
    %1913 = vmatpush1.msra.mxu0 0.0
    %1914 = vmatprep.subr.mxu0 0.0
    %1915 = vmatpush1.msra.mxu0 0.0
    %1916 = vmatprep.subr.mxu0 0.0
    %1917 = vmatpush1.msra.mxu0 0.0
    %1918 = vmatprep.subr.mxu0 0.0
    %1919 = vmatpush1.msra.mxu0 0.0
    %1920 = vmatprep.subr.mxu0 0.0
    %1921 = vmatpush1.msra.mxu0 0.0
    %1922 = vmatprep.subr.mxu0 0.0
    %1923 = vmatpush1.msra.mxu0 0.0
    %1924 = vmatprep.mubr.f32.mxu0 0.0
    %1925 = vmatmul.mubr.f32.gmra.mrb[0].mxu0 %v1855
    %v1926 = vpop.f32.mrb[0].mxu0
    %v1927 = vadd.f32 %v1852, %v1926
    %v1928 = vpop.f32.mrb[0].mxu0
    %1929 = vmatprep.mubr.f32.mxu0 0.0
    %1930 = vmatmul.mubr.f32.gmra.mrb[0].mxu0 %v1858
    %v1931 = vpop.f32.mrb[0].mxu0
    %v1932 = vadd.f32 %v1852, %v1931
    %v1933 = vpop.f32.mrb[0].mxu0
    %1934 = vdwg.mxu0
    %1939 = vrot.lane.b32.xlu0 %v1843, 96
    %v1940 = vpop.permute.xlu0 %1939
    %1941 = vrot.lane.b32.xlu0 %v1844, 96
    %v1942 = vpop.permute.xlu0 %1941
    %1943 = vrot.lane.b32.xlu0 %v1845, 96
    %v1944 = vpop.permute.xlu0 %1943
    %1945 = vrot.lane.b32.xlu0 %v1846, 96
    %v1946 = vpop.permute.xlu0 %1945
    %1951 = vrot.lane.b32.xlu0 %v1852, 96
    %v1952 = vpop.permute.xlu0 %1951
    %v1955 = vsel %vm202, %v200, 0
    %v1958 = vsel %vm202, %v201, 0
    %1960 = vmatprep.subr.mxu0 0.0
    %1961 = vmatpush1.msra.mxu0 %v1940
    %1962 = vmatprep.subr.mxu0 0.0
    %1963 = vmatpush1.msra.mxu0 %v1942
    %1964 = vmatprep.subr.mxu0 0.0
    %1965 = vmatpush1.msra.mxu0 %v1944
    %1966 = vmatprep.subr.mxu0 0.0
    %1967 = vmatpush1.msra.mxu0 %v1946
    %1968 = vmatprep.subr.mxu0 0.0
    %1969 = vmatpush1.msra.mxu0 0.0
    %1970 = vmatprep.subr.mxu0 0.0
    %1971 = vmatpush1.msra.mxu0 0.0
    %1972 = vmatprep.subr.mxu0 0.0
    %1973 = vmatpush1.msra.mxu0 0.0
    %1974 = vmatprep.subr.mxu0 0.0
    %1975 = vmatpush1.msra.mxu0 0.0
    %1976 = vmatprep.subr.mxu0 0.0
    %1977 = vmatpush1.msra.mxu0 0.0
    %1978 = vmatprep.subr.mxu0 0.0
    %1979 = vmatpush1.msra.mxu0 0.0
    %1980 = vmatprep.subr.mxu0 0.0
    %1981 = vmatpush1.msra.mxu0 0.0
    %1982 = vmatprep.subr.mxu0 0.0
    %1983 = vmatpush1.msra.mxu0 0.0
    %1984 = vmatprep.subr.mxu0 0.0
    %1985 = vmatpush1.msra.mxu0 0.0
    %1986 = vmatprep.subr.mxu0 0.0
    %1987 = vmatpush1.msra.mxu0 0.0
    %1988 = vmatprep.subr.mxu0 0.0
    %1989 = vmatpush1.msra.mxu0 0.0
    %1990 = vmatprep.subr.mxu0 0.0
    %1991 = vmatpush1.msra.mxu0 0.0
    %1992 = vmatprep.subr.mxu0 0.0
    %1993 = vmatpush1.msra.mxu0 0.0
    %1994 = vmatprep.subr.mxu0 0.0
    %1995 = vmatpush1.msra.mxu0 0.0
    %1996 = vmatprep.subr.mxu0 0.0
    %1997 = vmatpush1.msra.mxu0 0.0
    %1998 = vmatprep.subr.mxu0 0.0
    %1999 = vmatpush1.msra.mxu0 0.0
    %2000 = vmatprep.subr.mxu0 0.0
    %2001 = vmatpush1.msra.mxu0 0.0
    %2002 = vmatprep.subr.mxu0 0.0
    %2003 = vmatpush1.msra.mxu0 0.0
    %2004 = vmatprep.subr.mxu0 0.0
    %2005 = vmatpush1.msra.mxu0 0.0
    %2006 = vmatprep.subr.mxu0 0.0
    %2007 = vmatpush1.msra.mxu0 0.0
    %2008 = vmatprep.subr.mxu0 0.0
    %2009 = vmatpush1.msra.mxu0 0.0
    %2010 = vmatprep.subr.mxu0 0.0
    %2011 = vmatpush1.msra.mxu0 0.0
    %2012 = vmatprep.subr.mxu0 0.0
    %2013 = vmatpush1.msra.mxu0 0.0
    %2014 = vmatprep.subr.mxu0 0.0
    %2015 = vmatpush1.msra.mxu0 0.0
    %2016 = vmatprep.subr.mxu0 0.0
    %2017 = vmatpush1.msra.mxu0 0.0
    %2018 = vmatprep.subr.mxu0 0.0
    %2019 = vmatpush1.msra.mxu0 0.0
    %2020 = vmatprep.subr.mxu0 0.0
    %2021 = vmatpush1.msra.mxu0 0.0
    %2022 = vmatprep.subr.mxu0 0.0
    %2023 = vmatpush1.msra.mxu0 0.0
    %2024 = vmatprep.mubr.f32.mxu0 0.0
    %2025 = vmatmul.mubr.f32.gmra.mrb[0].mxu0 %v1955
    %v2026 = vpop.f32.mrb[0].mxu0
    %v2027 = vadd.f32 %v1952, %v2026
    %v2028 = vpop.f32.mrb[0].mxu0
    %2029 = vmatprep.mubr.f32.mxu0 0.0
    %2030 = vmatmul.mubr.f32.gmra.mrb[0].mxu0 %v1958
    %v2031 = vpop.f32.mrb[0].mxu0
    %v2032 = vadd.f32 %v1952, %v2031
    %v2033 = vpop.f32.mrb[0].mxu0
    %2034 = vdwg.mxu0
    %v2035 = vld [vmem:[#allocation7] sm:$0xff]
    %v2036 = vld [vmem:[#allocation7 + $0x8] sm:$0xff]
    %v2038 = vsel %vm345, %v1927, 0
    %v2041 = vsel %vm345, %v2027, 0
    %2043 = vmatprep.subr.mxu0 0.0
    %2044 = vmatpush1.xpose.msra.mxu0 %v2041
    %2045 = vmatprep.subr.mxu0 0.0
    %2046 = vmatpush1.xpose.msra.mxu0 0.0
    %2047 = vmatprep.subr.mxu0 0.0
    %2048 = vmatpush1.xpose.msra.mxu0 0.0
    %2049 = vmatprep.subr.mxu0 0.0
    %2050 = vmatpush1.xpose.msra.mxu0 0.0
    %2051 = vmatprep.subr.mxu0 0.0
    %2052 = vmatpush1.xpose.msra.mxu0 0.0
    %2053 = vmatprep.subr.mxu0 0.0
    %2054 = vmatpush1.xpose.msra.mxu0 0.0
    %2055 = vmatprep.subr.mxu0 0.0
    %2056 = vmatpush1.xpose.msra.mxu0 0.0
    %2057 = vmatprep.subr.mxu0 0.0
    %2058 = vmatpush1.xpose.msra.mxu0 0.0
    %2059 = vmatprep.subr.mxu0 0.0
    %2060 = vmatpush1.xpose.msra.mxu0 0.0
    %2061 = vmatprep.subr.mxu0 0.0
    %2062 = vmatpush1.xpose.msra.mxu0 0.0
    %2063 = vmatprep.subr.mxu0 0.0
    %2064 = vmatpush1.xpose.msra.mxu0 0.0
    %2065 = vmatprep.subr.mxu0 0.0
    %2066 = vmatpush1.xpose.msra.mxu0 0.0
    %2067 = vmatprep.subr.mxu0 0.0
    %2068 = vmatpush1.xpose.msra.mxu0 0.0
    %2069 = vmatprep.subr.mxu0 0.0
    %2070 = vmatpush1.xpose.msra.mxu0 0.0
    %2071 = vmatprep.subr.mxu0 0.0
    %2072 = vmatpush1.xpose.msra.mxu0 0.0
    %2073 = vmatprep.subr.mxu0 0.0
    %2074 = vmatpush1.xpose.msra.mxu0 0.0
    %2075 = vmatprep.subr.mxu0 0.0
    %2076 = vmatpush1.xpose.msra.mxu0 0.0
    %2077 = vmatprep.subr.mxu0 0.0
    %2078 = vmatpush1.xpose.msra.mxu0 0.0
    %2079 = vmatprep.subr.mxu0 0.0
    %2080 = vmatpush1.xpose.msra.mxu0 0.0
    %2081 = vmatprep.subr.mxu0 0.0
    %2082 = vmatpush1.xpose.msra.mxu0 0.0
    %2083 = vmatprep.subr.mxu0 0.0
    %2084 = vmatpush1.xpose.msra.mxu0 0.0
    %2085 = vmatprep.subr.mxu0 0.0
    %2086 = vmatpush1.xpose.msra.mxu0 0.0
    %2087 = vmatprep.subr.mxu0 0.0
    %2088 = vmatpush1.xpose.msra.mxu0 0.0
    %2089 = vmatprep.subr.mxu0 0.0
    %2090 = vmatpush1.xpose.msra.mxu0 0.0
    %2091 = vmatprep.subr.mxu0 0.0
    %2092 = vmatpush1.xpose.msra.mxu0 0.0
    %2093 = vmatprep.subr.mxu0 0.0
    %2094 = vmatpush1.xpose.msra.mxu0 0.0
    %2095 = vmatprep.subr.mxu0 0.0
    %2096 = vmatpush1.xpose.msra.mxu0 0.0
    %2097 = vmatprep.subr.mxu0 0.0
    %2098 = vmatpush1.xpose.msra.mxu0 0.0
    %2099 = vmatprep.subr.mxu0 0.0
    %2100 = vmatpush1.xpose.msra.mxu0 0.0
    %2101 = vmatprep.subr.mxu0 0.0
    %2102 = vmatpush1.xpose.msra.mxu0 0.0
    %2103 = vmatprep.subr.mxu0 0.0
    %2104 = vmatpush1.xpose.msra.mxu0 0.0
    %2105 = vmatprep.subr.mxu0 0.0
    %2106 = vmatpush1.xpose.msra.mxu0 0.0
    %2107 = vmatprep.mubr.f32.mxu0 0.0
    %2108 = vmatmul.mubr.f32.gmra.mrb[0].mxu0 %v2038
    %v2109 = vpop.f32.mrb[0].mxu0
    %v2110 = vadd.f32 0.0, %v2109
    %v2111 = vpop.f32.mrb[0].mxu0
    %2112 = vdwg.mxu0
    %v2114 = vsel %vm345, %v1932, 0
    %v2117 = vsel %vm345, %v2032, 0
    %2119 = vmatprep.subr.mxu0 0.0
    %2120 = vmatpush1.xpose.msra.mxu0 %v2117
    %2121 = vmatprep.subr.mxu0 0.0
    %2122 = vmatpush1.xpose.msra.mxu0 0.0
    %2123 = vmatprep.subr.mxu0 0.0
    %2124 = vmatpush1.xpose.msra.mxu0 0.0
    %2125 = vmatprep.subr.mxu0 0.0
    %2126 = vmatpush1.xpose.msra.mxu0 0.0
    %2127 = vmatprep.subr.mxu0 0.0
    %2128 = vmatpush1.xpose.msra.mxu0 0.0
    %2129 = vmatprep.subr.mxu0 0.0
    %2130 = vmatpush1.xpose.msra.mxu0 0.0
    %2131 = vmatprep.subr.mxu0 0.0
    %2132 = vmatpush1.xpose.msra.mxu0 0.0
    %2133 = vmatprep.subr.mxu0 0.0
    %2134 = vmatpush1.xpose.msra.mxu0 0.0
    %2135 = vmatprep.subr.mxu0 0.0
    %2136 = vmatpush1.xpose.msra.mxu0 0.0
    %2137 = vmatprep.subr.mxu0 0.0
    %2138 = vmatpush1.xpose.msra.mxu0 0.0
    %2139 = vmatprep.subr.mxu0 0.0
    %2140 = vmatpush1.xpose.msra.mxu0 0.0
    %2141 = vmatprep.subr.mxu0 0.0
    %2142 = vmatpush1.xpose.msra.mxu0 0.0
    %2143 = vmatprep.subr.mxu0 0.0
    %2144 = vmatpush1.xpose.msra.mxu0 0.0
    %2145 = vmatprep.subr.mxu0 0.0
    %2146 = vmatpush1.xpose.msra.mxu0 0.0
    %2147 = vmatprep.subr.mxu0 0.0
    %2148 = vmatpush1.xpose.msra.mxu0 0.0
    %2149 = vmatprep.subr.mxu0 0.0
    %2150 = vmatpush1.xpose.msra.mxu0 0.0
    %2151 = vmatprep.subr.mxu0 0.0
    %2152 = vmatpush1.xpose.msra.mxu0 0.0
    %2153 = vmatprep.subr.mxu0 0.0
    %2154 = vmatpush1.xpose.msra.mxu0 0.0
    %2155 = vmatprep.subr.mxu0 0.0
    %2156 = vmatpush1.xpose.msra.mxu0 0.0
    %2157 = vmatprep.subr.mxu0 0.0
    %2158 = vmatpush1.xpose.msra.mxu0 0.0
    %2159 = vmatprep.subr.mxu0 0.0
    %2160 = vmatpush1.xpose.msra.mxu0 0.0
    %2161 = vmatprep.subr.mxu0 0.0
    %2162 = vmatpush1.xpose.msra.mxu0 0.0
    %2163 = vmatprep.subr.mxu0 0.0
    %2164 = vmatpush1.xpose.msra.mxu0 0.0
    %2165 = vmatprep.subr.mxu0 0.0
    %2166 = vmatpush1.xpose.msra.mxu0 0.0
    %2167 = vmatprep.subr.mxu0 0.0
    %2168 = vmatpush1.xpose.msra.mxu0 0.0
    %2169 = vmatprep.subr.mxu0 0.0
    %2170 = vmatpush1.xpose.msra.mxu0 0.0
    %2171 = vmatprep.subr.mxu0 0.0
    %2172 = vmatpush1.xpose.msra.mxu0 0.0
    %2173 = vmatprep.subr.mxu0 0.0
    %2174 = vmatpush1.xpose.msra.mxu0 0.0
    %2175 = vmatprep.subr.mxu0 0.0
    %2176 = vmatpush1.xpose.msra.mxu0 0.0
    %2177 = vmatprep.subr.mxu0 0.0
    %2178 = vmatpush1.xpose.msra.mxu0 0.0
    %2179 = vmatprep.subr.mxu0 0.0
    %2180 = vmatpush1.xpose.msra.mxu0 0.0
    %2181 = vmatprep.subr.mxu0 0.0
    %2182 = vmatpush1.xpose.msra.mxu0 0.0
    %2183 = vmatprep.mubr.f32.mxu0 0.0
    %2184 = vmatmul.mubr.f32.gmra.mrb[0].mxu0 %v2114
    %v2185 = vpop.f32.mrb[0].mxu0
    %v2186 = vadd.f32 0.0, %v2185
    %v2187 = vpop.f32.mrb[0].mxu0
    %2188 = vdwg.mxu0
    %vm2189 = vcmp.gt.f32.partialorder %v2035, 0.0
    %vm2190 = vcmp.gt.f32.partialorder %v2036, 0.0
    %v2191 = vsel %vm2189, %v2110, -1e+09
    %v2192 = vsel %vm2190, %v2186, -1e+09
    %v2193 = vsel %vm345, %v2191, -inf
    %2194 = vmax.xlane.f32.xlu0 %v2193
    %v2195 = vpop.xlane.xlu0 %2194
    %v2196 = vsel %vm345, %v2192, -inf
    %2197 = vmax.xlane.f32.xlu0 %v2196
    %v2198 = vpop.xlane.xlu0 %2197
    %v2199 = vsub.f32 %v2191, %v2195
    %v2200 = vsub.f32 %v2192, %v2198
    %v2201 = vmul.f32 %v2199, 1.442695
    %v2202 = vpow.pop %v2201
    %v2203 = vmul.f32 %v2200, 1.442695
    %v2204 = vpow.pop %v2203
    %v2205 = vsel %vm345, %v2202, 0.0
    %2206 = vadd.xlane.f32.xlu0 %v2205
    %v2207 = vpop.xlane.xlu0 %2206
    %v2208 = vsel %vm345, %v2204, 0.0
    %2209 = vadd.xlane.f32.xlu0 %v2208
    %v2210 = vpop.xlane.xlu0 %2209
    %v2211 = vrcp.pop %v2207
    %v2212 = vrcp.pop %v2210
    %v2213 = vmul.f32 %v2202, %v2211
    %v2214 = vmul.f32 %v2204, %v2212
    %2215 = vrot.lane.b32.xlu0 %v2027, 96
    %v2216 = vpop.permute.xlu0 %2215
    %v2219 = vsel %vm345, %v2213, 0
    %2221 = vmatprep.subr.mxu0 0.0
    %2222 = vmatpush1.msra.mxu0 %v2216
    %2223 = vmatprep.subr.mxu0 0.0
    %2224 = vmatpush1.msra.mxu0 0.0
    %2225 = vmatprep.subr.mxu0 0.0
    %2226 = vmatpush1.msra.mxu0 0.0
    %2227 = vmatprep.subr.mxu0 0.0
    %2228 = vmatpush1.msra.mxu0 0.0
    %2229 = vmatprep.subr.mxu0 0.0
    %2230 = vmatpush1.msra.mxu0 0.0
    %2231 = vmatprep.subr.mxu0 0.0
    %2232 = vmatpush1.msra.mxu0 0.0
    %2233 = vmatprep.subr.mxu0 0.0
    %2234 = vmatpush1.msra.mxu0 0.0
    %2235 = vmatprep.subr.mxu0 0.0
    %2236 = vmatpush1.msra.mxu0 0.0
    %2237 = vmatprep.subr.mxu0 0.0
    %2238 = vmatpush1.msra.mxu0 0.0
    %2239 = vmatprep.subr.mxu0 0.0
    %2240 = vmatpush1.msra.mxu0 0.0
    %2241 = vmatprep.subr.mxu0 0.0
    %2242 = vmatpush1.msra.mxu0 0.0
    %2243 = vmatprep.subr.mxu0 0.0
    %2244 = vmatpush1.msra.mxu0 0.0
    %2245 = vmatprep.subr.mxu0 0.0
    %2246 = vmatpush1.msra.mxu0 0.0
    %2247 = vmatprep.subr.mxu0 0.0
    %2248 = vmatpush1.msra.mxu0 0.0
    %2249 = vmatprep.subr.mxu0 0.0
    %2250 = vmatpush1.msra.mxu0 0.0
    %2251 = vmatprep.subr.mxu0 0.0
    %2252 = vmatpush1.msra.mxu0 0.0
    %2253 = vmatprep.subr.mxu0 0.0
    %2254 = vmatpush1.msra.mxu0 0.0
    %2255 = vmatprep.subr.mxu0 0.0
    %2256 = vmatpush1.msra.mxu0 0.0
    %2257 = vmatprep.subr.mxu0 0.0
    %2258 = vmatpush1.msra.mxu0 0.0
    %2259 = vmatprep.subr.mxu0 0.0
    %2260 = vmatpush1.msra.mxu0 0.0
    %2261 = vmatprep.subr.mxu0 0.0
    %2262 = vmatpush1.msra.mxu0 0.0
    %2263 = vmatprep.subr.mxu0 0.0
    %2264 = vmatpush1.msra.mxu0 0.0
    %2265 = vmatprep.subr.mxu0 0.0
    %2266 = vmatpush1.msra.mxu0 0.0
    %2267 = vmatprep.subr.mxu0 0.0
    %2268 = vmatpush1.msra.mxu0 0.0
    %2269 = vmatprep.subr.mxu0 0.0
    %2270 = vmatpush1.msra.mxu0 0.0
    %2271 = vmatprep.subr.mxu0 0.0
    %2272 = vmatpush1.msra.mxu0 0.0
    %2273 = vmatprep.subr.mxu0 0.0
    %2274 = vmatpush1.msra.mxu0 0.0
    %2275 = vmatprep.subr.mxu0 0.0
    %2276 = vmatpush1.msra.mxu0 0.0
    %2277 = vmatprep.subr.mxu0 0.0
    %2278 = vmatpush1.msra.mxu0 0.0
    %2279 = vmatprep.subr.mxu0 0.0
    %2280 = vmatpush1.msra.mxu0 0.0
    %2281 = vmatprep.subr.mxu0 0.0
    %2282 = vmatpush1.msra.mxu0 0.0
    %2283 = vmatprep.subr.mxu0 0.0
    %2284 = vmatpush1.msra.mxu0 0.0
    %2285 = vmatprep.mubr.f32.mxu0 0.0
    %2286 = vmatmul.mubr.f32.gmra.mrb[0].mxu0 %v2219
    %v2287 = vpop.f32.mrb[0].mxu0
    %v2288 = vadd.f32 0.0, %v2287
    %v2289 = vpop.f32.mrb[0].mxu0
    %2290 = vdwg.mxu0
    %2291 = vrot.lane.b32.xlu0 %v2032, 96
    %v2292 = vpop.permute.xlu0 %2291
    %v2295 = vsel %vm345, %v2214, 0
    %2297 = vmatprep.subr.mxu0 0.0
    %2298 = vmatpush1.msra.mxu0 %v2292
    %2299 = vmatprep.subr.mxu0 0.0
    %2300 = vmatpush1.msra.mxu0 0.0
    %2301 = vmatprep.subr.mxu0 0.0
    %2302 = vmatpush1.msra.mxu0 0.0
    %2303 = vmatprep.subr.mxu0 0.0
    %2304 = vmatpush1.msra.mxu0 0.0
    %2305 = vmatprep.subr.mxu0 0.0
    %2306 = vmatpush1.msra.mxu0 0.0
    %2307 = vmatprep.subr.mxu0 0.0
    %2308 = vmatpush1.msra.mxu0 0.0
    %2309 = vmatprep.subr.mxu0 0.0
    %2310 = vmatpush1.msra.mxu0 0.0
    %2311 = vmatprep.subr.mxu0 0.0
    %2312 = vmatpush1.msra.mxu0 0.0
    %2313 = vmatprep.subr.mxu0 0.0
    %2314 = vmatpush1.msra.mxu0 0.0
    %2315 = vmatprep.subr.mxu0 0.0
    %2316 = vmatpush1.msra.mxu0 0.0
    %2317 = vmatprep.subr.mxu0 0.0
    %2318 = vmatpush1.msra.mxu0 0.0
    %2319 = vmatprep.subr.mxu0 0.0
    %2320 = vmatpush1.msra.mxu0 0.0
    %2321 = vmatprep.subr.mxu0 0.0
    %2322 = vmatpush1.msra.mxu0 0.0
    %2323 = vmatprep.subr.mxu0 0.0
    %2324 = vmatpush1.msra.mxu0 0.0
    %2325 = vmatprep.subr.mxu0 0.0
    %2326 = vmatpush1.msra.mxu0 0.0
    %2327 = vmatprep.subr.mxu0 0.0
    %2328 = vmatpush1.msra.mxu0 0.0
    %2329 = vmatprep.subr.mxu0 0.0
    %2330 = vmatpush1.msra.mxu0 0.0
    %2331 = vmatprep.subr.mxu0 0.0
    %2332 = vmatpush1.msra.mxu0 0.0
    %2333 = vmatprep.subr.mxu0 0.0
    %2334 = vmatpush1.msra.mxu0 0.0
    %2335 = vmatprep.subr.mxu0 0.0
    %2336 = vmatpush1.msra.mxu0 0.0
    %2337 = vmatprep.subr.mxu0 0.0
    %2338 = vmatpush1.msra.mxu0 0.0
    %2339 = vmatprep.subr.mxu0 0.0
    %2340 = vmatpush1.msra.mxu0 0.0
    %2341 = vmatprep.subr.mxu0 0.0
    %2342 = vmatpush1.msra.mxu0 0.0
    %2343 = vmatprep.subr.mxu0 0.0
    %2344 = vmatpush1.msra.mxu0 0.0
    %2345 = vmatprep.subr.mxu0 0.0
    %2346 = vmatpush1.msra.mxu0 0.0
    %2347 = vmatprep.subr.mxu0 0.0
    %2348 = vmatpush1.msra.mxu0 0.0
    %2349 = vmatprep.subr.mxu0 0.0
    %2350 = vmatpush1.msra.mxu0 0.0
    %2351 = vmatprep.subr.mxu0 0.0
    %2352 = vmatpush1.msra.mxu0 0.0
    %2353 = vmatprep.subr.mxu0 0.0
    %2354 = vmatpush1.msra.mxu0 0.0
    %2355 = vmatprep.subr.mxu0 0.0
    %2356 = vmatpush1.msra.mxu0 0.0
    %2357 = vmatprep.subr.mxu0 0.0
    %2358 = vmatpush1.msra.mxu0 0.0
    %2359 = vmatprep.subr.mxu0 0.0
    %2360 = vmatpush1.msra.mxu0 0.0
    %2361 = vmatprep.mubr.f32.mxu0 0.0
    %2362 = vmatmul.mubr.f32.gmra.mrb[0].mxu0 %v2295
    %v2363 = vpop.f32.mrb[0].mxu0
    %v2364 = vadd.f32 0.0, %v2363
    %v2365 = vpop.f32.mrb[0].mxu0
    %2366 = vdwg.mxu0
    %2367 = vrot.lane.b32.xlu0 %v1927, 120
    %v2368 = vpop.permute.xlu0 %2367
    %2369 = vrot.lane.b32.xlu0 %v2027, 120
    %v2370 = vpop.permute.xlu0 %2369
    %v2371 = vsel %vm345, %v2368, 0
    %v2373 = vsel %vm345, %v2370, 0
    %2375 = vmatprep.subr.mxu0 0.0
    %2376 = vmatpush1.xpose.msra.mxu0 %v2373
    %2377 = vmatprep.subr.mxu0 0.0
    %2378 = vmatpush1.xpose.msra.mxu0 0.0
    %2379 = vmatprep.subr.mxu0 0.0
    %2380 = vmatpush1.xpose.msra.mxu0 0.0
    %2381 = vmatprep.subr.mxu0 0.0
    %2382 = vmatpush1.xpose.msra.mxu0 0.0
    %2383 = vmatprep.subr.mxu0 0.0
    %2384 = vmatpush1.xpose.msra.mxu0 0.0
    %2385 = vmatprep.subr.mxu0 0.0
    %2386 = vmatpush1.xpose.msra.mxu0 0.0
    %2387 = vmatprep.subr.mxu0 0.0
    %2388 = vmatpush1.xpose.msra.mxu0 0.0
    %2389 = vmatprep.subr.mxu0 0.0
    %2390 = vmatpush1.xpose.msra.mxu0 0.0
    %2391 = vmatprep.subr.mxu0 0.0
    %2392 = vmatpush1.xpose.msra.mxu0 0.0
    %2393 = vmatprep.subr.mxu0 0.0
    %2394 = vmatpush1.xpose.msra.mxu0 0.0
    %2395 = vmatprep.subr.mxu0 0.0
    %2396 = vmatpush1.xpose.msra.mxu0 0.0
    %2397 = vmatprep.subr.mxu0 0.0
    %2398 = vmatpush1.xpose.msra.mxu0 0.0
    %2399 = vmatprep.subr.mxu0 0.0
    %2400 = vmatpush1.xpose.msra.mxu0 0.0
    %2401 = vmatprep.subr.mxu0 0.0
    %2402 = vmatpush1.xpose.msra.mxu0 0.0
    %2403 = vmatprep.subr.mxu0 0.0
    %2404 = vmatpush1.xpose.msra.mxu0 0.0
    %2405 = vmatprep.subr.mxu0 0.0
    %2406 = vmatpush1.xpose.msra.mxu0 0.0
    %2407 = vmatprep.subr.mxu0 0.0
    %2408 = vmatpush1.xpose.msra.mxu0 0.0
    %2409 = vmatprep.subr.mxu0 0.0
    %2410 = vmatpush1.xpose.msra.mxu0 0.0
    %2411 = vmatprep.subr.mxu0 0.0
    %2412 = vmatpush1.xpose.msra.mxu0 0.0
    %2413 = vmatprep.subr.mxu0 0.0
    %2414 = vmatpush1.xpose.msra.mxu0 0.0
    %2415 = vmatprep.subr.mxu0 0.0
    %2416 = vmatpush1.xpose.msra.mxu0 0.0
    %2417 = vmatprep.subr.mxu0 0.0
    %2418 = vmatpush1.xpose.msra.mxu0 0.0
    %2419 = vmatprep.subr.mxu0 0.0
    %2420 = vmatpush1.xpose.msra.mxu0 0.0
    %2421 = vmatprep.subr.mxu0 0.0
    %2422 = vmatpush1.xpose.msra.mxu0 0.0
    %2423 = vmatprep.subr.mxu0 0.0
    %2424 = vmatpush1.xpose.msra.mxu0 0.0
    %2425 = vmatprep.subr.mxu0 0.0
    %2426 = vmatpush1.xpose.msra.mxu0 0.0
    %2427 = vmatprep.subr.mxu0 0.0
    %2428 = vmatpush1.xpose.msra.mxu0 0.0
    %2429 = vmatprep.subr.mxu0 0.0
    %2430 = vmatpush1.xpose.msra.mxu0 0.0
    %2431 = vmatprep.subr.mxu0 0.0
    %2432 = vmatpush1.xpose.msra.mxu0 0.0
    %2433 = vmatprep.subr.mxu0 0.0
    %2434 = vmatpush1.xpose.msra.mxu0 0.0
    %2435 = vmatprep.subr.mxu0 0.0
    %2436 = vmatpush1.xpose.msra.mxu0 0.0
    %2437 = vmatprep.subr.mxu0 0.0
    %2438 = vmatpush1.xpose.msra.mxu0 0.0
    %2439 = vmatprep.mubr.f32.mxu0 0.0
    %2440 = vmatmul.mubr.f32.gmra.mrb[0].mxu0 %v2371
    %v2441 = vpop.f32.mrb[0].mxu0
    %v2442 = vadd.f32 0.0, %v2441
    %v2443 = vpop.f32.mrb[0].mxu0
    %2444 = vdwg.mxu0
    %2445 = vrot.lane.b32.xlu0 %v1932, 120
    %v2446 = vpop.permute.xlu0 %2445
    %2447 = vrot.lane.b32.xlu0 %v2032, 120
    %v2448 = vpop.permute.xlu0 %2447
    %v2449 = vsel %vm345, %v2446, 0
    %v2451 = vsel %vm345, %v2448, 0
    %2453 = vmatprep.subr.mxu0 0.0
    %2454 = vmatpush1.xpose.msra.mxu0 %v2451
    %2455 = vmatprep.subr.mxu0 0.0
    %2456 = vmatpush1.xpose.msra.mxu0 0.0
    %2457 = vmatprep.subr.mxu0 0.0
    %2458 = vmatpush1.xpose.msra.mxu0 0.0
    %2459 = vmatprep.subr.mxu0 0.0
    %2460 = vmatpush1.xpose.msra.mxu0 0.0
    %2461 = vmatprep.subr.mxu0 0.0
    %2462 = vmatpush1.xpose.msra.mxu0 0.0
    %2463 = vmatprep.subr.mxu0 0.0
    %2464 = vmatpush1.xpose.msra.mxu0 0.0
    %2465 = vmatprep.subr.mxu0 0.0
    %2466 = vmatpush1.xpose.msra.mxu0 0.0
    %2467 = vmatprep.subr.mxu0 0.0
    %2468 = vmatpush1.xpose.msra.mxu0 0.0
    %2469 = vmatprep.subr.mxu0 0.0
    %2470 = vmatpush1.xpose.msra.mxu0 0.0
    %2471 = vmatprep.subr.mxu0 0.0
    %2472 = vmatpush1.xpose.msra.mxu0 0.0
    %2473 = vmatprep.subr.mxu0 0.0
    %2474 = vmatpush1.xpose.msra.mxu0 0.0
    %2475 = vmatprep.subr.mxu0 0.0
    %2476 = vmatpush1.xpose.msra.mxu0 0.0
    %2477 = vmatprep.subr.mxu0 0.0
    %2478 = vmatpush1.xpose.msra.mxu0 0.0
    %2479 = vmatprep.subr.mxu0 0.0
    %2480 = vmatpush1.xpose.msra.mxu0 0.0
    %2481 = vmatprep.subr.mxu0 0.0
    %2482 = vmatpush1.xpose.msra.mxu0 0.0
    %2483 = vmatprep.subr.mxu0 0.0
    %2484 = vmatpush1.xpose.msra.mxu0 0.0
    %2485 = vmatprep.subr.mxu0 0.0
    %2486 = vmatpush1.xpose.msra.mxu0 0.0
    %2487 = vmatprep.subr.mxu0 0.0
    %2488 = vmatpush1.xpose.msra.mxu0 0.0
    %2489 = vmatprep.subr.mxu0 0.0
    %2490 = vmatpush1.xpose.msra.mxu0 0.0
    %2491 = vmatprep.subr.mxu0 0.0
    %2492 = vmatpush1.xpose.msra.mxu0 0.0
    %2493 = vmatprep.subr.mxu0 0.0
    %2494 = vmatpush1.xpose.msra.mxu0 0.0
    %2495 = vmatprep.subr.mxu0 0.0
    %2496 = vmatpush1.xpose.msra.mxu0 0.0
    %2497 = vmatprep.subr.mxu0 0.0
    %2498 = vmatpush1.xpose.msra.mxu0 0.0
    %2499 = vmatprep.subr.mxu0 0.0
    %2500 = vmatpush1.xpose.msra.mxu0 0.0
    %2501 = vmatprep.subr.mxu0 0.0
    %2502 = vmatpush1.xpose.msra.mxu0 0.0
    %2503 = vmatprep.subr.mxu0 0.0
    %2504 = vmatpush1.xpose.msra.mxu0 0.0
    %2505 = vmatprep.subr.mxu0 0.0
    %2506 = vmatpush1.xpose.msra.mxu0 0.0
    %2507 = vmatprep.subr.mxu0 0.0
    %2508 = vmatpush1.xpose.msra.mxu0 0.0
    %2509 = vmatprep.subr.mxu0 0.0
    %2510 = vmatpush1.xpose.msra.mxu0 0.0
    %2511 = vmatprep.subr.mxu0 0.0
    %2512 = vmatpush1.xpose.msra.mxu0 0.0
    %2513 = vmatprep.subr.mxu0 0.0
    %2514 = vmatpush1.xpose.msra.mxu0 0.0
    %2515 = vmatprep.subr.mxu0 0.0
    %2516 = vmatpush1.xpose.msra.mxu0 0.0
    %2517 = vmatprep.mubr.f32.mxu0 0.0
    %2518 = vmatmul.mubr.f32.gmra.mrb[0].mxu0 %v2449
    %v2519 = vpop.f32.mrb[0].mxu0
    %v2520 = vadd.f32 0.0, %v2519
    %v2521 = vpop.f32.mrb[0].mxu0
    %2522 = vdwg.mxu0
    %v2523 = vsel %vm2189, %v2442, -1e+09
    %v2524 = vsel %vm2190, %v2520, -1e+09
    %v2525 = vsel %vm345, %v2523, -inf
    %2526 = vmax.xlane.f32.xlu0 %v2525
    %v2527 = vpop.xlane.xlu0 %2526
    %v2528 = vsel %vm345, %v2524, -inf
    %2529 = vmax.xlane.f32.xlu0 %v2528
    %v2530 = vpop.xlane.xlu0 %2529
    %v2531 = vsub.f32 %v2523, %v2527
    %v2532 = vsub.f32 %v2524, %v2530
    %v2533 = vmul.f32 %v2531, 1.442695
    %v2534 = vpow.pop %v2533
    %v2535 = vmul.f32 %v2532, 1.442695
    %v2536 = vpow.pop %v2535
    %v2537 = vsel %vm345, %v2534, 0.0
    %2538 = vadd.xlane.f32.xlu0 %v2537
    %v2539 = vpop.xlane.xlu0 %2538
    %v2540 = vsel %vm345, %v2536, 0.0
    %2541 = vadd.xlane.f32.xlu0 %v2540
    %v2542 = vpop.xlane.xlu0 %2541
    %v2543 = vrcp.pop %v2539
    %v2544 = vrcp.pop %v2542
    %v2545 = vmul.f32 %v2534, %v2543
    %v2546 = vmul.f32 %v2536, %v2544
    %2547 = vrot.lane.b32.xlu0 %v2027, 88
    %v2548 = vpop.permute.xlu0 %2547
    %v2551 = vsel %vm345, %v2545, 0
    %2553 = vmatprep.subr.mxu0 0.0
    %2554 = vmatpush1.msra.mxu0 %v2548
    %2555 = vmatprep.subr.mxu0 0.0
    %2556 = vmatpush1.msra.mxu0 0.0
    %2557 = vmatprep.subr.mxu0 0.0
    %2558 = vmatpush1.msra.mxu0 0.0
    %2559 = vmatprep.subr.mxu0 0.0
    %2560 = vmatpush1.msra.mxu0 0.0
    %2561 = vmatprep.subr.mxu0 0.0
    %2562 = vmatpush1.msra.mxu0 0.0
    %2563 = vmatprep.subr.mxu0 0.0
    %2564 = vmatpush1.msra.mxu0 0.0
    %2565 = vmatprep.subr.mxu0 0.0
    %2566 = vmatpush1.msra.mxu0 0.0
    %2567 = vmatprep.subr.mxu0 0.0
    %2568 = vmatpush1.msra.mxu0 0.0
    %2569 = vmatprep.subr.mxu0 0.0
    %2570 = vmatpush1.msra.mxu0 0.0
    %2571 = vmatprep.subr.mxu0 0.0
    %2572 = vmatpush1.msra.mxu0 0.0
    %2573 = vmatprep.subr.mxu0 0.0
    %2574 = vmatpush1.msra.mxu0 0.0
    %2575 = vmatprep.subr.mxu0 0.0
    %2576 = vmatpush1.msra.mxu0 0.0
    %2577 = vmatprep.subr.mxu0 0.0
    %2578 = vmatpush1.msra.mxu0 0.0
    %2579 = vmatprep.subr.mxu0 0.0
    %2580 = vmatpush1.msra.mxu0 0.0
    %2581 = vmatprep.subr.mxu0 0.0
    %2582 = vmatpush1.msra.mxu0 0.0
    %2583 = vmatprep.subr.mxu0 0.0
    %2584 = vmatpush1.msra.mxu0 0.0
    %2585 = vmatprep.subr.mxu0 0.0
    %2586 = vmatpush1.msra.mxu0 0.0
    %2587 = vmatprep.subr.mxu0 0.0
    %2588 = vmatpush1.msra.mxu0 0.0
    %2589 = vmatprep.subr.mxu0 0.0
    %2590 = vmatpush1.msra.mxu0 0.0
    %2591 = vmatprep.subr.mxu0 0.0
    %2592 = vmatpush1.msra.mxu0 0.0
    %2593 = vmatprep.subr.mxu0 0.0
    %2594 = vmatpush1.msra.mxu0 0.0
    %2595 = vmatprep.subr.mxu0 0.0
    %2596 = vmatpush1.msra.mxu0 0.0
    %2597 = vmatprep.subr.mxu0 0.0
    %2598 = vmatpush1.msra.mxu0 0.0
    %2599 = vmatprep.subr.mxu0 0.0
    %2600 = vmatpush1.msra.mxu0 0.0
    %2601 = vmatprep.subr.mxu0 0.0
    %2602 = vmatpush1.msra.mxu0 0.0
    %2603 = vmatprep.subr.mxu0 0.0
    %2604 = vmatpush1.msra.mxu0 0.0
    %2605 = vmatprep.subr.mxu0 0.0
    %2606 = vmatpush1.msra.mxu0 0.0
    %2607 = vmatprep.subr.mxu0 0.0
    %2608 = vmatpush1.msra.mxu0 0.0
    %2609 = vmatprep.subr.mxu0 0.0
    %2610 = vmatpush1.msra.mxu0 0.0
    %2611 = vmatprep.subr.mxu0 0.0
    %2612 = vmatpush1.msra.mxu0 0.0
    %2613 = vmatprep.subr.mxu0 0.0
    %2614 = vmatpush1.msra.mxu0 0.0
    %2615 = vmatprep.subr.mxu0 0.0
    %2616 = vmatpush1.msra.mxu0 0.0
    %2617 = vmatprep.mubr.f32.mxu0 0.0
    %2618 = vmatmul.mubr.f32.gmra.mrb[0].mxu0 %v2551
    %v2619 = vpop.f32.mrb[0].mxu0
    %v2620 = vadd.f32 0.0, %v2619
    %v2621 = vpop.f32.mrb[0].mxu0
    %2622 = vdwg.mxu0
    %2623 = vrot.lane.b32.xlu0 %v2032, 88
    %v2624 = vpop.permute.xlu0 %2623
    %v2627 = vsel %vm345, %v2546, 0
    %2629 = vmatprep.subr.mxu0 0.0
    %2630 = vmatpush1.msra.mxu0 %v2624
    %2631 = vmatprep.subr.mxu0 0.0
    %2632 = vmatpush1.msra.mxu0 0.0
    %2633 = vmatprep.subr.mxu0 0.0
    %2634 = vmatpush1.msra.mxu0 0.0
    %2635 = vmatprep.subr.mxu0 0.0
    %2636 = vmatpush1.msra.mxu0 0.0
    %2637 = vmatprep.subr.mxu0 0.0
    %2638 = vmatpush1.msra.mxu0 0.0
    %2639 = vmatprep.subr.mxu0 0.0
    %2640 = vmatpush1.msra.mxu0 0.0
    %2641 = vmatprep.subr.mxu0 0.0
    %2642 = vmatpush1.msra.mxu0 0.0
    %2643 = vmatprep.subr.mxu0 0.0
    %2644 = vmatpush1.msra.mxu0 0.0
    %2645 = vmatprep.subr.mxu0 0.0
    %2646 = vmatpush1.msra.mxu0 0.0
    %2647 = vmatprep.subr.mxu0 0.0
    %2648 = vmatpush1.msra.mxu0 0.0
    %2649 = vmatprep.subr.mxu0 0.0
    %2650 = vmatpush1.msra.mxu0 0.0
    %2651 = vmatprep.subr.mxu0 0.0
    %2652 = vmatpush1.msra.mxu0 0.0
    %2653 = vmatprep.subr.mxu0 0.0
    %2654 = vmatpush1.msra.mxu0 0.0
    %2655 = vmatprep.subr.mxu0 0.0
    %2656 = vmatpush1.msra.mxu0 0.0
    %2657 = vmatprep.subr.mxu0 0.0
    %2658 = vmatpush1.msra.mxu0 0.0
    %2659 = vmatprep.subr.mxu0 0.0
    %2660 = vmatpush1.msra.mxu0 0.0
    %2661 = vmatprep.subr.mxu0 0.0
    %2662 = vmatpush1.msra.mxu0 0.0
    %2663 = vmatprep.subr.mxu0 0.0
    %2664 = vmatpush1.msra.mxu0 0.0
    %2665 = vmatprep.subr.mxu0 0.0
    %2666 = vmatpush1.msra.mxu0 0.0
    %2667 = vmatprep.subr.mxu0 0.0
    %2668 = vmatpush1.msra.mxu0 0.0
    %2669 = vmatprep.subr.mxu0 0.0
    %2670 = vmatpush1.msra.mxu0 0.0
    %2671 = vmatprep.subr.mxu0 0.0
    %2672 = vmatpush1.msra.mxu0 0.0
    %2673 = vmatprep.subr.mxu0 0.0
    %2674 = vmatpush1.msra.mxu0 0.0
    %2675 = vmatprep.subr.mxu0 0.0
    %2676 = vmatpush1.msra.mxu0 0.0
    %2677 = vmatprep.subr.mxu0 0.0
    %2678 = vmatpush1.msra.mxu0 0.0
    %2679 = vmatprep.subr.mxu0 0.0
    %2680 = vmatpush1.msra.mxu0 0.0
    %2681 = vmatprep.subr.mxu0 0.0
    %2682 = vmatpush1.msra.mxu0 0.0
    %2683 = vmatprep.subr.mxu0 0.0
    %2684 = vmatpush1.msra.mxu0 0.0
    %2685 = vmatprep.subr.mxu0 0.0
    %2686 = vmatpush1.msra.mxu0 0.0
    %2687 = vmatprep.subr.mxu0 0.0
    %2688 = vmatpush1.msra.mxu0 0.0
    %2689 = vmatprep.subr.mxu0 0.0
    %2690 = vmatpush1.msra.mxu0 0.0
    %2691 = vmatprep.subr.mxu0 0.0
    %2692 = vmatpush1.msra.mxu0 0.0
    %2693 = vmatprep.mubr.f32.mxu0 0.0
    %2694 = vmatmul.mubr.f32.gmra.mrb[0].mxu0 %v2627
    %v2695 = vpop.f32.mrb[0].mxu0
    %v2696 = vadd.f32 0.0, %v2695
    %v2697 = vpop.f32.mrb[0].mxu0
    %2698 = vdwg.mxu0
    %2699 = vrot.lane.b32.xlu0 %v1927, 112
    %v2700 = vpop.permute.xlu0 %2699
    %2701 = vrot.lane.b32.xlu0 %v2027, 112
    %v2702 = vpop.permute.xlu0 %2701
    %v2703 = vsel %vm345, %v2700, 0
    %v2705 = vsel %vm345, %v2702, 0
    %2707 = vmatprep.subr.mxu0 0.0
    %2708 = vmatpush1.xpose.msra.mxu0 %v2705
    %2709 = vmatprep.subr.mxu0 0.0
    %2710 = vmatpush1.xpose.msra.mxu0 0.0
    %2711 = vmatprep.subr.mxu0 0.0
    %2712 = vmatpush1.xpose.msra.mxu0 0.0
    %2713 = vmatprep.subr.mxu0 0.0
    %2714 = vmatpush1.xpose.msra.mxu0 0.0
    %2715 = vmatprep.subr.mxu0 0.0
    %2716 = vmatpush1.xpose.msra.mxu0 0.0
    %2717 = vmatprep.subr.mxu0 0.0
    %2718 = vmatpush1.xpose.msra.mxu0 0.0
    %2719 = vmatprep.subr.mxu0 0.0
    %2720 = vmatpush1.xpose.msra.mxu0 0.0
    %2721 = vmatprep.subr.mxu0 0.0
    %2722 = vmatpush1.xpose.msra.mxu0 0.0
    %2723 = vmatprep.subr.mxu0 0.0
    %2724 = vmatpush1.xpose.msra.mxu0 0.0
    %2725 = vmatprep.subr.mxu0 0.0
    %2726 = vmatpush1.xpose.msra.mxu0 0.0
    %2727 = vmatprep.subr.mxu0 0.0
    %2728 = vmatpush1.xpose.msra.mxu0 0.0
    %2729 = vmatprep.subr.mxu0 0.0
    %2730 = vmatpush1.xpose.msra.mxu0 0.0
    %2731 = vmatprep.subr.mxu0 0.0
    %2732 = vmatpush1.xpose.msra.mxu0 0.0
    %2733 = vmatprep.subr.mxu0 0.0
    %2734 = vmatpush1.xpose.msra.mxu0 0.0
    %2735 = vmatprep.subr.mxu0 0.0
    %2736 = vmatpush1.xpose.msra.mxu0 0.0
    %2737 = vmatprep.subr.mxu0 0.0
    %2738 = vmatpush1.xpose.msra.mxu0 0.0
    %2739 = vmatprep.subr.mxu0 0.0
    %2740 = vmatpush1.xpose.msra.mxu0 0.0
    %2741 = vmatprep.subr.mxu0 0.0
    %2742 = vmatpush1.xpose.msra.mxu0 0.0
    %2743 = vmatprep.subr.mxu0 0.0
    %2744 = vmatpush1.xpose.msra.mxu0 0.0
    %2745 = vmatprep.subr.mxu0 0.0
    %2746 = vmatpush1.xpose.msra.mxu0 0.0
    %2747 = vmatprep.subr.mxu0 0.0
    %2748 = vmatpush1.xpose.msra.mxu0 0.0
    %2749 = vmatprep.subr.mxu0 0.0
    %2750 = vmatpush1.xpose.msra.mxu0 0.0
    %2751 = vmatprep.subr.mxu0 0.0
    %2752 = vmatpush1.xpose.msra.mxu0 0.0
    %2753 = vmatprep.subr.mxu0 0.0
    %2754 = vmatpush1.xpose.msra.mxu0 0.0
    %2755 = vmatprep.subr.mxu0 0.0
    %2756 = vmatpush1.xpose.msra.mxu0 0.0
    %2757 = vmatprep.subr.mxu0 0.0
    %2758 = vmatpush1.xpose.msra.mxu0 0.0
    %2759 = vmatprep.subr.mxu0 0.0
    %2760 = vmatpush1.xpose.msra.mxu0 0.0
    %2761 = vmatprep.subr.mxu0 0.0
    %2762 = vmatpush1.xpose.msra.mxu0 0.0
    %2763 = vmatprep.subr.mxu0 0.0
    %2764 = vmatpush1.xpose.msra.mxu0 0.0
    %2765 = vmatprep.subr.mxu0 0.0
    %2766 = vmatpush1.xpose.msra.mxu0 0.0
    %2767 = vmatprep.subr.mxu0 0.0
    %2768 = vmatpush1.xpose.msra.mxu0 0.0
    %2769 = vmatprep.subr.mxu0 0.0
    %2770 = vmatpush1.xpose.msra.mxu0 0.0
    %2771 = vmatprep.mubr.f32.mxu0 0.0
    %2772 = vmatmul.mubr.f32.gmra.mrb[0].mxu0 %v2703
    %v2773 = vpop.f32.mrb[0].mxu0
    %v2774 = vadd.f32 0.0, %v2773
    %v2775 = vpop.f32.mrb[0].mxu0
    %2776 = vdwg.mxu0
    %2777 = vrot.lane.b32.xlu0 %v1932, 112
    %v2778 = vpop.permute.xlu0 %2777
    %2779 = vrot.lane.b32.xlu0 %v2032, 112
    %v2780 = vpop.permute.xlu0 %2779
    %v2781 = vsel %vm345, %v2778, 0
    %v2783 = vsel %vm345, %v2780, 0
    %2785 = vmatprep.subr.mxu0 0.0
    %2786 = vmatpush1.xpose.msra.mxu0 %v2783
    %2787 = vmatprep.subr.mxu0 0.0
    %2788 = vmatpush1.xpose.msra.mxu0 0.0
    %2789 = vmatprep.subr.mxu0 0.0
    %2790 = vmatpush1.xpose.msra.mxu0 0.0
    %2791 = vmatprep.subr.mxu0 0.0
    %2792 = vmatpush1.xpose.msra.mxu0 0.0
    %2793 = vmatprep.subr.mxu0 0.0
    %2794 = vmatpush1.xpose.msra.mxu0 0.0
    %2795 = vmatprep.subr.mxu0 0.0
    %2796 = vmatpush1.xpose.msra.mxu0 0.0
    %2797 = vmatprep.subr.mxu0 0.0
    %2798 = vmatpush1.xpose.msra.mxu0 0.0
    %2799 = vmatprep.subr.mxu0 0.0
    %2800 = vmatpush1.xpose.msra.mxu0 0.0
    %2801 = vmatprep.subr.mxu0 0.0
    %2802 = vmatpush1.xpose.msra.mxu0 0.0
    %2803 = vmatprep.subr.mxu0 0.0
    %2804 = vmatpush1.xpose.msra.mxu0 0.0
    %2805 = vmatprep.subr.mxu0 0.0
    %2806 = vmatpush1.xpose.msra.mxu0 0.0
    %2807 = vmatprep.subr.mxu0 0.0
    %2808 = vmatpush1.xpose.msra.mxu0 0.0
    %2809 = vmatprep.subr.mxu0 0.0
    %2810 = vmatpush1.xpose.msra.mxu0 0.0
    %2811 = vmatprep.subr.mxu0 0.0
    %2812 = vmatpush1.xpose.msra.mxu0 0.0
    %2813 = vmatprep.subr.mxu0 0.0
    %2814 = vmatpush1.xpose.msra.mxu0 0.0
    %2815 = vmatprep.subr.mxu0 0.0
    %2816 = vmatpush1.xpose.msra.mxu0 0.0
    %2817 = vmatprep.subr.mxu0 0.0
    %2818 = vmatpush1.xpose.msra.mxu0 0.0
    %2819 = vmatprep.subr.mxu0 0.0
    %2820 = vmatpush1.xpose.msra.mxu0 0.0
    %2821 = vmatprep.subr.mxu0 0.0
    %2822 = vmatpush1.xpose.msra.mxu0 0.0
    %2823 = vmatprep.subr.mxu0 0.0
    %2824 = vmatpush1.xpose.msra.mxu0 0.0
    %2825 = vmatprep.subr.mxu0 0.0
    %2826 = vmatpush1.xpose.msra.mxu0 0.0
    %2827 = vmatprep.subr.mxu0 0.0
    %2828 = vmatpush1.xpose.msra.mxu0 0.0
    %2829 = vmatprep.subr.mxu0 0.0
    %2830 = vmatpush1.xpose.msra.mxu0 0.0
    %2831 = vmatprep.subr.mxu0 0.0
    %2832 = vmatpush1.xpose.msra.mxu0 0.0
    %2833 = vmatprep.subr.mxu0 0.0
    %2834 = vmatpush1.xpose.msra.mxu0 0.0
    %2835 = vmatprep.subr.mxu0 0.0
    %2836 = vmatpush1.xpose.msra.mxu0 0.0
    %2837 = vmatprep.subr.mxu0 0.0
    %2838 = vmatpush1.xpose.msra.mxu0 0.0
    %2839 = vmatprep.subr.mxu0 0.0
    %2840 = vmatpush1.xpose.msra.mxu0 0.0
    %2841 = vmatprep.subr.mxu0 0.0
    %2842 = vmatpush1.xpose.msra.mxu0 0.0
    %2843 = vmatprep.subr.mxu0 0.0
    %2844 = vmatpush1.xpose.msra.mxu0 0.0
    %2845 = vmatprep.subr.mxu0 0.0
    %2846 = vmatpush1.xpose.msra.mxu0 0.0
    %2847 = vmatprep.subr.mxu0 0.0
    %2848 = vmatpush1.xpose.msra.mxu0 0.0
    %2849 = vmatprep.mubr.f32.mxu0 0.0
    %2850 = vmatmul.mubr.f32.gmra.mrb[0].mxu0 %v2781
    %v2851 = vpop.f32.mrb[0].mxu0
    %v2852 = vadd.f32 0.0, %v2851
    %v2853 = vpop.f32.mrb[0].mxu0
    %2854 = vdwg.mxu0
    %v2855 = vsel %vm2189, %v2774, -1e+09
    %v2856 = vsel %vm2190, %v2852, -1e+09
    %v2857 = vsel %vm345, %v2855, -inf
    %2858 = vmax.xlane.f32.xlu0 %v2857
    %v2859 = vpop.xlane.xlu0 %2858
    %v2860 = vsel %vm345, %v2856, -inf
    %2861 = vmax.xlane.f32.xlu0 %v2860
    %v2862 = vpop.xlane.xlu0 %2861
    %v2863 = vsub.f32 %v2855, %v2859
    %v2864 = vsub.f32 %v2856, %v2862
    %v2865 = vmul.f32 %v2863, 1.442695
    %v2866 = vpow.pop %v2865
    %v2867 = vmul.f32 %v2864, 1.442695
    %v2868 = vpow.pop %v2867
    %v2869 = vsel %vm345, %v2866, 0.0
    %2870 = vadd.xlane.f32.xlu0 %v2869
    %v2871 = vpop.xlane.xlu0 %2870
    %v2872 = vsel %vm345, %v2868, 0.0
    %2873 = vadd.xlane.f32.xlu0 %v2872
    %v2874 = vpop.xlane.xlu0 %2873
    %v2875 = vrcp.pop %v2871
    %v2876 = vrcp.pop %v2874
    %v2877 = vmul.f32 %v2866, %v2875
    %v2878 = vmul.f32 %v2868, %v2876
    %2879 = vrot.lane.b32.xlu0 %v2027, 80
    %v2880 = vpop.permute.xlu0 %2879
    %v2883 = vsel %vm345, %v2877, 0
    %2885 = vmatprep.subr.mxu0 0.0
    %2886 = vmatpush1.msra.mxu0 %v2880
    %2887 = vmatprep.subr.mxu0 0.0
    %2888 = vmatpush1.msra.mxu0 0.0
    %2889 = vmatprep.subr.mxu0 0.0
    %2890 = vmatpush1.msra.mxu0 0.0
    %2891 = vmatprep.subr.mxu0 0.0
    %2892 = vmatpush1.msra.mxu0 0.0
    %2893 = vmatprep.subr.mxu0 0.0
    %2894 = vmatpush1.msra.mxu0 0.0
    %2895 = vmatprep.subr.mxu0 0.0
    %2896 = vmatpush1.msra.mxu0 0.0
    %2897 = vmatprep.subr.mxu0 0.0
    %2898 = vmatpush1.msra.mxu0 0.0
    %2899 = vmatprep.subr.mxu0 0.0
    %2900 = vmatpush1.msra.mxu0 0.0
    %2901 = vmatprep.subr.mxu0 0.0
    %2902 = vmatpush1.msra.mxu0 0.0
    %2903 = vmatprep.subr.mxu0 0.0
    %2904 = vmatpush1.msra.mxu0 0.0
    %2905 = vmatprep.subr.mxu0 0.0
    %2906 = vmatpush1.msra.mxu0 0.0
    %2907 = vmatprep.subr.mxu0 0.0
    %2908 = vmatpush1.msra.mxu0 0.0
    %2909 = vmatprep.subr.mxu0 0.0
    %2910 = vmatpush1.msra.mxu0 0.0
    %2911 = vmatprep.subr.mxu0 0.0
    %2912 = vmatpush1.msra.mxu0 0.0
    %2913 = vmatprep.subr.mxu0 0.0
    %2914 = vmatpush1.msra.mxu0 0.0
    %2915 = vmatprep.subr.mxu0 0.0
    %2916 = vmatpush1.msra.mxu0 0.0
    %2917 = vmatprep.subr.mxu0 0.0
    %2918 = vmatpush1.msra.mxu0 0.0
    %2919 = vmatprep.subr.mxu0 0.0
    %2920 = vmatpush1.msra.mxu0 0.0
    %2921 = vmatprep.subr.mxu0 0.0
    %2922 = vmatpush1.msra.mxu0 0.0
    %2923 = vmatprep.subr.mxu0 0.0
    %2924 = vmatpush1.msra.mxu0 0.0
    %2925 = vmatprep.subr.mxu0 0.0
    %2926 = vmatpush1.msra.mxu0 0.0
    %2927 = vmatprep.subr.mxu0 0.0
    %2928 = vmatpush1.msra.mxu0 0.0
    %2929 = vmatprep.subr.mxu0 0.0
    %2930 = vmatpush1.msra.mxu0 0.0
    %2931 = vmatprep.subr.mxu0 0.0
    %2932 = vmatpush1.msra.mxu0 0.0
    %2933 = vmatprep.subr.mxu0 0.0
    %2934 = vmatpush1.msra.mxu0 0.0
    %2935 = vmatprep.subr.mxu0 0.0
    %2936 = vmatpush1.msra.mxu0 0.0
    %2937 = vmatprep.subr.mxu0 0.0
    %2938 = vmatpush1.msra.mxu0 0.0
    %2939 = vmatprep.subr.mxu0 0.0
    %2940 = vmatpush1.msra.mxu0 0.0
    %2941 = vmatprep.subr.mxu0 0.0
    %2942 = vmatpush1.msra.mxu0 0.0
    %2943 = vmatprep.subr.mxu0 0.0
    %2944 = vmatpush1.msra.mxu0 0.0
    %2945 = vmatprep.subr.mxu0 0.0
    %2946 = vmatpush1.msra.mxu0 0.0
    %2947 = vmatprep.subr.mxu0 0.0
    %2948 = vmatpush1.msra.mxu0 0.0
    %2949 = vmatprep.mubr.f32.mxu0 0.0
    %2950 = vmatmul.mubr.f32.gmra.mrb[0].mxu0 %v2883
    %v2951 = vpop.f32.mrb[0].mxu0
    %v2952 = vadd.f32 0.0, %v2951
    %v2953 = vpop.f32.mrb[0].mxu0
    %2954 = vdwg.mxu0
    %2955 = vrot.lane.b32.xlu0 %v2032, 80
    %v2956 = vpop.permute.xlu0 %2955
    %v2959 = vsel %vm345, %v2878, 0
    %2961 = vmatprep.subr.mxu0 0.0
    %2962 = vmatpush1.msra.mxu0 %v2956
    %2963 = vmatprep.subr.mxu0 0.0
    %2964 = vmatpush1.msra.mxu0 0.0
    %2965 = vmatprep.subr.mxu0 0.0
    %2966 = vmatpush1.msra.mxu0 0.0
    %2967 = vmatprep.subr.mxu0 0.0
    %2968 = vmatpush1.msra.mxu0 0.0
    %2969 = vmatprep.subr.mxu0 0.0
    %2970 = vmatpush1.msra.mxu0 0.0
    %2971 = vmatprep.subr.mxu0 0.0
    %2972 = vmatpush1.msra.mxu0 0.0
    %2973 = vmatprep.subr.mxu0 0.0
    %2974 = vmatpush1.msra.mxu0 0.0
    %2975 = vmatprep.subr.mxu0 0.0
    %2976 = vmatpush1.msra.mxu0 0.0
    %2977 = vmatprep.subr.mxu0 0.0
    %2978 = vmatpush1.msra.mxu0 0.0
    %2979 = vmatprep.subr.mxu0 0.0
    %2980 = vmatpush1.msra.mxu0 0.0
    %2981 = vmatprep.subr.mxu0 0.0
    %2982 = vmatpush1.msra.mxu0 0.0
    %2983 = vmatprep.subr.mxu0 0.0
    %2984 = vmatpush1.msra.mxu0 0.0
    %2985 = vmatprep.subr.mxu0 0.0
    %2986 = vmatpush1.msra.mxu0 0.0
    %2987 = vmatprep.subr.mxu0 0.0
    %2988 = vmatpush1.msra.mxu0 0.0
    %2989 = vmatprep.subr.mxu0 0.0
    %2990 = vmatpush1.msra.mxu0 0.0
    %2991 = vmatprep.subr.mxu0 0.0
    %2992 = vmatpush1.msra.mxu0 0.0
    %2993 = vmatprep.subr.mxu0 0.0
    %2994 = vmatpush1.msra.mxu0 0.0
    %2995 = vmatprep.subr.mxu0 0.0
    %2996 = vmatpush1.msra.mxu0 0.0
    %2997 = vmatprep.subr.mxu0 0.0
    %2998 = vmatpush1.msra.mxu0 0.0
    %2999 = vmatprep.subr.mxu0 0.0
    %3000 = vmatpush1.msra.mxu0 0.0
    %3001 = vmatprep.subr.mxu0 0.0
    %3002 = vmatpush1.msra.mxu0 0.0
    %3003 = vmatprep.subr.mxu0 0.0
    %3004 = vmatpush1.msra.mxu0 0.0
    %3005 = vmatprep.subr.mxu0 0.0
    %3006 = vmatpush1.msra.mxu0 0.0
    %3007 = vmatprep.subr.mxu0 0.0
    %3008 = vmatpush1.msra.mxu0 0.0
    %3009 = vmatprep.subr.mxu0 0.0
    %3010 = vmatpush1.msra.mxu0 0.0
    %3011 = vmatprep.subr.mxu0 0.0
    %3012 = vmatpush1.msra.mxu0 0.0
    %3013 = vmatprep.subr.mxu0 0.0
    %3014 = vmatpush1.msra.mxu0 0.0
    %3015 = vmatprep.subr.mxu0 0.0
    %3016 = vmatpush1.msra.mxu0 0.0
    %3017 = vmatprep.subr.mxu0 0.0
    %3018 = vmatpush1.msra.mxu0 0.0
    %3019 = vmatprep.subr.mxu0 0.0
    %3020 = vmatpush1.msra.mxu0 0.0
    %3021 = vmatprep.subr.mxu0 0.0
    %3022 = vmatpush1.msra.mxu0 0.0
    %3023 = vmatprep.subr.mxu0 0.0
    %3024 = vmatpush1.msra.mxu0 0.0
    %3025 = vmatprep.mubr.f32.mxu0 0.0
    %3026 = vmatmul.mubr.f32.gmra.mrb[0].mxu0 %v2959
    %v3027 = vpop.f32.mrb[0].mxu0
    %v3028 = vadd.f32 0.0, %v3027
    %v3029 = vpop.f32.mrb[0].mxu0
    %3030 = vdwg.mxu0
    %3031 = vrot.lane.b32.xlu0 %v1927, 104
    %v3032 = vpop.permute.xlu0 %3031
    %3033 = vrot.lane.b32.xlu0 %v2027, 104
    %v3034 = vpop.permute.xlu0 %3033
    %v3035 = vsel %vm345, %v3032, 0
    %v3037 = vsel %vm345, %v3034, 0
    %3039 = vmatprep.subr.mxu0 0.0
    %3040 = vmatpush1.xpose.msra.mxu0 %v3037
    %3041 = vmatprep.subr.mxu0 0.0
    %3042 = vmatpush1.xpose.msra.mxu0 0.0
    %3043 = vmatprep.subr.mxu0 0.0
    %3044 = vmatpush1.xpose.msra.mxu0 0.0
    %3045 = vmatprep.subr.mxu0 0.0
    %3046 = vmatpush1.xpose.msra.mxu0 0.0
    %3047 = vmatprep.subr.mxu0 0.0
    %3048 = vmatpush1.xpose.msra.mxu0 0.0
    %3049 = vmatprep.subr.mxu0 0.0
    %3050 = vmatpush1.xpose.msra.mxu0 0.0
    %3051 = vmatprep.subr.mxu0 0.0
    %3052 = vmatpush1.xpose.msra.mxu0 0.0
    %3053 = vmatprep.subr.mxu0 0.0
    %3054 = vmatpush1.xpose.msra.mxu0 0.0
    %3055 = vmatprep.subr.mxu0 0.0
    %3056 = vmatpush1.xpose.msra.mxu0 0.0
    %3057 = vmatprep.subr.mxu0 0.0
    %3058 = vmatpush1.xpose.msra.mxu0 0.0
    %3059 = vmatprep.subr.mxu0 0.0
    %3060 = vmatpush1.xpose.msra.mxu0 0.0
    %3061 = vmatprep.subr.mxu0 0.0
    %3062 = vmatpush1.xpose.msra.mxu0 0.0
    %3063 = vmatprep.subr.mxu0 0.0
    %3064 = vmatpush1.xpose.msra.mxu0 0.0
    %3065 = vmatprep.subr.mxu0 0.0
    %3066 = vmatpush1.xpose.msra.mxu0 0.0
    %3067 = vmatprep.subr.mxu0 0.0
    %3068 = vmatpush1.xpose.msra.mxu0 0.0
    %3069 = vmatprep.subr.mxu0 0.0
    %3070 = vmatpush1.xpose.msra.mxu0 0.0
    %3071 = vmatprep.subr.mxu0 0.0
    %3072 = vmatpush1.xpose.msra.mxu0 0.0
    %3073 = vmatprep.subr.mxu0 0.0
    %3074 = vmatpush1.xpose.msra.mxu0 0.0
    %3075 = vmatprep.subr.mxu0 0.0
    %3076 = vmatpush1.xpose.msra.mxu0 0.0
    %3077 = vmatprep.subr.mxu0 0.0
    %3078 = vmatpush1.xpose.msra.mxu0 0.0
    %3079 = vmatprep.subr.mxu0 0.0
    %3080 = vmatpush1.xpose.msra.mxu0 0.0
    %3081 = vmatprep.subr.mxu0 0.0
    %3082 = vmatpush1.xpose.msra.mxu0 0.0
    %3083 = vmatprep.subr.mxu0 0.0
    %3084 = vmatpush1.xpose.msra.mxu0 0.0
    %3085 = vmatprep.subr.mxu0 0.0
    %3086 = vmatpush1.xpose.msra.mxu0 0.0
    %3087 = vmatprep.subr.mxu0 0.0
    %3088 = vmatpush1.xpose.msra.mxu0 0.0
    %3089 = vmatprep.subr.mxu0 0.0
    %3090 = vmatpush1.xpose.msra.mxu0 0.0
    %3091 = vmatprep.subr.mxu0 0.0
    %3092 = vmatpush1.xpose.msra.mxu0 0.0
    %3093 = vmatprep.subr.mxu0 0.0
    %3094 = vmatpush1.xpose.msra.mxu0 0.0
    %3095 = vmatprep.subr.mxu0 0.0
    %3096 = vmatpush1.xpose.msra.mxu0 0.0
    %3097 = vmatprep.subr.mxu0 0.0
    %3098 = vmatpush1.xpose.msra.mxu0 0.0
    %3099 = vmatprep.subr.mxu0 0.0
    %3100 = vmatpush1.xpose.msra.mxu0 0.0
    %3101 = vmatprep.subr.mxu0 0.0
    %3102 = vmatpush1.xpose.msra.mxu0 0.0
    %3103 = vmatprep.mubr.f32.mxu0 0.0
    %3104 = vmatmul.mubr.f32.gmra.mrb[0].mxu0 %v3035
    %v3105 = vpop.f32.mrb[0].mxu0
    %v3106 = vadd.f32 0.0, %v3105
    %v3107 = vpop.f32.mrb[0].mxu0
    %3108 = vdwg.mxu0
    %3109 = vrot.lane.b32.xlu0 %v1932, 104
    %v3110 = vpop.permute.xlu0 %3109
    %3111 = vrot.lane.b32.xlu0 %v2032, 104
    %v3112 = vpop.permute.xlu0 %3111
    %v3113 = vsel %vm345, %v3110, 0
    %v3115 = vsel %vm345, %v3112, 0
    %3117 = vmatprep.subr.mxu0 0.0
    %3118 = vmatpush1.xpose.msra.mxu0 %v3115
    %3119 = vmatprep.subr.mxu0 0.0
    %3120 = vmatpush1.xpose.msra.mxu0 0.0
    %3121 = vmatprep.subr.mxu0 0.0
    %3122 = vmatpush1.xpose.msra.mxu0 0.0
    %3123 = vmatprep.subr.mxu0 0.0
    %3124 = vmatpush1.xpose.msra.mxu0 0.0
    %3125 = vmatprep.subr.mxu0 0.0
    %3126 = vmatpush1.xpose.msra.mxu0 0.0
    %3127 = vmatprep.subr.mxu0 0.0
    %3128 = vmatpush1.xpose.msra.mxu0 0.0
    %3129 = vmatprep.subr.mxu0 0.0
    %3130 = vmatpush1.xpose.msra.mxu0 0.0
    %3131 = vmatprep.subr.mxu0 0.0
    %3132 = vmatpush1.xpose.msra.mxu0 0.0
    %3133 = vmatprep.subr.mxu0 0.0
    %3134 = vmatpush1.xpose.msra.mxu0 0.0
    %3135 = vmatprep.subr.mxu0 0.0
    %3136 = vmatpush1.xpose.msra.mxu0 0.0
    %3137 = vmatprep.subr.mxu0 0.0
    %3138 = vmatpush1.xpose.msra.mxu0 0.0
    %3139 = vmatprep.subr.mxu0 0.0
    %3140 = vmatpush1.xpose.msra.mxu0 0.0
    %3141 = vmatprep.subr.mxu0 0.0
    %3142 = vmatpush1.xpose.msra.mxu0 0.0
    %3143 = vmatprep.subr.mxu0 0.0
    %3144 = vmatpush1.xpose.msra.mxu0 0.0
    %3145 = vmatprep.subr.mxu0 0.0
    %3146 = vmatpush1.xpose.msra.mxu0 0.0
    %3147 = vmatprep.subr.mxu0 0.0
    %3148 = vmatpush1.xpose.msra.mxu0 0.0
    %3149 = vmatprep.subr.mxu0 0.0
    %3150 = vmatpush1.xpose.msra.mxu0 0.0
    %3151 = vmatprep.subr.mxu0 0.0
    %3152 = vmatpush1.xpose.msra.mxu0 0.0
    %3153 = vmatprep.subr.mxu0 0.0
    %3154 = vmatpush1.xpose.msra.mxu0 0.0
    %3155 = vmatprep.subr.mxu0 0.0
    %3156 = vmatpush1.xpose.msra.mxu0 0.0
    %3157 = vmatprep.subr.mxu0 0.0
    %3158 = vmatpush1.xpose.msra.mxu0 0.0
    %3159 = vmatprep.subr.mxu0 0.0
    %3160 = vmatpush1.xpose.msra.mxu0 0.0
    %3161 = vmatprep.subr.mxu0 0.0
    %3162 = vmatpush1.xpose.msra.mxu0 0.0
    %3163 = vmatprep.subr.mxu0 0.0
    %3164 = vmatpush1.xpose.msra.mxu0 0.0
    %3165 = vmatprep.subr.mxu0 0.0
    %3166 = vmatpush1.xpose.msra.mxu0 0.0
    %3167 = vmatprep.subr.mxu0 0.0
    %3168 = vmatpush1.xpose.msra.mxu0 0.0
    %3169 = vmatprep.subr.mxu0 0.0
    %3170 = vmatpush1.xpose.msra.mxu0 0.0
    %3171 = vmatprep.subr.mxu0 0.0
    %3172 = vmatpush1.xpose.msra.mxu0 0.0
    %3173 = vmatprep.subr.mxu0 0.0
    %3174 = vmatpush1.xpose.msra.mxu0 0.0
    %3175 = vmatprep.subr.mxu0 0.0
    %3176 = vmatpush1.xpose.msra.mxu0 0.0
    %3177 = vmatprep.subr.mxu0 0.0
    %3178 = vmatpush1.xpose.msra.mxu0 0.0
    %3179 = vmatprep.subr.mxu0 0.0
    %3180 = vmatpush1.xpose.msra.mxu0 0.0
    %3181 = vmatprep.mubr.f32.mxu0 0.0
    %3182 = vmatmul.mubr.f32.gmra.mrb[0].mxu0 %v3113
    %v3183 = vpop.f32.mrb[0].mxu0
    %v3184 = vadd.f32 0.0, %v3183
    %v3185 = vpop.f32.mrb[0].mxu0
    %3186 = vdwg.mxu0
    %v3187 = vsel %vm2189, %v3106, -1e+09
    %v3188 = vsel %vm2190, %v3184, -1e+09
    %v3189 = vsel %vm345, %v3187, -inf
    %3190 = vmax.xlane.f32.xlu0 %v3189
    %v3191 = vpop.xlane.xlu0 %3190
    %v3192 = vsel %vm345, %v3188, -inf
    %3193 = vmax.xlane.f32.xlu0 %v3192
    %v3194 = vpop.xlane.xlu0 %3193
    %v3195 = vsub.f32 %v3187, %v3191
    %v3196 = vsub.f32 %v3188, %v3194
    %v3197 = vmul.f32 %v3195, 1.442695
    %v3198 = vpow.pop %v3197
    %v3199 = vmul.f32 %v3196, 1.442695
    %v3200 = vpow.pop %v3199
    %v3201 = vsel %vm345, %v3198, 0.0
    %3202 = vadd.xlane.f32.xlu0 %v3201
    %v3203 = vpop.xlane.xlu0 %3202
    %v3204 = vsel %vm345, %v3200, 0.0
    %3205 = vadd.xlane.f32.xlu0 %v3204
    %v3206 = vpop.xlane.xlu0 %3205
    %v3207 = vrcp.pop %v3203
    %v3208 = vrcp.pop %v3206
    %v3209 = vmul.f32 %v3198, %v3207
    %v3210 = vmul.f32 %v3200, %v3208
    %3211 = vrot.lane.b32.xlu0 %v2027, 72
    %v3212 = vpop.permute.xlu0 %3211
    %v3215 = vsel %vm345, %v3209, 0
    %3217 = vmatprep.subr.mxu0 0.0
    %3218 = vmatpush1.msra.mxu0 %v3212
    %3219 = vmatprep.subr.mxu0 0.0
    %3220 = vmatpush1.msra.mxu0 0.0
    %3221 = vmatprep.subr.mxu0 0.0
    %3222 = vmatpush1.msra.mxu0 0.0
    %3223 = vmatprep.subr.mxu0 0.0
    %3224 = vmatpush1.msra.mxu0 0.0
    %3225 = vmatprep.subr.mxu0 0.0
    %3226 = vmatpush1.msra.mxu0 0.0
    %3227 = vmatprep.subr.mxu0 0.0
    %3228 = vmatpush1.msra.mxu0 0.0
    %3229 = vmatprep.subr.mxu0 0.0
    %3230 = vmatpush1.msra.mxu0 0.0
    %3231 = vmatprep.subr.mxu0 0.0
    %3232 = vmatpush1.msra.mxu0 0.0
    %3233 = vmatprep.subr.mxu0 0.0
    %3234 = vmatpush1.msra.mxu0 0.0
    %3235 = vmatprep.subr.mxu0 0.0
    %3236 = vmatpush1.msra.mxu0 0.0
    %3237 = vmatprep.subr.mxu0 0.0
    %3238 = vmatpush1.msra.mxu0 0.0
    %3239 = vmatprep.subr.mxu0 0.0
    %3240 = vmatpush1.msra.mxu0 0.0
    %3241 = vmatprep.subr.mxu0 0.0
    %3242 = vmatpush1.msra.mxu0 0.0
    %3243 = vmatprep.subr.mxu0 0.0
    %3244 = vmatpush1.msra.mxu0 0.0
    %3245 = vmatprep.subr.mxu0 0.0
    %3246 = vmatpush1.msra.mxu0 0.0
    %3247 = vmatprep.subr.mxu0 0.0
    %3248 = vmatpush1.msra.mxu0 0.0
    %3249 = vmatprep.subr.mxu0 0.0
    %3250 = vmatpush1.msra.mxu0 0.0
    %3251 = vmatprep.subr.mxu0 0.0
    %3252 = vmatpush1.msra.mxu0 0.0
    %3253 = vmatprep.subr.mxu0 0.0
    %3254 = vmatpush1.msra.mxu0 0.0
    %3255 = vmatprep.subr.mxu0 0.0
    %3256 = vmatpush1.msra.mxu0 0.0
    %3257 = vmatprep.subr.mxu0 0.0
    %3258 = vmatpush1.msra.mxu0 0.0
    %3259 = vmatprep.subr.mxu0 0.0
    %3260 = vmatpush1.msra.mxu0 0.0
    %3261 = vmatprep.subr.mxu0 0.0
    %3262 = vmatpush1.msra.mxu0 0.0
    %3263 = vmatprep.subr.mxu0 0.0
    %3264 = vmatpush1.msra.mxu0 0.0
    %3265 = vmatprep.subr.mxu0 0.0
    %3266 = vmatpush1.msra.mxu0 0.0
    %3267 = vmatprep.subr.mxu0 0.0
    %3268 = vmatpush1.msra.mxu0 0.0
    %3269 = vmatprep.subr.mxu0 0.0
    %3270 = vmatpush1.msra.mxu0 0.0
    %3271 = vmatprep.subr.mxu0 0.0
    %3272 = vmatpush1.msra.mxu0 0.0
    %3273 = vmatprep.subr.mxu0 0.0
    %3274 = vmatpush1.msra.mxu0 0.0
    %3275 = vmatprep.subr.mxu0 0.0
    %3276 = vmatpush1.msra.mxu0 0.0
    %3277 = vmatprep.subr.mxu0 0.0
    %3278 = vmatpush1.msra.mxu0 0.0
    %3279 = vmatprep.subr.mxu0 0.0
    %3280 = vmatpush1.msra.mxu0 0.0
    %3281 = vmatprep.mubr.f32.mxu0 0.0
    %3282 = vmatmul.mubr.f32.gmra.mrb[0].mxu0 %v3215
    %v3283 = vpop.f32.mrb[0].mxu0
    %v3284 = vadd.f32 0.0, %v3283
    %v3285 = vpop.f32.mrb[0].mxu0
    %3286 = vdwg.mxu0
    %3287 = vrot.lane.b32.xlu0 %v2032, 72
    %v3288 = vpop.permute.xlu0 %3287
    %v3291 = vsel %vm345, %v3210, 0
    %3293 = vmatprep.subr.mxu0 0.0
    %3294 = vmatpush1.msra.mxu0 %v3288
    %3295 = vmatprep.subr.mxu0 0.0
    %3296 = vmatpush1.msra.mxu0 0.0
    %3297 = vmatprep.subr.mxu0 0.0
    %3298 = vmatpush1.msra.mxu0 0.0
    %3299 = vmatprep.subr.mxu0 0.0
    %3300 = vmatpush1.msra.mxu0 0.0
    %3301 = vmatprep.subr.mxu0 0.0
    %3302 = vmatpush1.msra.mxu0 0.0
    %3303 = vmatprep.subr.mxu0 0.0
    %3304 = vmatpush1.msra.mxu0 0.0
    %3305 = vmatprep.subr.mxu0 0.0
    %3306 = vmatpush1.msra.mxu0 0.0
    %3307 = vmatprep.subr.mxu0 0.0
    %3308 = vmatpush1.msra.mxu0 0.0
    %3309 = vmatprep.subr.mxu0 0.0
    %3310 = vmatpush1.msra.mxu0 0.0
    %3311 = vmatprep.subr.mxu0 0.0
    %3312 = vmatpush1.msra.mxu0 0.0
    %3313 = vmatprep.subr.mxu0 0.0
    %3314 = vmatpush1.msra.mxu0 0.0
    %3315 = vmatprep.subr.mxu0 0.0
    %3316 = vmatpush1.msra.mxu0 0.0
    %3317 = vmatprep.subr.mxu0 0.0
    %3318 = vmatpush1.msra.mxu0 0.0
    %3319 = vmatprep.subr.mxu0 0.0
    %3320 = vmatpush1.msra.mxu0 0.0
    %3321 = vmatprep.subr.mxu0 0.0
    %3322 = vmatpush1.msra.mxu0 0.0
    %3323 = vmatprep.subr.mxu0 0.0
    %3324 = vmatpush1.msra.mxu0 0.0
    %3325 = vmatprep.subr.mxu0 0.0
    %3326 = vmatpush1.msra.mxu0 0.0
    %3327 = vmatprep.subr.mxu0 0.0
    %3328 = vmatpush1.msra.mxu0 0.0
    %3329 = vmatprep.subr.mxu0 0.0
    %3330 = vmatpush1.msra.mxu0 0.0
    %3331 = vmatprep.subr.mxu0 0.0
    %3332 = vmatpush1.msra.mxu0 0.0
    %3333 = vmatprep.subr.mxu0 0.0
    %3334 = vmatpush1.msra.mxu0 0.0
    %3335 = vmatprep.subr.mxu0 0.0
    %3336 = vmatpush1.msra.mxu0 0.0
    %3337 = vmatprep.subr.mxu0 0.0
    %3338 = vmatpush1.msra.mxu0 0.0
    %3339 = vmatprep.subr.mxu0 0.0
    %3340 = vmatpush1.msra.mxu0 0.0
    %3341 = vmatprep.subr.mxu0 0.0
    %3342 = vmatpush1.msra.mxu0 0.0
    %3343 = vmatprep.subr.mxu0 0.0
    %3344 = vmatpush1.msra.mxu0 0.0
    %3345 = vmatprep.subr.mxu0 0.0
    %3346 = vmatpush1.msra.mxu0 0.0
    %3347 = vmatprep.subr.mxu0 0.0
    %3348 = vmatpush1.msra.mxu0 0.0
    %3349 = vmatprep.subr.mxu0 0.0
    %3350 = vmatpush1.msra.mxu0 0.0
    %3351 = vmatprep.subr.mxu0 0.0
    %3352 = vmatpush1.msra.mxu0 0.0
    %3353 = vmatprep.subr.mxu0 0.0
    %3354 = vmatpush1.msra.mxu0 0.0
    %3355 = vmatprep.subr.mxu0 0.0
    %3356 = vmatpush1.msra.mxu0 0.0
    %3357 = vmatprep.mubr.f32.mxu0 0.0
    %3358 = vmatmul.mubr.f32.gmra.mrb[0].mxu0 %v3291
    %v3359 = vpop.f32.mrb[0].mxu0
    %v3360 = vadd.f32 0.0, %v3359
    %v3361 = vpop.f32.mrb[0].mxu0
    %3362 = vdwg.mxu0
    %3365 = vrot.lane.b32.xlu0 %v2620, 8
    %v3366 = vpop.permute.xlu0 %3365
    %3367 = vrot.lane.b32.xlu0 %v2696, 8
    %v3368 = vpop.permute.xlu0 %3367
    %3373 = vrot.lane.b32.xlu0 %v2952, 16
    %v3374 = vpop.permute.xlu0 %3373
    %3375 = vrot.lane.b32.xlu0 %v3028, 16
    %v3376 = vpop.permute.xlu0 %3375
    %3381 = vrot.lane.b32.xlu0 %v3284, 24
    %v3382 = vpop.permute.xlu0 %3381
    %3383 = vrot.lane.b32.xlu0 %v3360, 24
    %v3384 = vpop.permute.xlu0 %3383
    %v3387 = vsel %vm345, %v2288, %v3366
    %v3388 = vsel %vm345, %v2364, %v3368
    %v3389 = vsel %vm1697, %v3387, %v3374
    %v3390 = vsel %vm1697, %v3388, %v3376
    %v3391 = vsel %vm1700, %v3389, %v3382
    %v3392 = vsel %vm1700, %v3390, %v3384
    %v3393 = vld [vmem:[%s10] sm:$0xff]
    %v3394 = vld [vmem:[%s10 + $0x8] sm:$0xff]
    %v3395 = vld [vmem:[%s10 + $0x10] sm:$0xff]
    %v3396 = vld [vmem:[%s10 + $0x18] sm:$0xff]
    %v3398 = vsel %vm202, %v3391, 0
    %v3401 = vsel %vm202, %v3392, 0
    %3403 = vmatprep.subr.mxu0 0.0
    %3404 = vmatpush1.msra.mxu0 %v3393
    %3405 = vmatprep.subr.mxu0 0.0
    %3406 = vmatpush1.msra.mxu0 %v3394
    %3407 = vmatprep.subr.mxu0 0.0
    %3408 = vmatpush1.msra.mxu0 %v3395
    %3409 = vmatprep.subr.mxu0 0.0
    %3410 = vmatpush1.msra.mxu0 %v3396
    %3411 = vmatprep.subr.mxu0 0.0
    %3412 = vmatpush1.msra.mxu0 0.0
    %3413 = vmatprep.subr.mxu0 0.0
    %3414 = vmatpush1.msra.mxu0 0.0
    %3415 = vmatprep.subr.mxu0 0.0
    %3416 = vmatpush1.msra.mxu0 0.0
    %3417 = vmatprep.subr.mxu0 0.0
    %3418 = vmatpush1.msra.mxu0 0.0
    %3419 = vmatprep.subr.mxu0 0.0
    %3420 = vmatpush1.msra.mxu0 0.0
    %3421 = vmatprep.subr.mxu0 0.0
    %3422 = vmatpush1.msra.mxu0 0.0
    %3423 = vmatprep.subr.mxu0 0.0
    %3424 = vmatpush1.msra.mxu0 0.0
    %3425 = vmatprep.subr.mxu0 0.0
    %3426 = vmatpush1.msra.mxu0 0.0
    %3427 = vmatprep.subr.mxu0 0.0
    %3428 = vmatpush1.msra.mxu0 0.0
    %3429 = vmatprep.subr.mxu0 0.0
    %3430 = vmatpush1.msra.mxu0 0.0
    %3431 = vmatprep.subr.mxu0 0.0
    %3432 = vmatpush1.msra.mxu0 0.0
    %3433 = vmatprep.subr.mxu0 0.0
    %3434 = vmatpush1.msra.mxu0 0.0
    %3435 = vmatprep.subr.mxu0 0.0
    %3436 = vmatpush1.msra.mxu0 0.0
    %3437 = vmatprep.subr.mxu0 0.0
    %3438 = vmatpush1.msra.mxu0 0.0
    %3439 = vmatprep.subr.mxu0 0.0
    %3440 = vmatpush1.msra.mxu0 0.0
    %3441 = vmatprep.subr.mxu0 0.0
    %3442 = vmatpush1.msra.mxu0 0.0
    %3443 = vmatprep.subr.mxu0 0.0
    %3444 = vmatpush1.msra.mxu0 0.0
    %3445 = vmatprep.subr.mxu0 0.0
    %3446 = vmatpush1.msra.mxu0 0.0
    %3447 = vmatprep.subr.mxu0 0.0
    %3448 = vmatpush1.msra.mxu0 0.0
    %3449 = vmatprep.subr.mxu0 0.0
    %3450 = vmatpush1.msra.mxu0 0.0
    %3451 = vmatprep.subr.mxu0 0.0
    %3452 = vmatpush1.msra.mxu0 0.0
    %3453 = vmatprep.subr.mxu0 0.0
    %3454 = vmatpush1.msra.mxu0 0.0
    %3455 = vmatprep.subr.mxu0 0.0
    %3456 = vmatpush1.msra.mxu0 0.0
    %3457 = vmatprep.subr.mxu0 0.0
    %3458 = vmatpush1.msra.mxu0 0.0
    %3459 = vmatprep.subr.mxu0 0.0
    %3460 = vmatpush1.msra.mxu0 0.0
    %3461 = vmatprep.subr.mxu0 0.0
    %3462 = vmatpush1.msra.mxu0 0.0
    %3463 = vmatprep.subr.mxu0 0.0
    %3464 = vmatpush1.msra.mxu0 0.0
    %3465 = vmatprep.subr.mxu0 0.0
    %3466 = vmatpush1.msra.mxu0 0.0
    %3467 = vmatprep.mubr.f32.mxu0 0.0
    %3468 = vmatmul.mubr.f32.gmra.mrb[0].mxu0 %v3398
    %v3469 = vpop.f32.mrb[0].mxu0
    %v3470 = vadd.f32 0.0, %v3469
    %v3471 = vpop.f32.mrb[0].mxu0
    %3472 = vmatprep.mubr.f32.mxu0 0.0
    %3473 = vmatmul.mubr.f32.gmra.mrb[0].mxu0 %v3401
    %v3474 = vpop.f32.mrb[0].mxu0
    %v3475 = vadd.f32 0.0, %v3474
    %v3476 = vpop.f32.mrb[0].mxu0
    %3477 = vdwg.mxu0
    %v3478 = vadd.f32 %v1797, %v3470
    %v3479 = vadd.f32 %v1798, %v3475
    %v3480 = vld [vmem:[%s11] sm:$0x1]
    %v3482 = vlaneseq
    %v3483 = vshrl.u32 %v3482, 7
    %v3484 = vsub.s32 0, %v3483
    %v3485 = vrot.slane %v3480, %v3484
    %v3487 = vadd.f32 %v3478, %v3485
    %v3488 = vadd.f32 %v3479, %v3485
    %v3489 = vsel %vm202, %v3487, 0.0
    %3490 = vadd.xlane.f32.xlu0 %v3489
    %v3491 = vpop.xlane.xlu0 %3490
    %v3492 = vsel %vm202, %v3488, 0.0
    %3493 = vadd.xlane.f32.xlu0 %v3492
    %v3494 = vpop.xlane.xlu0 %3493
    %v3495 = vmul.f32 %v3491, %v209
    %v3496 = vmul.f32 %v3494, %v209
    %v3497 = vsub.f32 %v3487, %v3495
    %v3498 = vsub.f32 %v3488, %v3496
    %v3499 = vmul.f32 %v3497, %v3497
    %v3500 = vmul.f32 %v3498, %v3498
    %v3501 = vsel %vm202, %v3499, 0.0
    %3502 = vadd.xlane.f32.xlu0 %v3501
    %v3503 = vpop.xlane.xlu0 %3502
    %v3504 = vsel %vm202, %v3500, 0.0
    %3505 = vadd.xlane.f32.xlu0 %v3504
    %v3506 = vpop.xlane.xlu0 %3505
    %v3507 = vmul.f32 %v3503, %v209
    %v3508 = vmul.f32 %v3506, %v209
    %v3509 = vld [vmem:[%s20] sm:$0x1]
    %v3511 = vlaneseq
    %v3512 = vshrl.u32 %v3511, 7
    %v3513 = vsub.s32 0, %v3512
    %v3514 = vrot.slane %v3509, %v3513
    %v3516 = vmul.f32 %v3514, %v3497
    %v3517 = vmul.f32 %v3514, %v3498
    %v3518 = vadd.f32 %v3507, 1e-06
    %v3519 = vadd.f32 %v3508, 1e-06
    %v3520 = vrsqrt.pop %v3518
    %v3521 = vrsqrt.pop %v3519
    %v3522 = vmul.f32 %v3516, %v3520
    %v3523 = vmul.f32 %v3517, %v3521
    %v3524 = vld [vmem:[%s21] sm:$0x1]
    %v3526 = vlaneseq
    %v3527 = vshrl.u32 %v3526, 7
    %v3528 = vsub.s32 0, %v3527
    %v3529 = vrot.slane %v3524, %v3528
    %v3531 = vadd.f32 %v3522, %v3529
    %v3532 = vadd.f32 %v3523, %v3529
    %v3533 = vld [vmem:[#allocation10] sm:$0xff]
    %v3534 = vld [vmem:[#allocation10 + $0x8] sm:$0xff]
    %v3535 = vld [vmem:[#allocation10 + $0x10] sm:$0xff]
    %v3536 = vld [vmem:[#allocation10 + $0x18] sm:$0xff]
    %v3537 = vld [vmem:[#allocation11] sm:$0x1]
    %v3539 = vlaneseq
    %v3540 = vshrl.u32 %v3539, 7
    %v3541 = vsub.s32 0, %v3540
    %v3542 = vrot.slane %v3537, %v3541
    %v3545 = vsel %vm202, %v3531, 0
    %v3548 = vsel %vm202, %v3532, 0
    %3550 = vmatprep.subr.mxu0 0.0
    %3551 = vmatpush1.msra.mxu0 %v3533
    %3552 = vmatprep.subr.mxu0 0.0
    %3553 = vmatpush1.msra.mxu0 %v3534
    %3554 = vmatprep.subr.mxu0 0.0
    %3555 = vmatpush1.msra.mxu0 %v3535
    %3556 = vmatprep.subr.mxu0 0.0
    %3557 = vmatpush1.msra.mxu0 %v3536
    %3558 = vmatprep.subr.mxu0 0.0
    %3559 = vmatpush1.msra.mxu0 0.0
    %3560 = vmatprep.subr.mxu0 0.0
    %3561 = vmatpush1.msra.mxu0 0.0
    %3562 = vmatprep.subr.mxu0 0.0
    %3563 = vmatpush1.msra.mxu0 0.0
    %3564 = vmatprep.subr.mxu0 0.0
    %3565 = vmatpush1.msra.mxu0 0.0
    %3566 = vmatprep.subr.mxu0 0.0
    %3567 = vmatpush1.msra.mxu0 0.0
    %3568 = vmatprep.subr.mxu0 0.0
    %3569 = vmatpush1.msra.mxu0 0.0
    %3570 = vmatprep.subr.mxu0 0.0
    %3571 = vmatpush1.msra.mxu0 0.0
    %3572 = vmatprep.subr.mxu0 0.0
    %3573 = vmatpush1.msra.mxu0 0.0
    %3574 = vmatprep.subr.mxu0 0.0
    %3575 = vmatpush1.msra.mxu0 0.0
    %3576 = vmatprep.subr.mxu0 0.0
    %3577 = vmatpush1.msra.mxu0 0.0
    %3578 = vmatprep.subr.mxu0 0.0
    %3579 = vmatpush1.msra.mxu0 0.0
    %3580 = vmatprep.subr.mxu0 0.0
    %3581 = vmatpush1.msra.mxu0 0.0
    %3582 = vmatprep.subr.mxu0 0.0
    %3583 = vmatpush1.msra.mxu0 0.0
    %3584 = vmatprep.subr.mxu0 0.0
    %3585 = vmatpush1.msra.mxu0 0.0
    %3586 = vmatprep.subr.mxu0 0.0
    %3587 = vmatpush1.msra.mxu0 0.0
    %3588 = vmatprep.subr.mxu0 0.0
    %3589 = vmatpush1.msra.mxu0 0.0
    %3590 = vmatprep.subr.mxu0 0.0
    %3591 = vmatpush1.msra.mxu0 0.0
    %3592 = vmatprep.subr.mxu0 0.0
    %3593 = vmatpush1.msra.mxu0 0.0
    %3594 = vmatprep.subr.mxu0 0.0
    %3595 = vmatpush1.msra.mxu0 0.0
    %3596 = vmatprep.subr.mxu0 0.0
    %3597 = vmatpush1.msra.mxu0 0.0
    %3598 = vmatprep.subr.mxu0 0.0
    %3599 = vmatpush1.msra.mxu0 0.0
    %3600 = vmatprep.subr.mxu0 0.0
    %3601 = vmatpush1.msra.mxu0 0.0
    %3602 = vmatprep.subr.mxu0 0.0
    %3603 = vmatpush1.msra.mxu0 0.0
    %3604 = vmatprep.subr.mxu0 0.0
    %3605 = vmatpush1.msra.mxu0 0.0
    %3606 = vmatprep.subr.mxu0 0.0
    %3607 = vmatpush1.msra.mxu0 0.0
    %3608 = vmatprep.subr.mxu0 0.0
    %3609 = vmatpush1.msra.mxu0 0.0
    %3610 = vmatprep.subr.mxu0 0.0
    %3611 = vmatpush1.msra.mxu0 0.0
    %3612 = vmatprep.subr.mxu0 0.0
    %3613 = vmatpush1.msra.mxu0 0.0
    %3614 = vmatprep.mubr.f32.mxu0 0.0
    %3615 = vmatmul.mubr.f32.gmra.mrb[0].mxu0 %v3545
    %v3616 = vpop.f32.mrb[0].mxu0
    %v3617 = vadd.f32 %v3542, %v3616
    %v3618 = vpop.f32.mrb[0].mxu0
    %3619 = vmatprep.mubr.f32.mxu0 0.0
    %3620 = vmatmul.mubr.f32.gmra.mrb[0].mxu0 %v3548
    %v3621 = vpop.f32.mrb[0].mxu0
    %v3622 = vadd.f32 %v3542, %v3621
    %v3623 = vpop.f32.mrb[0].mxu0
    %3624 = vdwg.mxu0
    %v3625 = vmax.f32 %v3617, 0.0
    %v3626 = vmax.f32 %v3622, 0.0
    %v3627 = vld [vmem:[%s14] sm:$0xff]
    %v3628 = vld [vmem:[%s14 + $0x8] sm:$0xff]
    %v3629 = vld [vmem:[%s14 + $0x10] sm:$0xff]
    %v3630 = vld [vmem:[%s14 + $0x18] sm:$0xff]
    %v3631 = vld [vmem:[%s14 + $0x20] sm:$0xff]
    %v3632 = vld [vmem:[%s14 + $0x28] sm:$0xff]
    %v3633 = vld [vmem:[%s14 + $0x30] sm:$0xff]
    %v3634 = vld [vmem:[%s14 + $0x38] sm:$0xff]
    %vm3635 = vcmask 523264
    %v3637 = vsel %vm3635, %v3625, 0
    %v3640 = vsel %vm3635, %v3626, 0
    %3642 = vmatprep.subr.mxu0 0.0
    %3643 = vmatpush1.msra.mxu0 %v3627
    %3644 = vmatprep.subr.mxu0 0.0
    %3645 = vmatpush1.msra.mxu0 %v3628
    %3646 = vmatprep.subr.mxu0 0.0
    %3647 = vmatpush1.msra.mxu0 %v3629
    %3648 = vmatprep.subr.mxu0 0.0
    %3649 = vmatpush1.msra.mxu0 %v3630
    %3650 = vmatprep.subr.mxu0 0.0
    %3651 = vmatpush1.msra.mxu0 %v3631
    %3652 = vmatprep.subr.mxu0 0.0
    %3653 = vmatpush1.msra.mxu0 %v3632
    %3654 = vmatprep.subr.mxu0 0.0
    %3655 = vmatpush1.msra.mxu0 %v3633
    %3656 = vmatprep.subr.mxu0 0.0
    %3657 = vmatpush1.msra.mxu0 %v3634
    %3658 = vmatprep.subr.mxu0 0.0
    %3659 = vmatpush1.msra.mxu0 0.0
    %3660 = vmatprep.subr.mxu0 0.0
    %3661 = vmatpush1.msra.mxu0 0.0
    %3662 = vmatprep.subr.mxu0 0.0
    %3663 = vmatpush1.msra.mxu0 0.0
    %3664 = vmatprep.subr.mxu0 0.0
    %3665 = vmatpush1.msra.mxu0 0.0
    %3666 = vmatprep.subr.mxu0 0.0
    %3667 = vmatpush1.msra.mxu0 0.0
    %3668 = vmatprep.subr.mxu0 0.0
    %3669 = vmatpush1.msra.mxu0 0.0
    %3670 = vmatprep.subr.mxu0 0.0
    %3671 = vmatpush1.msra.mxu0 0.0
    %3672 = vmatprep.subr.mxu0 0.0
    %3673 = vmatpush1.msra.mxu0 0.0
    %3674 = vmatprep.subr.mxu0 0.0
    %3675 = vmatpush1.msra.mxu0 0.0
    %3676 = vmatprep.subr.mxu0 0.0
    %3677 = vmatpush1.msra.mxu0 0.0
    %3678 = vmatprep.subr.mxu0 0.0
    %3679 = vmatpush1.msra.mxu0 0.0
    %3680 = vmatprep.subr.mxu0 0.0
    %3681 = vmatpush1.msra.mxu0 0.0
    %3682 = vmatprep.subr.mxu0 0.0
    %3683 = vmatpush1.msra.mxu0 0.0
    %3684 = vmatprep.subr.mxu0 0.0
    %3685 = vmatpush1.msra.mxu0 0.0
    %3686 = vmatprep.subr.mxu0 0.0
    %3687 = vmatpush1.msra.mxu0 0.0
    %3688 = vmatprep.subr.mxu0 0.0
    %3689 = vmatpush1.msra.mxu0 0.0
    %3690 = vmatprep.subr.mxu0 0.0
    %3691 = vmatpush1.msra.mxu0 0.0
    %3692 = vmatprep.subr.mxu0 0.0
    %3693 = vmatpush1.msra.mxu0 0.0
    %3694 = vmatprep.subr.mxu0 0.0
    %3695 = vmatpush1.msra.mxu0 0.0
    %3696 = vmatprep.subr.mxu0 0.0
    %3697 = vmatpush1.msra.mxu0 0.0
    %3698 = vmatprep.subr.mxu0 0.0
    %3699 = vmatpush1.msra.mxu0 0.0
    %3700 = vmatprep.subr.mxu0 0.0
    %3701 = vmatpush1.msra.mxu0 0.0
    %3702 = vmatprep.subr.mxu0 0.0
    %3703 = vmatpush1.msra.mxu0 0.0
    %3704 = vmatprep.subr.mxu0 0.0
    %3705 = vmatpush1.msra.mxu0 0.0
    %3706 = vmatprep.mubr.f32.mxu0 0.0
    %3707 = vmatmul.mubr.f32.gmra.mrb[0].mxu0 %v3637
    %v3708 = vpop.f32.mrb[0].mxu0
    %v3709 = vadd.f32 0.0, %v3708
    %v3710 = vpop.f32.mrb[0].mxu0
    %3711 = vmatprep.mubr.f32.mxu0 0.0
    %3712 = vmatmul.mubr.f32.gmra.mrb[0].mxu0 %v3640
    %v3713 = vpop.f32.mrb[0].mxu0
    %v3714 = vadd.f32 0.0, %v3713
    %v3715 = vpop.f32.mrb[0].mxu0
    %3716 = vdwg.mxu0
    %v3717 = vadd.f32 %v3487, %v3709
    %v3718 = vadd.f32 %v3488, %v3714
    %v3719 = vld [vmem:[#allocation13] sm:$0x1]
    %v3721 = vlaneseq
    %v3722 = vshrl.u32 %v3721, 7
    %v3723 = vsub.s32 0, %v3722
    %v3724 = vrot.slane %v3719, %v3723
    %v3726 = vadd.f32 %v3717, %v3724
    %v3727 = vadd.f32 %v3718, %v3724
    %3728 = vst.msk [vmem:[#allocation19] sm:$0xff] %vm202, %v3726
    %3729 = vst.msk [vmem:[#allocation19 + $0x8] sm:$0xff] %vm202, %v3727
    // Predicated region
    $region130: #{decoder_layer.1} parent=1 // pred_check
      _
    $region131: #{decoder_layer.1} parent=1 // pred_check_branch
      %3731 = sbr.rel (0) target = $region133
    $region132: #{decoder_layer.1} parent=1 // pred_region
      %s3733 = ssub.s32 256, 256
      %3734 = vsyncadd [#allocation4], %s3733
      %s3735 = sshll.u32 [#allocation19], 4
      %s3736 = int_to_ptr.vmem [resolvable:$true] %s3735
      %3741 = dma.vmem_to_hbm [thread:$0]  %s3736, 256, %s22, [#allocation4], 128, 128, 8
    $region133: #{decoder_layer.1} parent=1 // pred_fallthru
      _
    // Predicated region
    $region134: #{decoder_layer.1} parent=1 // pred_check
      _
    $region135: #{decoder_layer.1} parent=1 // pred_check_branch
      %3743 = sbr.rel (0) target = $region137
    $region136: #{decoder_layer.1} parent=1 // pred_region
      %3744 = dma.done [#allocation4], 256
    $region137: #{decoder_layer.1} parent=1 // pred_fallthru
      _
    %3745 = vsyncpa [#allocation3], 1
    %3746 = vsyncpa [#allocation6], 1
    %3747 = vsyncpa [#allocation9], 1
    %3748 = vsyncpa [#allocation12], 1
    %3749 = vsyncpa [#allocation15], 1
    %3750 = vsyncpa [#allocation18], 1
    %3751 = vsyncpa [#allocation4], 1

</llo_original>
